<compile_context>
chip_gen: v7x
topology: tpu7x:2x2x1
jax: 0.10.0
libtpu: 0.0.40
codegen_flags: <defaults>
</compile_context>

<pallas_src>
import jax
import jax.numpy as jnp
from jax import lax
from jax.experimental import pallas as pl
from jax.experimental.pallas import tpu as pltpu


def _round_up(x, m):
    return (x + m - 1) // m * m


def _merit_decoder_kernel(x1_ref, x2_ref, w1a_ref, w1b_ref, b1_ref,
                          w2_ref, b2_ref, o_ref):
    """One batch tile, computed feature-major so the output is lane-dense."""
    # Contract the feature axis of both operands: (d3, d) x (tb, d) -> (d3, tb).
    dn = (((1,), (1,)), ((), ()))
    h_t = (lax.dot_general(w1a_ref[...], x1_ref[...], dn,
                           precision=lax.Precision.HIGHEST,
                           preferred_element_type=jnp.float32)
           + lax.dot_general(w1b_ref[...], x2_ref[...], dn,
                             precision=lax.Precision.HIGHEST,
                             preferred_element_type=jnp.float32)
           + b1_ref[...])                               # (d3, tb) + (d3, 1)
    h_t = jnp.maximum(h_t, 0.0)                         # ReLU (VPU)

    # fc2 with a single output feature: (1, d3) @ (d3, tb) on the MXU.
    # Result is a lane-dense (1, tb) row -> unmasked store.
    s = lax.dot_general(w2_ref[...], h_t, (((1,), (0,)), ((), ())),
                        precision=lax.Precision.HIGHEST,
                        preferred_element_type=jnp.float32) + b2_ref[0, 0]
    o_ref[0] = jax.nn.sigmoid(s).astype(o_ref.dtype)    # sigmoid (EUP)


def merit_decoder(x1, x2, params, *, tile_rows=None):
    """Pallas implementation of MERITDecoder.forward(x1, x2) -> [B] scores.

    params uses the torch layout: W1 [d3, d1+d2], b1 [d3], W2 [d4, d3], b2 [d4].
    `tile_rows` (rows per grid step, multiple of 128) is the main perf knob;
    None -> auto (4096 on v5e, 8192 on v6e/v7x).
    """
    B, d1 = x1.shape
    B2, d2 = x2.shape
    assert B == B2, "x1/x2 batch mismatch"
    w1, b1, w2, b2 = params["W1"], params["b1"], params["W2"], params["b2"]
    d3 = w1.shape[0]
    d4 = w2.shape[0]
    assert w1.shape == (d3, d1 + d2)
    assert d4 == 1, "MERITDecoder squeezes the last dim -> dim4 must be 1"

    # ---- batch tile selection (multiple of 128 -> lane-dense output store) ----
    b128 = _round_up(B, 128)
    if tile_rows is None:
        try:
            kind = jax.devices()[0].device_kind.lower()
        except Exception:
            kind = ""
        tile_rows = 4096 if "v5" in kind else 8192
        tb = min(tile_rows, b128)
        # Keep >= 2 tiles when the batch allows it (v7x dual-TC "parallel" axis).
        if b128 <= tb and b128 >= 256:
            tb = _round_up((b128 + 1) // 2, 128)
    else:
        assert tile_rows % 128 == 0, "tile_rows must be a multiple of 128"
        tb = min(tile_rows, b128)

    B_pad = _round_up(B, tb)
    if B_pad != B:
        pad = B_pad - B
        x1 = jnp.pad(x1, ((0, pad), (0, 0)))
        x2 = jnp.pad(x2, ((0, pad), (0, 0)))
    num_tiles = B_pad // tb

    # ---- kernel-layout weights (tiny one-time reshapes, done by XLA outside) ----
    in_dtype = x1.dtype
    w1a = w1[:, :d1].astype(in_dtype)       # (d3, d1)  multiplies x1
    w1b = w1[:, d1:].astype(in_dtype)       # (d3, d2)  multiplies x2
    b1c = b1.reshape(d3, 1).astype(jnp.float32)     # column bias, broadcasts over lanes
    w2r = w2.reshape(1, d3).astype(jnp.float32)     # fc2 weight as a row (f32, h_t is f32)
    b2s = b2.reshape(1, 1).astype(jnp.float32)      # true scalar, lives in SMEM

    # ---- scoped-VMEM budget: 32-wide blocks pad to 128 lanes ----
    itemsize = jnp.dtype(in_dtype).itemsize
    est = 2 * tb * (_round_up(d1, 128) + _round_up(d2, 128)) * itemsize  # dbl-buffered inputs
    est += 2 * tb * 4                                                    # dbl-buffered output
    est += d3 * (_round_up(d1, 128) + _round_up(d2, 128)) * itemsize     # resident weights
    vmem_limit = None
    if est > 12 * (1 << 20):
        vmem_limit = min(max(2 * est, 32 * (1 << 20)), 48 * (1 << 20))

    out = pl.pallas_call(
        _merit_decoder_kernel,
        out_shape=jax.ShapeDtypeStruct((num_tiles, 1, tb), jnp.float32),
        grid=(num_tiles,),
        in_specs=[
            pl.BlockSpec((tb, d1), lambda i: (i, 0)),    # x1 tile
            pl.BlockSpec((tb, d2), lambda i: (i, 0)),    # x2 tile
            pl.BlockSpec((d3, d1), lambda i: (0, 0)),    # W1 (x1 half), resident
            pl.BlockSpec((d3, d2), lambda i: (0, 0)),    # W1 (x2 half), resident
            pl.BlockSpec((d3, 1), lambda i: (0, 0)),     # b1 column
            pl.BlockSpec((1, d3), lambda i: (0, 0)),     # W2 row
            pl.BlockSpec((1, 1), lambda i: (0, 0),
                         memory_space=pltpu.MemorySpace.SMEM),  # b2 scalar
        ],
        out_specs=pl.BlockSpec((1, 1, tb), lambda i: (i, 0, 0)),
        compiler_params=pltpu.CompilerParams(
            dimension_semantics=("parallel",),
            vmem_limit_bytes=vmem_limit),
    )(x1, x2, w1a, w1b, b1c, w2r, b2s)

    # (num_tiles, 1, tb) -> flat scores; drop padded tail rows.
    return out.reshape(num_tiles * tb)[:B]


def init_params(key, dim1, dim2, dim3, dim4):
    """Xavier-normal-style init matching MergeLayer's torch parameter shapes."""
    k1, k2, k3, k4 = jax.random.split(key, 4)
    std1 = (2.0 / (dim1 + dim2 + dim3)) ** 0.5
    std2 = (2.0 / (dim3 + dim4)) ** 0.5
    return {
        "W1": std1 * jax.random.normal(k1, (dim3, dim1 + dim2), jnp.float32),
        "b1": 0.01 * jax.random.normal(k3, (dim3,), jnp.float32),
        "W2": std2 * jax.random.normal(k2, (dim4, dim3), jnp.float32),
        "b2": 0.01 * jax.random.normal(k4, (dim4,), jnp.float32),
    }


def _reference(x1, x2, p):
    x = jnp.concatenate([x1, x2], axis=1)
    h = jnp.maximum(
        jnp.dot(x, p["W1"].T, precision=lax.Precision.HIGHEST) + p["b1"], 0.0)
    s = jnp.dot(h, p["W2"].T, precision=lax.Precision.HIGHEST) + p["b2"]
    return jax.nn.sigmoid(s[:, 0])


if __name__ == "__main__":
    dim1, dim2, dim3, dim4 = 32, 32, 32, 1
    B = 300  # deliberately NOT a multiple of 128 -> exercises the pad path

    key = jax.random.PRNGKey(0)
    kx1, kx2, kp = jax.random.split(key, 3)
    x1 = jax.random.normal(kx1, (B, dim1), dtype=jnp.float32)
    x2 = jax.random.normal(kx2, (B, dim2), dtype=jnp.float32)
    params = init_params(kp, dim1, dim2, dim3, dim4)

    ref = _reference(x1, x2, params)

    # 1) auto tile selection (pads to a multiple of 128, >= 2 tiles when possible)
    score = jax.block_until_ready(merit_decoder(x1, x2, params))
    assert score.shape == (B,)
    err = float(jnp.max(jnp.abs(score - ref)))
    assert jnp.allclose(score, ref, atol=1e-4, rtol=1e-4), err

    # 2) explicit small tile -> several grid steps (exercises the pipeline)
    score2 = jax.block_until_ready(merit_decoder(x1, x2, params, tile_rows=128))
    err2 = float(jnp.max(jnp.abs(score2 - ref)))
    assert jnp.allclose(score2, ref, atol=1e-4, rtol=1e-4), err2

    print("KERNEL_OK")
</pallas_src>

<mosaic_0001>
module attributes {stable_mosaic.version = 11 : i64} {
  func.func @_merit_decoder_kernel(%arg0: i32, %arg1: memref<256x32xf32, #tpu.memory_space<vmem>>, %arg2: memref<256x32xf32, #tpu.memory_space<vmem>>, %arg3: memref<32x32xf32, #tpu.memory_space<vmem>>, %arg4: memref<32x32xf32, #tpu.memory_space<vmem>>, %arg5: memref<32x1xf32, #tpu.memory_space<vmem>>, %arg6: memref<1x32xf32, #tpu.memory_space<vmem>>, %arg7: memref<1x1xf32, #tpu.memory_space<smem>>, %arg8: memref<1x1x256xf32, #tpu.memory_space<vmem>>) attributes {dimension_semantics = [#tpu.dimension_semantics<parallel>], iteration_bounds = array<i64: 2>, scalar_prefetch = 0 : i64, scratch_operands = 0 : i64, tpu.core_type = #tpu.core_type<tc>, window_params = [{transform_indices = @transform_0, window_bounds = array<i64: 256, 32>}, {transform_indices = @transform_1, window_bounds = array<i64: 256, 32>}, {pipeline_mode = #tpu.pipeline_mode<synchronous>, transform_indices = @transform_2, window_bounds = array<i64: 32, 32>}, {pipeline_mode = #tpu.pipeline_mode<synchronous>, transform_indices = @transform_3, window_bounds = array<i64: 32, 32>}, {pipeline_mode = #tpu.pipeline_mode<synchronous>, transform_indices = @transform_4, window_bounds = array<i64: 32, 1>}, {pipeline_mode = #tpu.pipeline_mode<synchronous>, transform_indices = @transform_5, window_bounds = array<i64: 1, 32>}, {transform_indices = @transform_6, window_bounds = array<i64: 1, 1>}, {transform_indices = @transform_7, window_bounds = array<i64: 1, 1, 256>}]} {
    %c0 = arith.constant 0 : index
    %c0_0 = arith.constant 0 : index
    %0 = vector.load %arg3[%c0, %c0_0] : memref<32x32xf32, #tpu.memory_space<vmem>>, vector<32x32xf32>
    %c0_1 = arith.constant 0 : index
    %c0_2 = arith.constant 0 : index
    %1 = vector.load %arg1[%c0_1, %c0_2] : memref<256x32xf32, #tpu.memory_space<vmem>>, vector<256x32xf32>
    %cst = arith.constant dense<0.000000e+00> : vector<32x256xf32>
    %2 = tpu.matmul %0, %1, %cst {dimension_numbers = #tpu.dot_dimension_numbers<[1], [1], [0], [0], [0, 0, 1, 0], [], []>, precision = #tpu.contract_precision<fp32>} : vector<32x32xf32>, vector<256x32xf32>, vector<32x256xf32> -> vector<32x256xf32>
    %c0_3 = arith.constant 0 : index
    %c0_4 = arith.constant 0 : index
    %3 = vector.load %arg4[%c0_3, %c0_4] : memref<32x32xf32, #tpu.memory_space<vmem>>, vector<32x32xf32>
    %c0_5 = arith.constant 0 : index
    %c0_6 = arith.constant 0 : index
    %4 = vector.load %arg2[%c0_5, %c0_6] : memref<256x32xf32, #tpu.memory_space<vmem>>, vector<256x32xf32>
    %cst_7 = arith.constant dense<0.000000e+00> : vector<32x256xf32>
    %5 = tpu.matmul %3, %4, %cst_7 {dimension_numbers = #tpu.dot_dimension_numbers<[1], [1], [0], [0], [0, 0, 1, 0], [], []>, precision = #tpu.contract_precision<fp32>} : vector<32x32xf32>, vector<256x32xf32>, vector<32x256xf32> -> vector<32x256xf32>
    %6 = arith.addf %2, %5 : vector<32x256xf32>
    %c0_8 = arith.constant 0 : index
    %c0_9 = arith.constant 0 : index
    %7 = vector.load %arg5[%c0_8, %c0_9] : memref<32x1xf32, #tpu.memory_space<vmem>>, vector<32x1xf32>
    %8 = vector.broadcast %7 : vector<32x1xf32> to vector<32x256xf32>
    %9 = arith.addf %6, %8 : vector<32x256xf32>
    %cst_10 = arith.constant 0.000000e+00 : f32
    %10 = vector.broadcast %cst_10 : f32 to vector<32x256xf32>
    %11 = arith.maximumf %9, %10 : vector<32x256xf32>
    %c0_11 = arith.constant 0 : index
    %c0_12 = arith.constant 0 : index
    %12 = vector.load %arg6[%c0_11, %c0_12] : memref<1x32xf32, #tpu.memory_space<vmem>>, vector<1x32xf32>
    %cst_13 = arith.constant dense<0.000000e+00> : vector<1x256xf32>
    %13 = tpu.matmul %12, %11, %cst_13 {dimension_numbers = #tpu.dot_dimension_numbers<[1], [0], [0], [1], [0, 0, 1, 1], [], []>, precision = #tpu.contract_precision<fp32>} : vector<1x32xf32>, vector<32x256xf32>, vector<1x256xf32> -> vector<1x256xf32>
    %c0_14 = arith.constant 0 : index
    %c0_15 = arith.constant 0 : index
    %14 = memref.load %arg7[%c0_14, %c0_15] : memref<1x1xf32, #tpu.memory_space<smem>>
    %15 = vector.broadcast %14 : f32 to vector<1x256xf32>
    %16 = arith.addf %13, %15 : vector<1x256xf32>
    %17 = arith.negf %16 : vector<1x256xf32>
    %18 = math.exp %17 : vector<1x256xf32>
    %cst_16 = arith.constant 1.000000e+00 : f32
    %19 = vector.broadcast %cst_16 : f32 to vector<1x256xf32>
    %20 = arith.addf %19, %18 : vector<1x256xf32>
    %21 = arith.divf %19, %20 : vector<1x256xf32>
    %c0_17 = arith.constant 0 : index
    %c0_18 = arith.constant 0 : index
    %c0_19 = arith.constant 0 : index
    %22 = vector.load %arg8[%c0_17, %c0_18, %c0_19] : memref<1x1x256xf32, #tpu.memory_space<vmem>>, vector<1x1x256xf32>
    %23 = vector.shape_cast %22 : vector<1x1x256xf32> to vector<1x256xf32>
    %24 = vector.shape_cast %21 : vector<1x256xf32> to vector<1x1x256xf32>
    tpu.vector_store %arg8[%c0_17, %c0_18, %c0_19], %24 {strides = array<i32>} : memref<1x1x256xf32, #tpu.memory_space<vmem>>, vector<1x1x256xf32>,
    return
  }
  func.func @transform_0(%arg0: i32) -> (i32, i32) {
    %c0_i32 = arith.constant 0 : i32
    %c0_i32_0 = arith.constant 0 : i32
    return %arg0, %c0_i32 : i32, i32
  }
  func.func @transform_1(%arg0: i32) -> (i32, i32) {
    %c0_i32 = arith.constant 0 : i32
    %c0_i32_0 = arith.constant 0 : i32
    return %arg0, %c0_i32 : i32, i32
  }
  func.func @transform_2(%arg0: i32) -> (i32, i32) {
    %c0_i32 = arith.constant 0 : i32
    %c0_i32_0 = arith.constant 0 : i32
    %c0_i32_1 = arith.constant 0 : i32
    return %c0_i32, %c0_i32_0 : i32, i32
  }
  func.func @transform_3(%arg0: i32) -> (i32, i32) {
    %c0_i32 = arith.constant 0 : i32
    %c0_i32_0 = arith.constant 0 : i32
    %c0_i32_1 = arith.constant 0 : i32
    return %c0_i32, %c0_i32_0 : i32, i32
  }
  func.func @transform_4(%arg0: i32) -> (i32, i32) {
    %c0_i32 = arith.constant 0 : i32
    %c0_i32_0 = arith.constant 0 : i32
    %c0_i32_1 = arith.constant 0 : i32
    return %c0_i32, %c0_i32_0 : i32, i32
  }
  func.func @transform_5(%arg0: i32) -> (i32, i32) {
    %c0_i32 = arith.constant 0 : i32
    %c0_i32_0 = arith.constant 0 : i32
    %c0_i32_1 = arith.constant 0 : i32
    return %c0_i32, %c0_i32_0 : i32, i32
  }
  func.func @transform_6(%arg0: i32) -> (i32, i32) {
    %c0_i32 = arith.constant 0 : i32
    %c0_i32_0 = arith.constant 0 : i32
    %c0_i32_1 = arith.constant 0 : i32
    return %c0_i32, %c0_i32_0 : i32, i32
  }
  func.func @transform_7(%arg0: i32) -> (i32, i32, i32) {
    %c0_i32 = arith.constant 0 : i32
    %c0_i32_0 = arith.constant 0 : i32
    %c0_i32_1 = arith.constant 0 : i32
    return %arg0, %c0_i32, %c0_i32_0 : i32, i32, i32
  }
}

</mosaic_0001>

<llo_original>
// kernel: tpu_custom_call.1
$region0: #{tpu_custom_call.1}
  #allocation0 [shape = 'u32[]', space=smem, size = 0x4, offset = 0x4, fixed_abs, tag = 'smem constant byte address 0x4 - core index']
  #allocation1 [shape = 'u32[144,128]{1,0:T(1,128)}', space=vmem, size = 0x12000, scoped, tag = 'internal scratch']
  #allocation2 [shape = 'f32[1,1]{1,0:T(1,128)S(6)}', space=smem, size = 0x200, scoped, tag = 'scoped memory for tpu_custom_call.1']
  %s0 = inlined_call_operand.vmem [shape: f32[512,32], index: 0, kind: input, shape index: {}]
  %s1 = inlined_call_operand.vmem [shape: f32[512,32], index: 1, kind: input, shape index: {}]
  %s2 = inlined_call_operand.vmem [shape: f32[32,32], index: 2, kind: input, shape index: {}]
  %s3 = inlined_call_operand.vmem [shape: f32[32,32], index: 3, kind: input, shape index: {}]
  %s4 = inlined_call_operand.vmem [shape: f32[32,1], index: 4, kind: input, shape index: {}]
  %s5 = inlined_call_operand.vmem [shape: f32[1,32], index: 5, kind: input, shape index: {}]
  %s6 = inlined_call_operand.<no memory space> [shape: f32[1,1], index: 6, kind: input, shape index: {}]
  %s7 = inlined_call_operand.hbm [shape: f32[2,1,256], index: 7, kind: output, shape index: {}]
  %s8 = sld [smem:[#allocation0]]
  $region61: #{tpu_custom_call.1} parent=0
    _
  %s10 = ssub.s32 1, %s8
  %s11 = scalar_select 0, %s10, %s8
  %12 = sst [smem:[#allocation2]] %s6
  $region1: #{tpu_custom_call.1} parent=0
    #allocation3 [shape = 'u8[2048]{0}', space=vmem, size = 0x800, scoped, tag = 'output window, operand 0']
    #allocation4 [shape = 's32[2]{0}', space=sflag, size = 0x8, scoped, tag = 'scoped memory for tpu_custom_call.1']
    %13 = vsyncpa [#allocation4], 0
    %s14 = scalar_lea.sflag [#allocation4], 1
    %15 = vsyncpa %s14, 0
    loop: start=0, step=1, limit=4
    $region2: #{tpu_custom_call.1} parent=1 // loop_pre_header
      _
    $region3: #{tpu_custom_call.1} parent=1 // loop_header
      %s17 = sphi 0, %s21
      %p18 = scmp.ge.s32.totalorder %s17, 4
      %s27 = sphi 0, %s29
      %s30 = sphi 0, %s27
      %s31 = sphi 0, %s30
      %s47 = sphi 0, %s31
      %s53 = sphi 0, %s55
      %s56 = sphi 0, %s53
      %s57 = sphi 0, %s56
      %s73 = sphi 0, %s57
      %s77 = sphi 0, %s77
      %s79 = sphi 0, %s77
      %s80 = sphi 0, %s79
      %s94 = sphi 0, %s80
      %s98 = sphi 0, %s98
      %s100 = sphi 0, %s98
      %s101 = sphi 0, %s100
      %s115 = sphi 0, %s101
      %s119 = sphi 0, %s119
      %s121 = sphi 0, %s119
      %s122 = sphi 0, %s121
      %s136 = sphi 0, %s122
      %s140 = sphi 0, %s140
      %s142 = sphi 0, %s140
      %s143 = sphi 0, %s142
      %s157 = sphi 0, %s143
      %s161 = sphi 0, %s161
      %s163 = sphi 0, %s161
      %s164 = sphi 0, %s163
      %s178 = sphi 0, %s164
      %s184 = sphi 0, %s186
      %s187 = sphi 0, %s184
      %s188 = sphi 0, %s187
      %s204 = sphi 0, %s188
    $region4: #{tpu_custom_call.1} parent=1 // loop_header_branch
      %20 = sbr.rel (%p18) target = $region8
    $region5: #{tpu_custom_call.1} parent=1 // loop_body
      %s22 = ssub.s32 %s17, 1
      %s23 = ssub.s32 %s17, 2
      %s24 = sadd.s32 %s17, 1
      %s25 = ssub.s32 %s17, %s24
      %p26 = scmp.eq.s32.totalorder %s25, 0
      %s28 = sadd.s32 %s27, 1
      %s29 = scalar_select %p26, %s27, %s28
      %p32 = pneg %p26
      %p33 = scmp.eq.s32.totalorder %s17, 1
      %p34 = por %p32, %p33
      %p35 = scmp.ne.s32.totalorder %s27, %s30
      %p36 = scmp.eq.s32.totalorder %s17, 0
      %p37 = por %p35, %p36
      %p38 = scmp.ne.s32.totalorder %s27, %s30
      %p39 = scmp.eq.s32.totalorder %s22, 1
      %p40 = por %p38, %p39
      %p41 = scmp.ne.s32.totalorder %s30, %s31
      %p42 = scmp.eq.s32.totalorder %s22, 0
      %p43 = por %p41, %p42
      %p44 = scmp.ne.s32.totalorder %s30, %s31
      %p45 = scmp.eq.s32.totalorder %s23, 1
      %p46 = por %p44, %p45
      %p48 = scmp.ne.s32.totalorder %s31, %s47
      %p49 = scmp.eq.s32.totalorder %s23, 0
      %p50 = por %p48, %p49
      %s51 = ssub.s32 %s17, %s24
      %p52 = scmp.eq.s32.totalorder %s51, 0
      %s54 = sadd.s32 %s53, 1
      %s55 = scalar_select %p52, %s53, %s54
      %p58 = pneg %p52
      %p59 = scmp.eq.s32.totalorder %s17, 1
      %p60 = por %p58, %p59
      %p61 = scmp.ne.s32.totalorder %s53, %s56
      %p62 = scmp.eq.s32.totalorder %s17, 0
      %p63 = por %p61, %p62
      %p64 = scmp.ne.s32.totalorder %s53, %s56
      %p65 = scmp.eq.s32.totalorder %s22, 1
      %p66 = por %p64, %p65
      %p67 = scmp.ne.s32.totalorder %s56, %s57
      %p68 = scmp.eq.s32.totalorder %s22, 0
      %p69 = por %p67, %p68
      %p70 = scmp.ne.s32.totalorder %s56, %s57
      %p71 = scmp.eq.s32.totalorder %s23, 1
      %p72 = por %p70, %p71
      %p74 = scmp.ne.s32.totalorder %s57, %s73
      %p75 = scmp.eq.s32.totalorder %s23, 0
      %p76 = por %p74, %p75
      %s78 = sadd.s32 %s77, 1
      %p81 = scmp.eq.s32.totalorder %s17, 1
      %p82 = scmp.ne.s32.totalorder %s77, %s79
      %p83 = scmp.eq.s32.totalorder %s17, 0
      %p84 = por %p82, %p83
      %p85 = scmp.ne.s32.totalorder %s77, %s79
      %p86 = scmp.eq.s32.totalorder %s22, 1
      %p87 = por %p85, %p86
      %p88 = scmp.ne.s32.totalorder %s79, %s80
      %p89 = scmp.eq.s32.totalorder %s22, 0
      %p90 = por %p88, %p89
      %p91 = scmp.ne.s32.totalorder %s79, %s80
      %p92 = scmp.eq.s32.totalorder %s23, 1
      %p93 = por %p91, %p92
      %p95 = scmp.ne.s32.totalorder %s80, %s94
      %p96 = scmp.eq.s32.totalorder %s23, 0
      %p97 = por %p95, %p96
      %s99 = sadd.s32 %s98, 1
      %p102 = scmp.eq.s32.totalorder %s17, 1
      %p103 = scmp.ne.s32.totalorder %s98, %s100
      %p104 = scmp.eq.s32.totalorder %s17, 0
      %p105 = por %p103, %p104
      %p106 = scmp.ne.s32.totalorder %s98, %s100
      %p107 = scmp.eq.s32.totalorder %s22, 1
      %p108 = por %p106, %p107
      %p109 = scmp.ne.s32.totalorder %s100, %s101
      %p110 = scmp.eq.s32.totalorder %s22, 0
      %p111 = por %p109, %p110
      %p112 = scmp.ne.s32.totalorder %s100, %s101
      %p113 = scmp.eq.s32.totalorder %s23, 1
      %p114 = por %p112, %p113
      %p116 = scmp.ne.s32.totalorder %s101, %s115
      %p117 = scmp.eq.s32.totalorder %s23, 0
      %p118 = por %p116, %p117
      %s120 = sadd.s32 %s119, 1
      %p123 = scmp.eq.s32.totalorder %s17, 1
      %p124 = scmp.ne.s32.totalorder %s119, %s121
      %p125 = scmp.eq.s32.totalorder %s17, 0
      %p126 = por %p124, %p125
      %p127 = scmp.ne.s32.totalorder %s119, %s121
      %p128 = scmp.eq.s32.totalorder %s22, 1
      %p129 = por %p127, %p128
      %p130 = scmp.ne.s32.totalorder %s121, %s122
      %p131 = scmp.eq.s32.totalorder %s22, 0
      %p132 = por %p130, %p131
      %p133 = scmp.ne.s32.totalorder %s121, %s122
      %p134 = scmp.eq.s32.totalorder %s23, 1
      %p135 = por %p133, %p134
      %p137 = scmp.ne.s32.totalorder %s122, %s136
      %p138 = scmp.eq.s32.totalorder %s23, 0
      %p139 = por %p137, %p138
      %s141 = sadd.s32 %s140, 1
      %p144 = scmp.eq.s32.totalorder %s17, 1
      %p145 = scmp.ne.s32.totalorder %s140, %s142
      %p146 = scmp.eq.s32.totalorder %s17, 0
      %p147 = por %p145, %p146
      %p148 = scmp.ne.s32.totalorder %s140, %s142
      %p149 = scmp.eq.s32.totalorder %s22, 1
      %p150 = por %p148, %p149
      %p151 = scmp.ne.s32.totalorder %s142, %s143
      %p152 = scmp.eq.s32.totalorder %s22, 0
      %p153 = por %p151, %p152
      %p154 = scmp.ne.s32.totalorder %s142, %s143
      %p155 = scmp.eq.s32.totalorder %s23, 1
      %p156 = por %p154, %p155
      %p158 = scmp.ne.s32.totalorder %s143, %s157
      %p159 = scmp.eq.s32.totalorder %s23, 0
      %p160 = por %p158, %p159
      %s162 = sadd.s32 %s161, 1
      %p165 = scmp.eq.s32.totalorder %s17, 1
      %p166 = scmp.ne.s32.totalorder %s161, %s163
      %p167 = scmp.eq.s32.totalorder %s17, 0
      %p168 = por %p166, %p167
      %p169 = scmp.ne.s32.totalorder %s161, %s163
      %p170 = scmp.eq.s32.totalorder %s22, 1
      %p171 = por %p169, %p170
      %p172 = scmp.ne.s32.totalorder %s163, %s164
      %p173 = scmp.eq.s32.totalorder %s22, 0
      %p174 = por %p172, %p173
      %p175 = scmp.ne.s32.totalorder %s163, %s164
      %p176 = scmp.eq.s32.totalorder %s23, 1
      %p177 = por %p175, %p176
      %p179 = scmp.ne.s32.totalorder %s164, %s178
      %p180 = scmp.eq.s32.totalorder %s23, 0
      %p181 = por %p179, %p180
      %s182 = ssub.s32 %s17, %s24
      %p183 = scmp.eq.s32.totalorder %s182, 0
      %s185 = sadd.s32 %s184, 1
      %s186 = scalar_select %p183, %s184, %s185
      %p189 = pneg %p183
      %p190 = scmp.eq.s32.totalorder %s17, 1
      %p191 = por %p189, %p190
      %p192 = scmp.ne.s32.totalorder %s184, %s187
      %p193 = scmp.eq.s32.totalorder %s17, 0
      %p194 = por %p192, %p193
      %p195 = scmp.ne.s32.totalorder %s184, %s187
      %p196 = scmp.eq.s32.totalorder %s22, 1
      %p197 = por %p195, %p196
      %p198 = scmp.ne.s32.totalorder %s187, %s188
      %p199 = scmp.eq.s32.totalorder %s22, 0
      %p200 = por %p198, %p199
      %p201 = scmp.ne.s32.totalorder %s187, %s188
      %p202 = scmp.eq.s32.totalorder %s23, 1
      %p203 = por %p201, %p202
      %p205 = scmp.ne.s32.totalorder %s188, %s204
      %p206 = scmp.eq.s32.totalorder %s23, 0
      %p207 = por %p205, %p206
      %p208 = scmp.le.s32.totalorder 1, %s17
      %p209 = scmp.lt.s32.totalorder %s17, 3
      %p210 = pnand %p208, %p209
      %p211 = pneg %p210
      // Predicated region
      $region9: #{tpu_custom_call.1} parent=5 // pred_check
        _
      $region10: #{tpu_custom_call.1} parent=5 // pred_check_branch
        %213 = sbr.rel (%p210) target = $region12
      $region11: #{tpu_custom_call.1} parent=5 // pred_region
        %s214 = ssub.s32 %s17, 1
        // Predicated region
        $region13: #{tpu_custom_call.1} parent=11 // pred_check
          %p215 = pneg %p90
        $region14: #{tpu_custom_call.1} parent=11 // pred_check_branch
          %217 = sbr.rel (%p215) target = $region16
        $region15: #{tpu_custom_call.1} parent=11 // pred_region
          _
        $region16: #{tpu_custom_call.1} parent=11 // pred_fallthru
          _
        // Predicated region
        $region17: #{tpu_custom_call.1} parent=11 // pred_check
          %p218 = pneg %p111
        $region18: #{tpu_custom_call.1} parent=11 // pred_check_branch
          %220 = sbr.rel (%p218) target = $region20
        $region19: #{tpu_custom_call.1} parent=11 // pred_region
          _
        $region20: #{tpu_custom_call.1} parent=11 // pred_fallthru
          _
        // Predicated region
        $region21: #{tpu_custom_call.1} parent=11 // pred_check
          %p221 = pneg %p132
        $region22: #{tpu_custom_call.1} parent=11 // pred_check_branch
          %223 = sbr.rel (%p221) target = $region24
        $region23: #{tpu_custom_call.1} parent=11 // pred_region
          _
        $region24: #{tpu_custom_call.1} parent=11 // pred_fallthru
          _
        // Predicated region
        $region25: #{tpu_custom_call.1} parent=11 // pred_check
          %p224 = pneg %p153
        $region26: #{tpu_custom_call.1} parent=11 // pred_check_branch
          %226 = sbr.rel (%p224) target = $region28
        $region27: #{tpu_custom_call.1} parent=11 // pred_region
          _
        $region28: #{tpu_custom_call.1} parent=11 // pred_fallthru
          _
        // Predicated region
        $region29: #{tpu_custom_call.1} parent=11 // pred_check
          %p227 = pneg %p174
        $region30: #{tpu_custom_call.1} parent=11 // pred_check_branch
          %229 = sbr.rel (%p227) target = $region32
        $region31: #{tpu_custom_call.1} parent=11 // pred_region
          _
        $region32: #{tpu_custom_call.1} parent=11 // pred_fallthru
          _
      $region12: #{tpu_custom_call.1} parent=5 // pred_fallthru
        _
      %p230 = scmp.lt.s32.totalorder %s17, 2
      // Predicated region
      $region33: #{tpu_custom_call.1} parent=5 // pred_check
        %p231 = pneg %p230
      $region34: #{tpu_custom_call.1} parent=5 // pred_check_branch
        %233 = sbr.rel (%p231) target = $region36
      $region35: #{tpu_custom_call.1} parent=5 // pred_region
        // Predicated region
        $region37: #{tpu_custom_call.1} parent=35 // pred_check
          %p234 = pneg %p37
        $region38: #{tpu_custom_call.1} parent=35 // pred_check_branch
          %236 = sbr.rel (%p234) target = $region40
        $region39: #{tpu_custom_call.1} parent=35 // pred_region
          %s237 = smul.u32 32, %s17
          %p238 = scmp.lt.s32.totalorder %s237, 63
          %s239 = scalar_select %p238, %s237, 63
          %s240 = smul.addr %s239, 8
          %s241 = scalar_lea.vmem %s0, %s240
          %s242 = smul.u32 32, %s17
        $region40: #{tpu_custom_call.1} parent=35 // pred_fallthru
          _
        // Predicated region
        $region41: #{tpu_custom_call.1} parent=35 // pred_check
          %p243 = pneg %p63
        $region42: #{tpu_custom_call.1} parent=35 // pred_check_branch
          %245 = sbr.rel (%p243) target = $region44
        $region43: #{tpu_custom_call.1} parent=35 // pred_region
          %s246 = smul.u32 32, %s17
          %p247 = scmp.lt.s32.totalorder %s246, 63
          %s248 = scalar_select %p247, %s246, 63
          %s249 = smul.addr %s248, 8
          %s250 = scalar_lea.vmem %s1, %s249
          %s251 = smul.u32 32, %s17
        $region44: #{tpu_custom_call.1} parent=35 // pred_fallthru
          _
      $region36: #{tpu_custom_call.1} parent=5 // pred_fallthru
        _
      %p252 = scmp.le.s32.totalorder 1, %s17
      %p253 = scmp.lt.s32.totalorder %s17, 3
      %p254 = pnand %p252, %p253
      %p255 = pneg %p254
      // Predicated region
      $region45: #{tpu_custom_call.1} parent=5 // pred_check
        _
      $region46: #{tpu_custom_call.1} parent=5 // pred_check_branch
        %257 = sbr.rel (%p254) target = $region48
      $region47: #{tpu_custom_call.1} parent=5 // pred_region
        %s258 = ssub.s32 %s17, 1
        %s259 = smul.u32 32, %s22
        %p260 = scmp.lt.s32.totalorder %s259, 63
        %s261 = scalar_select %p260, %s259, 63
        %s262 = smul.addr %s261, 8
        %s263 = scalar_lea.vmem %s0, %s262
        %p264 = pneg %p43
        %p265 = pneg %p40
        %s266 = smul.u32 32, %s22
        %p267 = scmp.lt.s32.totalorder %s266, 63
        %s268 = scalar_select %p267, %s266, 63
        %s269 = smul.addr %s268, 8
        %s270 = scalar_lea.vmem %s1, %s269
        %p271 = pneg %p69
        %p272 = pneg %p66
        %p273 = pneg %p90
        %p274 = pneg %p87
        %p275 = pneg %p111
        %p276 = pneg %p108
        %p277 = pneg %p132
        %p278 = pneg %p129
        %p279 = pneg %p153
        %p280 = pneg %p150
        %p281 = pneg %p174
        %p282 = pneg %p171
        %p283 = pneg %p200
        %p284 = pneg %p197
        %s285 = sand.u32 %s187, 1
        %s286 = scalar_lea.sflag [#allocation4], %s285
        %s287 = sand.u32 %s187, 1
        %s288 = smul.addr %s287, 2
        %s289 = scalar_lea.vmem [#allocation3], %s288
        %s290 = smul.u32 32, %s22
        %p291 = scmp.lt.s32.totalorder %s290, 63
        %s292 = scalar_select %p291, %s290, 63
        %s293 = smul.addr %s292, 8
        %s294 = scalar_lea.vmem %s0, %s293
        %s295 = smul.u32 32, %s22
        %s296 = smul.u32 32, %s22
        %p297 = scmp.lt.s32.totalorder %s296, 63
        %s298 = scalar_select %p297, %s296, 63
        %s299 = smul.addr %s298, 8
        %s300 = scalar_lea.vmem %s1, %s299
        %s301 = smul.u32 32, %s22
        %v302 = vld [vmem:[%s2] sm:$0xff]
        %v303 = vld [vmem:[%s2 + $0x8] sm:$0xff]
        %v304 = vld [vmem:[%s2 + $0x10] sm:$0xff]
        %v305 = vld [vmem:[%s2 + $0x18] sm:$0xff]
        %v306 = vld [vmem:[%s294] sm:$0xff]
        %v307 = vld [vmem:[%s294 + $0x8] sm:$0xff]
        %v308 = vld [vmem:[%s294 + $0x10] sm:$0xff]
        %v309 = vld [vmem:[%s294 + $0x18] sm:$0xff]
        %v310 = vld [vmem:[%s294 + $0x20] sm:$0xff]
        %v311 = vld [vmem:[%s294 + $0x28] sm:$0xff]
        %v312 = vld [vmem:[%s294 + $0x30] sm:$0xff]
        %v313 = vld [vmem:[%s294 + $0x38] sm:$0xff]
        %v314 = vld [vmem:[%s294 + $0x40] sm:$0xff]
        %v315 = vld [vmem:[%s294 + $0x48] sm:$0xff]
        %v316 = vld [vmem:[%s294 + $0x50] sm:$0xff]
        %v317 = vld [vmem:[%s294 + $0x58] sm:$0xff]
        %v318 = vld [vmem:[%s294 + $0x60] sm:$0xff]
        %v319 = vld [vmem:[%s294 + $0x68] sm:$0xff]
        %v320 = vld [vmem:[%s294 + $0x70] sm:$0xff]
        %v321 = vld [vmem:[%s294 + $0x78] sm:$0xff]
        %v322 = vld [vmem:[%s294 + $0x80] sm:$0xff]
        %v323 = vld [vmem:[%s294 + $0x88] sm:$0xff]
        %v324 = vld [vmem:[%s294 + $0x90] sm:$0xff]
        %v325 = vld [vmem:[%s294 + $0x98] sm:$0xff]
        %v326 = vld [vmem:[%s294 + $0xa0] sm:$0xff]
        %v327 = vld [vmem:[%s294 + $0xa8] sm:$0xff]
        %v328 = vld [vmem:[%s294 + $0xb0] sm:$0xff]
        %v329 = vld [vmem:[%s294 + $0xb8] sm:$0xff]
        %v330 = vld [vmem:[%s294 + $0xc0] sm:$0xff]
        %v331 = vld [vmem:[%s294 + $0xc8] sm:$0xff]
        %v332 = vld [vmem:[%s294 + $0xd0] sm:$0xff]
        %v333 = vld [vmem:[%s294 + $0xd8] sm:$0xff]
        %v334 = vld [vmem:[%s294 + $0xe0] sm:$0xff]
        %v335 = vld [vmem:[%s294 + $0xe8] sm:$0xff]
        %v336 = vld [vmem:[%s294 + $0xf0] sm:$0xff]
        %v337 = vld [vmem:[%s294 + $0xf8] sm:$0xff]
        %v338 = vld [vmem:[%s3] sm:$0xff]
        %v339 = vld [vmem:[%s3 + $0x8] sm:$0xff]
        %v340 = vld [vmem:[%s3 + $0x10] sm:$0xff]
        %v341 = vld [vmem:[%s3 + $0x18] sm:$0xff]
        %v342 = vld [vmem:[%s300] sm:$0xff]
        %v343 = vld [vmem:[%s300 + $0x8] sm:$0xff]
        %v344 = vld [vmem:[%s300 + $0x10] sm:$0xff]
        %v345 = vld [vmem:[%s300 + $0x18] sm:$0xff]
        %v346 = vld [vmem:[%s300 + $0x20] sm:$0xff]
        %v347 = vld [vmem:[%s300 + $0x28] sm:$0xff]
        %v348 = vld [vmem:[%s300 + $0x30] sm:$0xff]
        %v349 = vld [vmem:[%s300 + $0x38] sm:$0xff]
        %v350 = vld [vmem:[%s300 + $0x40] sm:$0xff]
        %v351 = vld [vmem:[%s300 + $0x48] sm:$0xff]
        %v352 = vld [vmem:[%s300 + $0x50] sm:$0xff]
        %v353 = vld [vmem:[%s300 + $0x58] sm:$0xff]
        %v354 = vld [vmem:[%s300 + $0x60] sm:$0xff]
        %v355 = vld [vmem:[%s300 + $0x68] sm:$0xff]
        %v356 = vld [vmem:[%s300 + $0x70] sm:$0xff]
        %v357 = vld [vmem:[%s300 + $0x78] sm:$0xff]
        %v358 = vld [vmem:[%s300 + $0x80] sm:$0xff]
        %v359 = vld [vmem:[%s300 + $0x88] sm:$0xff]
        %v360 = vld [vmem:[%s300 + $0x90] sm:$0xff]
        %v361 = vld [vmem:[%s300 + $0x98] sm:$0xff]
        %v362 = vld [vmem:[%s300 + $0xa0] sm:$0xff]
        %v363 = vld [vmem:[%s300 + $0xa8] sm:$0xff]
        %v364 = vld [vmem:[%s300 + $0xb0] sm:$0xff]
        %v365 = vld [vmem:[%s300 + $0xb8] sm:$0xff]
        %v366 = vld [vmem:[%s300 + $0xc0] sm:$0xff]
        %v367 = vld [vmem:[%s300 + $0xc8] sm:$0xff]
        %v368 = vld [vmem:[%s300 + $0xd0] sm:$0xff]
        %v369 = vld [vmem:[%s300 + $0xd8] sm:$0xff]
        %v370 = vld [vmem:[%s300 + $0xe0] sm:$0xff]
        %v371 = vld [vmem:[%s300 + $0xe8] sm:$0xff]
        %v372 = vld [vmem:[%s300 + $0xf0] sm:$0xff]
        %v373 = vld [vmem:[%s300 + $0xf8] sm:$0xff]
        %vm374 = vcmask 261120
        %v376 = vsel %vm374, %v338, 0
        %v379 = vsel %vm374, %v339, 0
        %v382 = vsel %vm374, %v340, 0
        %v385 = vsel %vm374, %v341, 0
        %v388 = vsel %vm374, %v342, 0
        %v391 = vsel %vm374, %v343, 0
        %v394 = vsel %vm374, %v344, 0
        %v397 = vsel %vm374, %v345, 0
        %v400 = vsel %vm374, %v346, 0
        %v403 = vsel %vm374, %v347, 0
        %v406 = vsel %vm374, %v348, 0
        %v409 = vsel %vm374, %v349, 0
        %v412 = vsel %vm374, %v350, 0
        %v415 = vsel %vm374, %v351, 0
        %v418 = vsel %vm374, %v352, 0
        %v421 = vsel %vm374, %v353, 0
        %v424 = vsel %vm374, %v354, 0
        %v427 = vsel %vm374, %v355, 0
        %v430 = vsel %vm374, %v356, 0
        %v433 = vsel %vm374, %v357, 0
        %v436 = vsel %vm374, %v358, 0
        %v439 = vsel %vm374, %v359, 0
        %v442 = vsel %vm374, %v360, 0
        %v445 = vsel %vm374, %v361, 0
        %v448 = vsel %vm374, %v362, 0
        %v451 = vsel %vm374, %v363, 0
        %v454 = vsel %vm374, %v364, 0
        %v457 = vsel %vm374, %v365, 0
        %v460 = vsel %vm374, %v366, 0
        %v463 = vsel %vm374, %v367, 0
        %v466 = vsel %vm374, %v368, 0
        %v469 = vsel %vm374, %v369, 0
        %v472 = vsel %vm374, %v370, 0
        %v475 = vsel %vm374, %v371, 0
        %v478 = vsel %vm374, %v372, 0
        %v481 = vsel %vm374, %v373, 0
        %483 = vmatprep.subr.mxu0 0.0
        %v484 = vand.u32 %v388, 4294901760
        %485 = vmatpush1.xpose.msra.mxu0 %v484
        %486 = vmatprep.subr.mxu0 0.0
        %v487 = vand.u32 %v391, 4294901760
        %488 = vmatpush1.xpose.msra.mxu0 %v487
        %489 = vmatprep.subr.mxu0 0.0
        %v490 = vand.u32 %v394, 4294901760
        %491 = vmatpush1.xpose.msra.mxu0 %v490
        %492 = vmatprep.subr.mxu0 0.0
        %v493 = vand.u32 %v397, 4294901760
        %494 = vmatpush1.xpose.msra.mxu0 %v493
        %495 = vmatprep.subr.mxu0 0.0
        %v496 = vand.u32 %v400, 4294901760
        %497 = vmatpush1.xpose.msra.mxu0 %v496
        %498 = vmatprep.subr.mxu0 0.0
        %v499 = vand.u32 %v403, 4294901760
        %500 = vmatpush1.xpose.msra.mxu0 %v499
        %501 = vmatprep.subr.mxu0 0.0
        %v502 = vand.u32 %v406, 4294901760
        %503 = vmatpush1.xpose.msra.mxu0 %v502
        %504 = vmatprep.subr.mxu0 0.0
        %v505 = vand.u32 %v409, 4294901760
        %506 = vmatpush1.xpose.msra.mxu0 %v505
        %507 = vmatprep.subr.mxu0 0.0
        %v508 = vand.u32 %v412, 4294901760
        %509 = vmatpush1.xpose.msra.mxu0 %v508
        %510 = vmatprep.subr.mxu0 0.0
        %v511 = vand.u32 %v415, 4294901760
        %512 = vmatpush1.xpose.msra.mxu0 %v511
        %513 = vmatprep.subr.mxu0 0.0
        %v514 = vand.u32 %v418, 4294901760
        %515 = vmatpush1.xpose.msra.mxu0 %v514
        %516 = vmatprep.subr.mxu0 0.0
        %v517 = vand.u32 %v421, 4294901760
        %518 = vmatpush1.xpose.msra.mxu0 %v517
        %519 = vmatprep.subr.mxu0 0.0
        %v520 = vand.u32 %v424, 4294901760
        %521 = vmatpush1.xpose.msra.mxu0 %v520
        %522 = vmatprep.subr.mxu0 0.0
        %v523 = vand.u32 %v427, 4294901760
        %524 = vmatpush1.xpose.msra.mxu0 %v523
        %525 = vmatprep.subr.mxu0 0.0
        %v526 = vand.u32 %v430, 4294901760
        %527 = vmatpush1.xpose.msra.mxu0 %v526
        %528 = vmatprep.subr.mxu0 0.0
        %v529 = vand.u32 %v433, 4294901760
        %530 = vmatpush1.xpose.msra.mxu0 %v529
        %531 = vmatprep.subr.mxu0 0.0
        %v532 = vand.u32 %v436, 4294901760
        %533 = vmatpush1.xpose.msra.mxu0 %v532
        %534 = vmatprep.subr.mxu0 0.0
        %v535 = vand.u32 %v439, 4294901760
        %536 = vmatpush1.xpose.msra.mxu0 %v535
        %537 = vmatprep.subr.mxu0 0.0
        %v538 = vand.u32 %v442, 4294901760
        %539 = vmatpush1.xpose.msra.mxu0 %v538
        %540 = vmatprep.subr.mxu0 0.0
        %v541 = vand.u32 %v445, 4294901760
        %542 = vmatpush1.xpose.msra.mxu0 %v541
        %543 = vmatprep.subr.mxu0 0.0
        %v544 = vand.u32 %v448, 4294901760
        %545 = vmatpush1.xpose.msra.mxu0 %v544
        %546 = vmatprep.subr.mxu0 0.0
        %v547 = vand.u32 %v451, 4294901760
        %548 = vmatpush1.xpose.msra.mxu0 %v547
        %549 = vmatprep.subr.mxu0 0.0
        %v550 = vand.u32 %v454, 4294901760
        %551 = vmatpush1.xpose.msra.mxu0 %v550
        %552 = vmatprep.subr.mxu0 0.0
        %v553 = vand.u32 %v457, 4294901760
        %554 = vmatpush1.xpose.msra.mxu0 %v553
        %555 = vmatprep.subr.mxu0 0.0
        %v556 = vand.u32 %v460, 4294901760
        %557 = vmatpush1.xpose.msra.mxu0 %v556
        %558 = vmatprep.subr.mxu0 0.0
        %v559 = vand.u32 %v463, 4294901760
        %560 = vmatpush1.xpose.msra.mxu0 %v559
        %561 = vmatprep.subr.mxu0 0.0
        %v562 = vand.u32 %v466, 4294901760
        %563 = vmatpush1.xpose.msra.mxu0 %v562
        %564 = vmatprep.subr.mxu0 0.0
        %v565 = vand.u32 %v469, 4294901760
        %566 = vmatpush1.xpose.msra.mxu0 %v565
        %567 = vmatprep.subr.mxu0 0.0
        %v568 = vand.u32 %v472, 4294901760
        %569 = vmatpush1.xpose.msra.mxu0 %v568
        %570 = vmatprep.subr.mxu0 0.0
        %v571 = vand.u32 %v475, 4294901760
        %572 = vmatpush1.xpose.msra.mxu0 %v571
        %573 = vmatprep.subr.mxu0 0.0
        %v574 = vand.u32 %v478, 4294901760
        %575 = vmatpush1.xpose.msra.mxu0 %v574
        %576 = vmatprep.subr.mxu0 0.0
        %v577 = vand.u32 %v481, 4294901760
        %578 = vmatpush1.xpose.msra.mxu0 %v577
        %579 = vmatprep.mubr.f32.mxu0 0.0
        %v580 = vand.u32 %v376, 4294901760
        %v581 = vsub.f32 %v376, %v580
        %v582 = vand.u32 %v581, 4294901760
        %v583 = vsub.f32 %v581, %v582
        %v584 = vand.u32 %v583, 4294901760
        %585 = vmatmul.mubr.f32.gmra.mrb[0].mxu0 %v584
        %v586 = vpop.f32.mrb[0].mxu0
        %v587 = vadd.f32 0.0, %v586
        %v588 = vpop.f32.mrb[0].mxu0
        %v589 = vadd.f32 0.0, %v588
        %590 = vmatprep.mubr.f32.mxu0 0.0
        %v591 = vand.u32 %v379, 4294901760
        %v592 = vsub.f32 %v379, %v591
        %v593 = vand.u32 %v592, 4294901760
        %v594 = vsub.f32 %v592, %v593
        %v595 = vand.u32 %v594, 4294901760
        %596 = vmatmul.mubr.f32.gmra.mrb[0].mxu0 %v595
        %v597 = vpop.f32.mrb[0].mxu0
        %v598 = vadd.f32 0.0, %v597
        %v599 = vpop.f32.mrb[0].mxu0
        %v600 = vadd.f32 0.0, %v599
        %601 = vmatprep.mubr.f32.mxu0 0.0
        %v602 = vand.u32 %v382, 4294901760
        %v603 = vsub.f32 %v382, %v602
        %v604 = vand.u32 %v603, 4294901760
        %v605 = vsub.f32 %v603, %v604
        %v606 = vand.u32 %v605, 4294901760
        %607 = vmatmul.mubr.f32.gmra.mrb[0].mxu0 %v606
        %v608 = vpop.f32.mrb[0].mxu0
        %v609 = vadd.f32 0.0, %v608
        %v610 = vpop.f32.mrb[0].mxu0
        %v611 = vadd.f32 0.0, %v610
        %612 = vmatprep.mubr.f32.mxu0 0.0
        %v613 = vand.u32 %v385, 4294901760
        %v614 = vsub.f32 %v385, %v613
        %v615 = vand.u32 %v614, 4294901760
        %v616 = vsub.f32 %v614, %v615
        %v617 = vand.u32 %v616, 4294901760
        %618 = vmatmul.mubr.f32.gmra.mrb[0].mxu0 %v617
        %v619 = vpop.f32.mrb[0].mxu0
        %v620 = vadd.f32 0.0, %v619
        %v621 = vpop.f32.mrb[0].mxu0
        %v622 = vadd.f32 0.0, %v621
        %623 = vdwg.mxu0
        %624 = vmatprep.subr.mxu0 0.0
        %v625 = vand.u32 %v388, 4294901760
        %v626 = vsub.f32 %v388, %v625
        %v627 = vand.u32 %v626, 4294901760
        %v628 = vsub.f32 %v626, %v627
        %v629 = vand.u32 %v628, 4294901760
        %630 = vmatpush1.xpose.msra.mxu0 %v629
        %631 = vmatprep.subr.mxu0 0.0
        %v632 = vand.u32 %v391, 4294901760
        %v633 = vsub.f32 %v391, %v632
        %v634 = vand.u32 %v633, 4294901760
        %v635 = vsub.f32 %v633, %v634
        %v636 = vand.u32 %v635, 4294901760
        %637 = vmatpush1.xpose.msra.mxu0 %v636
        %638 = vmatprep.subr.mxu0 0.0
        %v639 = vand.u32 %v394, 4294901760
        %v640 = vsub.f32 %v394, %v639
        %v641 = vand.u32 %v640, 4294901760
        %v642 = vsub.f32 %v640, %v641
        %v643 = vand.u32 %v642, 4294901760
        %644 = vmatpush1.xpose.msra.mxu0 %v643
        %645 = vmatprep.subr.mxu0 0.0
        %v646 = vand.u32 %v397, 4294901760
        %v647 = vsub.f32 %v397, %v646
        %v648 = vand.u32 %v647, 4294901760
        %v649 = vsub.f32 %v647, %v648
        %v650 = vand.u32 %v649, 4294901760
        %651 = vmatpush1.xpose.msra.mxu0 %v650
        %652 = vmatprep.subr.mxu0 0.0
        %v653 = vand.u32 %v400, 4294901760
        %v654 = vsub.f32 %v400, %v653
        %v655 = vand.u32 %v654, 4294901760
        %v656 = vsub.f32 %v654, %v655
        %v657 = vand.u32 %v656, 4294901760
        %658 = vmatpush1.xpose.msra.mxu0 %v657
        %659 = vmatprep.subr.mxu0 0.0
        %v660 = vand.u32 %v403, 4294901760
        %v661 = vsub.f32 %v403, %v660
        %v662 = vand.u32 %v661, 4294901760
        %v663 = vsub.f32 %v661, %v662
        %v664 = vand.u32 %v663, 4294901760
        %665 = vmatpush1.xpose.msra.mxu0 %v664
        %666 = vmatprep.subr.mxu0 0.0
        %v667 = vand.u32 %v406, 4294901760
        %v668 = vsub.f32 %v406, %v667
        %v669 = vand.u32 %v668, 4294901760
        %v670 = vsub.f32 %v668, %v669
        %v671 = vand.u32 %v670, 4294901760
        %672 = vmatpush1.xpose.msra.mxu0 %v671
        %673 = vmatprep.subr.mxu0 0.0
        %v674 = vand.u32 %v409, 4294901760
        %v675 = vsub.f32 %v409, %v674
        %v676 = vand.u32 %v675, 4294901760
        %v677 = vsub.f32 %v675, %v676
        %v678 = vand.u32 %v677, 4294901760
        %679 = vmatpush1.xpose.msra.mxu0 %v678
        %680 = vmatprep.subr.mxu0 0.0
        %v681 = vand.u32 %v412, 4294901760
        %v682 = vsub.f32 %v412, %v681
        %v683 = vand.u32 %v682, 4294901760
        %v684 = vsub.f32 %v682, %v683
        %v685 = vand.u32 %v684, 4294901760
        %686 = vmatpush1.xpose.msra.mxu0 %v685
        %687 = vmatprep.subr.mxu0 0.0
        %v688 = vand.u32 %v415, 4294901760
        %v689 = vsub.f32 %v415, %v688
        %v690 = vand.u32 %v689, 4294901760
        %v691 = vsub.f32 %v689, %v690
        %v692 = vand.u32 %v691, 4294901760
        %693 = vmatpush1.xpose.msra.mxu0 %v692
        %694 = vmatprep.subr.mxu0 0.0
        %v695 = vand.u32 %v418, 4294901760
        %v696 = vsub.f32 %v418, %v695
        %v697 = vand.u32 %v696, 4294901760
        %v698 = vsub.f32 %v696, %v697
        %v699 = vand.u32 %v698, 4294901760
        %700 = vmatpush1.xpose.msra.mxu0 %v699
        %701 = vmatprep.subr.mxu0 0.0
        %v702 = vand.u32 %v421, 4294901760
        %v703 = vsub.f32 %v421, %v702
        %v704 = vand.u32 %v703, 4294901760
        %v705 = vsub.f32 %v703, %v704
        %v706 = vand.u32 %v705, 4294901760
        %707 = vmatpush1.xpose.msra.mxu0 %v706
        %708 = vmatprep.subr.mxu0 0.0
        %v709 = vand.u32 %v424, 4294901760
        %v710 = vsub.f32 %v424, %v709
        %v711 = vand.u32 %v710, 4294901760
        %v712 = vsub.f32 %v710, %v711
        %v713 = vand.u32 %v712, 4294901760
        %714 = vmatpush1.xpose.msra.mxu0 %v713
        %715 = vmatprep.subr.mxu0 0.0
        %v716 = vand.u32 %v427, 4294901760
        %v717 = vsub.f32 %v427, %v716
        %v718 = vand.u32 %v717, 4294901760
        %v719 = vsub.f32 %v717, %v718
        %v720 = vand.u32 %v719, 4294901760
        %721 = vmatpush1.xpose.msra.mxu0 %v720
        %722 = vmatprep.subr.mxu0 0.0
        %v723 = vand.u32 %v430, 4294901760
        %v724 = vsub.f32 %v430, %v723
        %v725 = vand.u32 %v724, 4294901760
        %v726 = vsub.f32 %v724, %v725
        %v727 = vand.u32 %v726, 4294901760
        %728 = vmatpush1.xpose.msra.mxu0 %v727
        %729 = vmatprep.subr.mxu0 0.0
        %v730 = vand.u32 %v433, 4294901760
        %v731 = vsub.f32 %v433, %v730
        %v732 = vand.u32 %v731, 4294901760
        %v733 = vsub.f32 %v731, %v732
        %v734 = vand.u32 %v733, 4294901760
        %735 = vmatpush1.xpose.msra.mxu0 %v734
        %736 = vmatprep.subr.mxu0 0.0
        %v737 = vand.u32 %v436, 4294901760
        %v738 = vsub.f32 %v436, %v737
        %v739 = vand.u32 %v738, 4294901760
        %v740 = vsub.f32 %v738, %v739
        %v741 = vand.u32 %v740, 4294901760
        %742 = vmatpush1.xpose.msra.mxu0 %v741
        %743 = vmatprep.subr.mxu0 0.0
        %v744 = vand.u32 %v439, 4294901760
        %v745 = vsub.f32 %v439, %v744
        %v746 = vand.u32 %v745, 4294901760
        %v747 = vsub.f32 %v745, %v746
        %v748 = vand.u32 %v747, 4294901760
        %749 = vmatpush1.xpose.msra.mxu0 %v748
        %750 = vmatprep.subr.mxu0 0.0
        %v751 = vand.u32 %v442, 4294901760
        %v752 = vsub.f32 %v442, %v751
        %v753 = vand.u32 %v752, 4294901760
        %v754 = vsub.f32 %v752, %v753
        %v755 = vand.u32 %v754, 4294901760
        %756 = vmatpush1.xpose.msra.mxu0 %v755
        %757 = vmatprep.subr.mxu0 0.0
        %v758 = vand.u32 %v445, 4294901760
        %v759 = vsub.f32 %v445, %v758
        %v760 = vand.u32 %v759, 4294901760
        %v761 = vsub.f32 %v759, %v760
        %v762 = vand.u32 %v761, 4294901760
        %763 = vmatpush1.xpose.msra.mxu0 %v762
        %764 = vmatprep.subr.mxu0 0.0
        %v765 = vand.u32 %v448, 4294901760
        %v766 = vsub.f32 %v448, %v765
        %v767 = vand.u32 %v766, 4294901760
        %v768 = vsub.f32 %v766, %v767
        %v769 = vand.u32 %v768, 4294901760
        %770 = vmatpush1.xpose.msra.mxu0 %v769
        %771 = vmatprep.subr.mxu0 0.0
        %v772 = vand.u32 %v451, 4294901760
        %v773 = vsub.f32 %v451, %v772
        %v774 = vand.u32 %v773, 4294901760
        %v775 = vsub.f32 %v773, %v774
        %v776 = vand.u32 %v775, 4294901760
        %777 = vmatpush1.xpose.msra.mxu0 %v776
        %778 = vmatprep.subr.mxu0 0.0
        %v779 = vand.u32 %v454, 4294901760
        %v780 = vsub.f32 %v454, %v779
        %v781 = vand.u32 %v780, 4294901760
        %v782 = vsub.f32 %v780, %v781
        %v783 = vand.u32 %v782, 4294901760
        %784 = vmatpush1.xpose.msra.mxu0 %v783
        %785 = vmatprep.subr.mxu0 0.0
        %v786 = vand.u32 %v457, 4294901760
        %v787 = vsub.f32 %v457, %v786
        %v788 = vand.u32 %v787, 4294901760
        %v789 = vsub.f32 %v787, %v788
        %v790 = vand.u32 %v789, 4294901760
        %791 = vmatpush1.xpose.msra.mxu0 %v790
        %792 = vmatprep.subr.mxu0 0.0
        %v793 = vand.u32 %v460, 4294901760
        %v794 = vsub.f32 %v460, %v793
        %v795 = vand.u32 %v794, 4294901760
        %v796 = vsub.f32 %v794, %v795
        %v797 = vand.u32 %v796, 4294901760
        %798 = vmatpush1.xpose.msra.mxu0 %v797
        %799 = vmatprep.subr.mxu0 0.0
        %v800 = vand.u32 %v463, 4294901760
        %v801 = vsub.f32 %v463, %v800
        %v802 = vand.u32 %v801, 4294901760
        %v803 = vsub.f32 %v801, %v802
        %v804 = vand.u32 %v803, 4294901760
        %805 = vmatpush1.xpose.msra.mxu0 %v804
        %806 = vmatprep.subr.mxu0 0.0
        %v807 = vand.u32 %v466, 4294901760
        %v808 = vsub.f32 %v466, %v807
        %v809 = vand.u32 %v808, 4294901760
        %v810 = vsub.f32 %v808, %v809
        %v811 = vand.u32 %v810, 4294901760
        %812 = vmatpush1.xpose.msra.mxu0 %v811
        %813 = vmatprep.subr.mxu0 0.0
        %v814 = vand.u32 %v469, 4294901760
        %v815 = vsub.f32 %v469, %v814
        %v816 = vand.u32 %v815, 4294901760
        %v817 = vsub.f32 %v815, %v816
        %v818 = vand.u32 %v817, 4294901760
        %819 = vmatpush1.xpose.msra.mxu0 %v818
        %820 = vmatprep.subr.mxu0 0.0
        %v821 = vand.u32 %v472, 4294901760
        %v822 = vsub.f32 %v472, %v821
        %v823 = vand.u32 %v822, 4294901760
        %v824 = vsub.f32 %v822, %v823
        %v825 = vand.u32 %v824, 4294901760
        %826 = vmatpush1.xpose.msra.mxu0 %v825
        %827 = vmatprep.subr.mxu0 0.0
        %v828 = vand.u32 %v475, 4294901760
        %v829 = vsub.f32 %v475, %v828
        %v830 = vand.u32 %v829, 4294901760
        %v831 = vsub.f32 %v829, %v830
        %v832 = vand.u32 %v831, 4294901760
        %833 = vmatpush1.xpose.msra.mxu0 %v832
        %834 = vmatprep.subr.mxu0 0.0
        %v835 = vand.u32 %v478, 4294901760
        %v836 = vsub.f32 %v478, %v835
        %v837 = vand.u32 %v836, 4294901760
        %v838 = vsub.f32 %v836, %v837
        %v839 = vand.u32 %v838, 4294901760
        %840 = vmatpush1.xpose.msra.mxu0 %v839
        %841 = vmatprep.subr.mxu0 0.0
        %v842 = vand.u32 %v481, 4294901760
        %v843 = vsub.f32 %v481, %v842
        %v844 = vand.u32 %v843, 4294901760
        %v845 = vsub.f32 %v843, %v844
        %v846 = vand.u32 %v845, 4294901760
        %847 = vmatpush1.xpose.msra.mxu0 %v846
        %848 = vmatprep.mubr.f32.mxu0 0.0
        %v849 = vand.u32 %v376, 4294901760
        %850 = vmatmul.mubr.f32.gmra.mrb[0].mxu0 %v849
        %v851 = vpop.f32.mrb[0].mxu0
        %v852 = vadd.f32 %v587, %v851
        %v853 = vpop.f32.mrb[0].mxu0
        %v854 = vadd.f32 %v589, %v853
        %855 = vmatprep.mubr.f32.mxu0 0.0
        %v856 = vand.u32 %v379, 4294901760
        %857 = vmatmul.mubr.f32.gmra.mrb[0].mxu0 %v856
        %v858 = vpop.f32.mrb[0].mxu0
        %v859 = vadd.f32 %v598, %v858
        %v860 = vpop.f32.mrb[0].mxu0
        %v861 = vadd.f32 %v600, %v860
        %862 = vmatprep.mubr.f32.mxu0 0.0
        %v863 = vand.u32 %v382, 4294901760
        %864 = vmatmul.mubr.f32.gmra.mrb[0].mxu0 %v863
        %v865 = vpop.f32.mrb[0].mxu0
        %v866 = vadd.f32 %v609, %v865
        %v867 = vpop.f32.mrb[0].mxu0
        %v868 = vadd.f32 %v611, %v867
        %869 = vmatprep.mubr.f32.mxu0 0.0
        %v870 = vand.u32 %v385, 4294901760
        %871 = vmatmul.mubr.f32.gmra.mrb[0].mxu0 %v870
        %v872 = vpop.f32.mrb[0].mxu0
        %v873 = vadd.f32 %v620, %v872
        %v874 = vpop.f32.mrb[0].mxu0
        %v875 = vadd.f32 %v622, %v874
        %876 = vdwg.mxu0
        %877 = vmatprep.subr.mxu0 0.0
        %v878 = vand.u32 %v388, 4294901760
        %v879 = vsub.f32 %v388, %v878
        %880 = vmatpush1.xpose.msra.mxu0 %v879
        %881 = vmatprep.subr.mxu0 0.0
        %v882 = vand.u32 %v391, 4294901760
        %v883 = vsub.f32 %v391, %v882
        %884 = vmatpush1.xpose.msra.mxu0 %v883
        %885 = vmatprep.subr.mxu0 0.0
        %v886 = vand.u32 %v394, 4294901760
        %v887 = vsub.f32 %v394, %v886
        %888 = vmatpush1.xpose.msra.mxu0 %v887
        %889 = vmatprep.subr.mxu0 0.0
        %v890 = vand.u32 %v397, 4294901760
        %v891 = vsub.f32 %v397, %v890
        %892 = vmatpush1.xpose.msra.mxu0 %v891
        %893 = vmatprep.subr.mxu0 0.0
        %v894 = vand.u32 %v400, 4294901760
        %v895 = vsub.f32 %v400, %v894
        %896 = vmatpush1.xpose.msra.mxu0 %v895
        %897 = vmatprep.subr.mxu0 0.0
        %v898 = vand.u32 %v403, 4294901760
        %v899 = vsub.f32 %v403, %v898
        %900 = vmatpush1.xpose.msra.mxu0 %v899
        %901 = vmatprep.subr.mxu0 0.0
        %v902 = vand.u32 %v406, 4294901760
        %v903 = vsub.f32 %v406, %v902
        %904 = vmatpush1.xpose.msra.mxu0 %v903
        %905 = vmatprep.subr.mxu0 0.0
        %v906 = vand.u32 %v409, 4294901760
        %v907 = vsub.f32 %v409, %v906
        %908 = vmatpush1.xpose.msra.mxu0 %v907
        %909 = vmatprep.subr.mxu0 0.0
        %v910 = vand.u32 %v412, 4294901760
        %v911 = vsub.f32 %v412, %v910
        %912 = vmatpush1.xpose.msra.mxu0 %v911
        %913 = vmatprep.subr.mxu0 0.0
        %v914 = vand.u32 %v415, 4294901760
        %v915 = vsub.f32 %v415, %v914
        %916 = vmatpush1.xpose.msra.mxu0 %v915
        %917 = vmatprep.subr.mxu0 0.0
        %v918 = vand.u32 %v418, 4294901760
        %v919 = vsub.f32 %v418, %v918
        %920 = vmatpush1.xpose.msra.mxu0 %v919
        %921 = vmatprep.subr.mxu0 0.0
        %v922 = vand.u32 %v421, 4294901760
        %v923 = vsub.f32 %v421, %v922
        %924 = vmatpush1.xpose.msra.mxu0 %v923
        %925 = vmatprep.subr.mxu0 0.0
        %v926 = vand.u32 %v424, 4294901760
        %v927 = vsub.f32 %v424, %v926
        %928 = vmatpush1.xpose.msra.mxu0 %v927
        %929 = vmatprep.subr.mxu0 0.0
        %v930 = vand.u32 %v427, 4294901760
        %v931 = vsub.f32 %v427, %v930
        %932 = vmatpush1.xpose.msra.mxu0 %v931
        %933 = vmatprep.subr.mxu0 0.0
        %v934 = vand.u32 %v430, 4294901760
        %v935 = vsub.f32 %v430, %v934
        %936 = vmatpush1.xpose.msra.mxu0 %v935
        %937 = vmatprep.subr.mxu0 0.0
        %v938 = vand.u32 %v433, 4294901760
        %v939 = vsub.f32 %v433, %v938
        %940 = vmatpush1.xpose.msra.mxu0 %v939
        %941 = vmatprep.subr.mxu0 0.0
        %v942 = vand.u32 %v436, 4294901760
        %v943 = vsub.f32 %v436, %v942
        %944 = vmatpush1.xpose.msra.mxu0 %v943
        %945 = vmatprep.subr.mxu0 0.0
        %v946 = vand.u32 %v439, 4294901760
        %v947 = vsub.f32 %v439, %v946
        %948 = vmatpush1.xpose.msra.mxu0 %v947
        %949 = vmatprep.subr.mxu0 0.0
        %v950 = vand.u32 %v442, 4294901760
        %v951 = vsub.f32 %v442, %v950
        %952 = vmatpush1.xpose.msra.mxu0 %v951
        %953 = vmatprep.subr.mxu0 0.0
        %v954 = vand.u32 %v445, 4294901760
        %v955 = vsub.f32 %v445, %v954
        %956 = vmatpush1.xpose.msra.mxu0 %v955
        %957 = vmatprep.subr.mxu0 0.0
        %v958 = vand.u32 %v448, 4294901760
        %v959 = vsub.f32 %v448, %v958
        %960 = vmatpush1.xpose.msra.mxu0 %v959
        %961 = vmatprep.subr.mxu0 0.0
        %v962 = vand.u32 %v451, 4294901760
        %v963 = vsub.f32 %v451, %v962
        %964 = vmatpush1.xpose.msra.mxu0 %v963
        %965 = vmatprep.subr.mxu0 0.0
        %v966 = vand.u32 %v454, 4294901760
        %v967 = vsub.f32 %v454, %v966
        %968 = vmatpush1.xpose.msra.mxu0 %v967
        %969 = vmatprep.subr.mxu0 0.0
        %v970 = vand.u32 %v457, 4294901760
        %v971 = vsub.f32 %v457, %v970
        %972 = vmatpush1.xpose.msra.mxu0 %v971
        %973 = vmatprep.subr.mxu0 0.0
        %v974 = vand.u32 %v460, 4294901760
        %v975 = vsub.f32 %v460, %v974
        %976 = vmatpush1.xpose.msra.mxu0 %v975
        %977 = vmatprep.subr.mxu0 0.0
        %v978 = vand.u32 %v463, 4294901760
        %v979 = vsub.f32 %v463, %v978
        %980 = vmatpush1.xpose.msra.mxu0 %v979
        %981 = vmatprep.subr.mxu0 0.0
        %v982 = vand.u32 %v466, 4294901760
        %v983 = vsub.f32 %v466, %v982
        %984 = vmatpush1.xpose.msra.mxu0 %v983
        %985 = vmatprep.subr.mxu0 0.0
        %v986 = vand.u32 %v469, 4294901760
        %v987 = vsub.f32 %v469, %v986
        %988 = vmatpush1.xpose.msra.mxu0 %v987
        %989 = vmatprep.subr.mxu0 0.0
        %v990 = vand.u32 %v472, 4294901760
        %v991 = vsub.f32 %v472, %v990
        %992 = vmatpush1.xpose.msra.mxu0 %v991
        %993 = vmatprep.subr.mxu0 0.0
        %v994 = vand.u32 %v475, 4294901760
        %v995 = vsub.f32 %v475, %v994
        %996 = vmatpush1.xpose.msra.mxu0 %v995
        %997 = vmatprep.subr.mxu0 0.0
        %v998 = vand.u32 %v478, 4294901760
        %v999 = vsub.f32 %v478, %v998
        %1000 = vmatpush1.xpose.msra.mxu0 %v999
        %1001 = vmatprep.subr.mxu0 0.0
        %v1002 = vand.u32 %v481, 4294901760
        %v1003 = vsub.f32 %v481, %v1002
        %1004 = vmatpush1.xpose.msra.mxu0 %v1003
        %1005 = vmatprep.mubr.f32.mxu0 0.0
        %v1006 = vand.u32 %v376, 4294901760
        %v1007 = vsub.f32 %v376, %v1006
        %1008 = vmatmul.mubr.f32.gmra.mrb[0].mxu0 %v1007
        %v1009 = vpop.f32.mrb[0].mxu0
        %v1010 = vadd.f32 %v852, %v1009
        %v1011 = vpop.f32.mrb[0].mxu0
        %v1012 = vadd.f32 %v854, %v1011
        %1013 = vmatprep.mubr.f32.mxu0 0.0
        %v1014 = vand.u32 %v379, 4294901760
        %v1015 = vsub.f32 %v379, %v1014
        %1016 = vmatmul.mubr.f32.gmra.mrb[0].mxu0 %v1015
        %v1017 = vpop.f32.mrb[0].mxu0
        %v1018 = vadd.f32 %v859, %v1017
        %v1019 = vpop.f32.mrb[0].mxu0
        %v1020 = vadd.f32 %v861, %v1019
        %1021 = vmatprep.mubr.f32.mxu0 0.0
        %v1022 = vand.u32 %v382, 4294901760
        %v1023 = vsub.f32 %v382, %v1022
        %1024 = vmatmul.mubr.f32.gmra.mrb[0].mxu0 %v1023
        %v1025 = vpop.f32.mrb[0].mxu0
        %v1026 = vadd.f32 %v866, %v1025
        %v1027 = vpop.f32.mrb[0].mxu0
        %v1028 = vadd.f32 %v868, %v1027
        %1029 = vmatprep.mubr.f32.mxu0 0.0
        %v1030 = vand.u32 %v385, 4294901760
        %v1031 = vsub.f32 %v385, %v1030
        %1032 = vmatmul.mubr.f32.gmra.mrb[0].mxu0 %v1031
        %v1033 = vpop.f32.mrb[0].mxu0
        %v1034 = vadd.f32 %v873, %v1033
        %v1035 = vpop.f32.mrb[0].mxu0
        %v1036 = vadd.f32 %v875, %v1035
        %1037 = vdwg.mxu0
        %1038 = vmatprep.subr.mxu0 0.0
        %v1039 = vand.u32 %v388, 4294901760
        %1040 = vmatpush1.xpose.msra.mxu0 %v1039
        %1041 = vmatprep.subr.mxu0 0.0
        %v1042 = vand.u32 %v391, 4294901760
        %1043 = vmatpush1.xpose.msra.mxu0 %v1042
        %1044 = vmatprep.subr.mxu0 0.0
        %v1045 = vand.u32 %v394, 4294901760
        %1046 = vmatpush1.xpose.msra.mxu0 %v1045
        %1047 = vmatprep.subr.mxu0 0.0
        %v1048 = vand.u32 %v397, 4294901760
        %1049 = vmatpush1.xpose.msra.mxu0 %v1048
        %1050 = vmatprep.subr.mxu0 0.0
        %v1051 = vand.u32 %v400, 4294901760
        %1052 = vmatpush1.xpose.msra.mxu0 %v1051
        %1053 = vmatprep.subr.mxu0 0.0
        %v1054 = vand.u32 %v403, 4294901760
        %1055 = vmatpush1.xpose.msra.mxu0 %v1054
        %1056 = vmatprep.subr.mxu0 0.0
        %v1057 = vand.u32 %v406, 4294901760
        %1058 = vmatpush1.xpose.msra.mxu0 %v1057
        %1059 = vmatprep.subr.mxu0 0.0
        %v1060 = vand.u32 %v409, 4294901760
        %1061 = vmatpush1.xpose.msra.mxu0 %v1060
        %1062 = vmatprep.subr.mxu0 0.0
        %v1063 = vand.u32 %v412, 4294901760
        %1064 = vmatpush1.xpose.msra.mxu0 %v1063
        %1065 = vmatprep.subr.mxu0 0.0
        %v1066 = vand.u32 %v415, 4294901760
        %1067 = vmatpush1.xpose.msra.mxu0 %v1066
        %1068 = vmatprep.subr.mxu0 0.0
        %v1069 = vand.u32 %v418, 4294901760
        %1070 = vmatpush1.xpose.msra.mxu0 %v1069
        %1071 = vmatprep.subr.mxu0 0.0
        %v1072 = vand.u32 %v421, 4294901760
        %1073 = vmatpush1.xpose.msra.mxu0 %v1072
        %1074 = vmatprep.subr.mxu0 0.0
        %v1075 = vand.u32 %v424, 4294901760
        %1076 = vmatpush1.xpose.msra.mxu0 %v1075
        %1077 = vmatprep.subr.mxu0 0.0
        %v1078 = vand.u32 %v427, 4294901760
        %1079 = vmatpush1.xpose.msra.mxu0 %v1078
        %1080 = vmatprep.subr.mxu0 0.0
        %v1081 = vand.u32 %v430, 4294901760
        %1082 = vmatpush1.xpose.msra.mxu0 %v1081
        %1083 = vmatprep.subr.mxu0 0.0
        %v1084 = vand.u32 %v433, 4294901760
        %1085 = vmatpush1.xpose.msra.mxu0 %v1084
        %1086 = vmatprep.subr.mxu0 0.0
        %v1087 = vand.u32 %v436, 4294901760
        %1088 = vmatpush1.xpose.msra.mxu0 %v1087
        %1089 = vmatprep.subr.mxu0 0.0
        %v1090 = vand.u32 %v439, 4294901760
        %1091 = vmatpush1.xpose.msra.mxu0 %v1090
        %1092 = vmatprep.subr.mxu0 0.0
        %v1093 = vand.u32 %v442, 4294901760
        %1094 = vmatpush1.xpose.msra.mxu0 %v1093
        %1095 = vmatprep.subr.mxu0 0.0
        %v1096 = vand.u32 %v445, 4294901760
        %1097 = vmatpush1.xpose.msra.mxu0 %v1096
        %1098 = vmatprep.subr.mxu0 0.0
        %v1099 = vand.u32 %v448, 4294901760
        %1100 = vmatpush1.xpose.msra.mxu0 %v1099
        %1101 = vmatprep.subr.mxu0 0.0
        %v1102 = vand.u32 %v451, 4294901760
        %1103 = vmatpush1.xpose.msra.mxu0 %v1102
        %1104 = vmatprep.subr.mxu0 0.0
        %v1105 = vand.u32 %v454, 4294901760
        %1106 = vmatpush1.xpose.msra.mxu0 %v1105
        %1107 = vmatprep.subr.mxu0 0.0
        %v1108 = vand.u32 %v457, 4294901760
        %1109 = vmatpush1.xpose.msra.mxu0 %v1108
        %1110 = vmatprep.subr.mxu0 0.0
        %v1111 = vand.u32 %v460, 4294901760
        %1112 = vmatpush1.xpose.msra.mxu0 %v1111
        %1113 = vmatprep.subr.mxu0 0.0
        %v1114 = vand.u32 %v463, 4294901760
        %1115 = vmatpush1.xpose.msra.mxu0 %v1114
        %1116 = vmatprep.subr.mxu0 0.0
        %v1117 = vand.u32 %v466, 4294901760
        %1118 = vmatpush1.xpose.msra.mxu0 %v1117
        %1119 = vmatprep.subr.mxu0 0.0
        %v1120 = vand.u32 %v469, 4294901760
        %1121 = vmatpush1.xpose.msra.mxu0 %v1120
        %1122 = vmatprep.subr.mxu0 0.0
        %v1123 = vand.u32 %v472, 4294901760
        %1124 = vmatpush1.xpose.msra.mxu0 %v1123
        %1125 = vmatprep.subr.mxu0 0.0
        %v1126 = vand.u32 %v475, 4294901760
        %1127 = vmatpush1.xpose.msra.mxu0 %v1126
        %1128 = vmatprep.subr.mxu0 0.0
        %v1129 = vand.u32 %v478, 4294901760
        %1130 = vmatpush1.xpose.msra.mxu0 %v1129
        %1131 = vmatprep.subr.mxu0 0.0
        %v1132 = vand.u32 %v481, 4294901760
        %1133 = vmatpush1.xpose.msra.mxu0 %v1132
        %1134 = vmatprep.mubr.f32.mxu0 0.0
        %v1135 = vand.u32 %v376, 4294901760
        %v1136 = vsub.f32 %v376, %v1135
        %v1137 = vand.u32 %v1136, 4294901760
        %1138 = vmatmul.mubr.f32.gmra.mrb[0].mxu0 %v1137
        %v1139 = vpop.f32.mrb[0].mxu0
        %v1140 = vadd.f32 %v1010, %v1139
        %v1141 = vpop.f32.mrb[0].mxu0
        %v1142 = vadd.f32 %v1012, %v1141
        %1143 = vmatprep.mubr.f32.mxu0 0.0
        %v1144 = vand.u32 %v379, 4294901760
        %v1145 = vsub.f32 %v379, %v1144
        %v1146 = vand.u32 %v1145, 4294901760
        %1147 = vmatmul.mubr.f32.gmra.mrb[0].mxu0 %v1146
        %v1148 = vpop.f32.mrb[0].mxu0
        %v1149 = vadd.f32 %v1018, %v1148
        %v1150 = vpop.f32.mrb[0].mxu0
        %v1151 = vadd.f32 %v1020, %v1150
        %1152 = vmatprep.mubr.f32.mxu0 0.0
        %v1153 = vand.u32 %v382, 4294901760
        %v1154 = vsub.f32 %v382, %v1153
        %v1155 = vand.u32 %v1154, 4294901760
        %1156 = vmatmul.mubr.f32.gmra.mrb[0].mxu0 %v1155
        %v1157 = vpop.f32.mrb[0].mxu0
        %v1158 = vadd.f32 %v1026, %v1157
        %v1159 = vpop.f32.mrb[0].mxu0
        %v1160 = vadd.f32 %v1028, %v1159
        %1161 = vmatprep.mubr.f32.mxu0 0.0
        %v1162 = vand.u32 %v385, 4294901760
        %v1163 = vsub.f32 %v385, %v1162
        %v1164 = vand.u32 %v1163, 4294901760
        %1165 = vmatmul.mubr.f32.gmra.mrb[0].mxu0 %v1164
        %v1166 = vpop.f32.mrb[0].mxu0
        %v1167 = vadd.f32 %v1034, %v1166
        %v1168 = vpop.f32.mrb[0].mxu0
        %v1169 = vadd.f32 %v1036, %v1168
        %1170 = vdwg.mxu0
        %1171 = vmatprep.subr.mxu0 0.0
        %v1172 = vand.u32 %v388, 4294901760
        %v1173 = vsub.f32 %v388, %v1172
        %v1174 = vand.u32 %v1173, 4294901760
        %1175 = vmatpush1.xpose.msra.mxu0 %v1174
        %1176 = vmatprep.subr.mxu0 0.0
        %v1177 = vand.u32 %v391, 4294901760
        %v1178 = vsub.f32 %v391, %v1177
        %v1179 = vand.u32 %v1178, 4294901760
        %1180 = vmatpush1.xpose.msra.mxu0 %v1179
        %1181 = vmatprep.subr.mxu0 0.0
        %v1182 = vand.u32 %v394, 4294901760
        %v1183 = vsub.f32 %v394, %v1182
        %v1184 = vand.u32 %v1183, 4294901760
        %1185 = vmatpush1.xpose.msra.mxu0 %v1184
        %1186 = vmatprep.subr.mxu0 0.0
        %v1187 = vand.u32 %v397, 4294901760
        %v1188 = vsub.f32 %v397, %v1187
        %v1189 = vand.u32 %v1188, 4294901760
        %1190 = vmatpush1.xpose.msra.mxu0 %v1189
        %1191 = vmatprep.subr.mxu0 0.0
        %v1192 = vand.u32 %v400, 4294901760
        %v1193 = vsub.f32 %v400, %v1192
        %v1194 = vand.u32 %v1193, 4294901760
        %1195 = vmatpush1.xpose.msra.mxu0 %v1194
        %1196 = vmatprep.subr.mxu0 0.0
        %v1197 = vand.u32 %v403, 4294901760
        %v1198 = vsub.f32 %v403, %v1197
        %v1199 = vand.u32 %v1198, 4294901760
        %1200 = vmatpush1.xpose.msra.mxu0 %v1199
        %1201 = vmatprep.subr.mxu0 0.0
        %v1202 = vand.u32 %v406, 4294901760
        %v1203 = vsub.f32 %v406, %v1202
        %v1204 = vand.u32 %v1203, 4294901760
        %1205 = vmatpush1.xpose.msra.mxu0 %v1204
        %1206 = vmatprep.subr.mxu0 0.0
        %v1207 = vand.u32 %v409, 4294901760
        %v1208 = vsub.f32 %v409, %v1207
        %v1209 = vand.u32 %v1208, 4294901760
        %1210 = vmatpush1.xpose.msra.mxu0 %v1209
        %1211 = vmatprep.subr.mxu0 0.0
        %v1212 = vand.u32 %v412, 4294901760
        %v1213 = vsub.f32 %v412, %v1212
        %v1214 = vand.u32 %v1213, 4294901760
        %1215 = vmatpush1.xpose.msra.mxu0 %v1214
        %1216 = vmatprep.subr.mxu0 0.0
        %v1217 = vand.u32 %v415, 4294901760
        %v1218 = vsub.f32 %v415, %v1217
        %v1219 = vand.u32 %v1218, 4294901760
        %1220 = vmatpush1.xpose.msra.mxu0 %v1219
        %1221 = vmatprep.subr.mxu0 0.0
        %v1222 = vand.u32 %v418, 4294901760
        %v1223 = vsub.f32 %v418, %v1222
        %v1224 = vand.u32 %v1223, 4294901760
        %1225 = vmatpush1.xpose.msra.mxu0 %v1224
        %1226 = vmatprep.subr.mxu0 0.0
        %v1227 = vand.u32 %v421, 4294901760
        %v1228 = vsub.f32 %v421, %v1227
        %v1229 = vand.u32 %v1228, 4294901760
        %1230 = vmatpush1.xpose.msra.mxu0 %v1229
        %1231 = vmatprep.subr.mxu0 0.0
        %v1232 = vand.u32 %v424, 4294901760
        %v1233 = vsub.f32 %v424, %v1232
        %v1234 = vand.u32 %v1233, 4294901760
        %1235 = vmatpush1.xpose.msra.mxu0 %v1234
        %1236 = vmatprep.subr.mxu0 0.0
        %v1237 = vand.u32 %v427, 4294901760
        %v1238 = vsub.f32 %v427, %v1237
        %v1239 = vand.u32 %v1238, 4294901760
        %1240 = vmatpush1.xpose.msra.mxu0 %v1239
        %1241 = vmatprep.subr.mxu0 0.0
        %v1242 = vand.u32 %v430, 4294901760
        %v1243 = vsub.f32 %v430, %v1242
        %v1244 = vand.u32 %v1243, 4294901760
        %1245 = vmatpush1.xpose.msra.mxu0 %v1244
        %1246 = vmatprep.subr.mxu0 0.0
        %v1247 = vand.u32 %v433, 4294901760
        %v1248 = vsub.f32 %v433, %v1247
        %v1249 = vand.u32 %v1248, 4294901760
        %1250 = vmatpush1.xpose.msra.mxu0 %v1249
        %1251 = vmatprep.subr.mxu0 0.0
        %v1252 = vand.u32 %v436, 4294901760
        %v1253 = vsub.f32 %v436, %v1252
        %v1254 = vand.u32 %v1253, 4294901760
        %1255 = vmatpush1.xpose.msra.mxu0 %v1254
        %1256 = vmatprep.subr.mxu0 0.0
        %v1257 = vand.u32 %v439, 4294901760
        %v1258 = vsub.f32 %v439, %v1257
        %v1259 = vand.u32 %v1258, 4294901760
        %1260 = vmatpush1.xpose.msra.mxu0 %v1259
        %1261 = vmatprep.subr.mxu0 0.0
        %v1262 = vand.u32 %v442, 4294901760
        %v1263 = vsub.f32 %v442, %v1262
        %v1264 = vand.u32 %v1263, 4294901760
        %1265 = vmatpush1.xpose.msra.mxu0 %v1264
        %1266 = vmatprep.subr.mxu0 0.0
        %v1267 = vand.u32 %v445, 4294901760
        %v1268 = vsub.f32 %v445, %v1267
        %v1269 = vand.u32 %v1268, 4294901760
        %1270 = vmatpush1.xpose.msra.mxu0 %v1269
        %1271 = vmatprep.subr.mxu0 0.0
        %v1272 = vand.u32 %v448, 4294901760
        %v1273 = vsub.f32 %v448, %v1272
        %v1274 = vand.u32 %v1273, 4294901760
        %1275 = vmatpush1.xpose.msra.mxu0 %v1274
        %1276 = vmatprep.subr.mxu0 0.0
        %v1277 = vand.u32 %v451, 4294901760
        %v1278 = vsub.f32 %v451, %v1277
        %v1279 = vand.u32 %v1278, 4294901760
        %1280 = vmatpush1.xpose.msra.mxu0 %v1279
        %1281 = vmatprep.subr.mxu0 0.0
        %v1282 = vand.u32 %v454, 4294901760
        %v1283 = vsub.f32 %v454, %v1282
        %v1284 = vand.u32 %v1283, 4294901760
        %1285 = vmatpush1.xpose.msra.mxu0 %v1284
        %1286 = vmatprep.subr.mxu0 0.0
        %v1287 = vand.u32 %v457, 4294901760
        %v1288 = vsub.f32 %v457, %v1287
        %v1289 = vand.u32 %v1288, 4294901760
        %1290 = vmatpush1.xpose.msra.mxu0 %v1289
        %1291 = vmatprep.subr.mxu0 0.0
        %v1292 = vand.u32 %v460, 4294901760
        %v1293 = vsub.f32 %v460, %v1292
        %v1294 = vand.u32 %v1293, 4294901760
        %1295 = vmatpush1.xpose.msra.mxu0 %v1294
        %1296 = vmatprep.subr.mxu0 0.0
        %v1297 = vand.u32 %v463, 4294901760
        %v1298 = vsub.f32 %v463, %v1297
        %v1299 = vand.u32 %v1298, 4294901760
        %1300 = vmatpush1.xpose.msra.mxu0 %v1299
        %1301 = vmatprep.subr.mxu0 0.0
        %v1302 = vand.u32 %v466, 4294901760
        %v1303 = vsub.f32 %v466, %v1302
        %v1304 = vand.u32 %v1303, 4294901760
        %1305 = vmatpush1.xpose.msra.mxu0 %v1304
        %1306 = vmatprep.subr.mxu0 0.0
        %v1307 = vand.u32 %v469, 4294901760
        %v1308 = vsub.f32 %v469, %v1307
        %v1309 = vand.u32 %v1308, 4294901760
        %1310 = vmatpush1.xpose.msra.mxu0 %v1309
        %1311 = vmatprep.subr.mxu0 0.0
        %v1312 = vand.u32 %v472, 4294901760
        %v1313 = vsub.f32 %v472, %v1312
        %v1314 = vand.u32 %v1313, 4294901760
        %1315 = vmatpush1.xpose.msra.mxu0 %v1314
        %1316 = vmatprep.subr.mxu0 0.0
        %v1317 = vand.u32 %v475, 4294901760
        %v1318 = vsub.f32 %v475, %v1317
        %v1319 = vand.u32 %v1318, 4294901760
        %1320 = vmatpush1.xpose.msra.mxu0 %v1319
        %1321 = vmatprep.subr.mxu0 0.0
        %v1322 = vand.u32 %v478, 4294901760
        %v1323 = vsub.f32 %v478, %v1322
        %v1324 = vand.u32 %v1323, 4294901760
        %1325 = vmatpush1.xpose.msra.mxu0 %v1324
        %1326 = vmatprep.subr.mxu0 0.0
        %v1327 = vand.u32 %v481, 4294901760
        %v1328 = vsub.f32 %v481, %v1327
        %v1329 = vand.u32 %v1328, 4294901760
        %1330 = vmatpush1.xpose.msra.mxu0 %v1329
        %1331 = vmatprep.mubr.f32.mxu0 0.0
        %v1332 = vand.u32 %v376, 4294901760
        %1333 = vmatmul.mubr.f32.gmra.mrb[0].mxu0 %v1332
        %v1334 = vpop.f32.mrb[0].mxu0
        %v1335 = vadd.f32 %v1140, %v1334
        %v1336 = vpop.f32.mrb[0].mxu0
        %v1337 = vadd.f32 %v1142, %v1336
        %1338 = vmatprep.mubr.f32.mxu0 0.0
        %v1339 = vand.u32 %v379, 4294901760
        %1340 = vmatmul.mubr.f32.gmra.mrb[0].mxu0 %v1339
        %v1341 = vpop.f32.mrb[0].mxu0
        %v1342 = vadd.f32 %v1149, %v1341
        %v1343 = vpop.f32.mrb[0].mxu0
        %v1344 = vadd.f32 %v1151, %v1343
        %1345 = vmatprep.mubr.f32.mxu0 0.0
        %v1346 = vand.u32 %v382, 4294901760
        %1347 = vmatmul.mubr.f32.gmra.mrb[0].mxu0 %v1346
        %v1348 = vpop.f32.mrb[0].mxu0
        %v1349 = vadd.f32 %v1158, %v1348
        %v1350 = vpop.f32.mrb[0].mxu0
        %v1351 = vadd.f32 %v1160, %v1350
        %1352 = vmatprep.mubr.f32.mxu0 0.0
        %v1353 = vand.u32 %v385, 4294901760
        %1354 = vmatmul.mubr.f32.gmra.mrb[0].mxu0 %v1353
        %v1355 = vpop.f32.mrb[0].mxu0
        %v1356 = vadd.f32 %v1167, %v1355
        %v1357 = vpop.f32.mrb[0].mxu0
        %v1358 = vadd.f32 %v1169, %v1357
        %1359 = vdwg.mxu0
        %1360 = vmatprep.subr.mxu0 0.0
        %v1361 = vand.u32 %v388, 4294901760
        %1362 = vmatpush1.xpose.msra.mxu0 %v1361
        %1363 = vmatprep.subr.mxu0 0.0
        %v1364 = vand.u32 %v391, 4294901760
        %1365 = vmatpush1.xpose.msra.mxu0 %v1364
        %1366 = vmatprep.subr.mxu0 0.0
        %v1367 = vand.u32 %v394, 4294901760
        %1368 = vmatpush1.xpose.msra.mxu0 %v1367
        %1369 = vmatprep.subr.mxu0 0.0
        %v1370 = vand.u32 %v397, 4294901760
        %1371 = vmatpush1.xpose.msra.mxu0 %v1370
        %1372 = vmatprep.subr.mxu0 0.0
        %v1373 = vand.u32 %v400, 4294901760
        %1374 = vmatpush1.xpose.msra.mxu0 %v1373
        %1375 = vmatprep.subr.mxu0 0.0
        %v1376 = vand.u32 %v403, 4294901760
        %1377 = vmatpush1.xpose.msra.mxu0 %v1376
        %1378 = vmatprep.subr.mxu0 0.0
        %v1379 = vand.u32 %v406, 4294901760
        %1380 = vmatpush1.xpose.msra.mxu0 %v1379
        %1381 = vmatprep.subr.mxu0 0.0
        %v1382 = vand.u32 %v409, 4294901760
        %1383 = vmatpush1.xpose.msra.mxu0 %v1382
        %1384 = vmatprep.subr.mxu0 0.0
        %v1385 = vand.u32 %v412, 4294901760
        %1386 = vmatpush1.xpose.msra.mxu0 %v1385
        %1387 = vmatprep.subr.mxu0 0.0
        %v1388 = vand.u32 %v415, 4294901760
        %1389 = vmatpush1.xpose.msra.mxu0 %v1388
        %1390 = vmatprep.subr.mxu0 0.0
        %v1391 = vand.u32 %v418, 4294901760
        %1392 = vmatpush1.xpose.msra.mxu0 %v1391
        %1393 = vmatprep.subr.mxu0 0.0
        %v1394 = vand.u32 %v421, 4294901760
        %1395 = vmatpush1.xpose.msra.mxu0 %v1394
        %1396 = vmatprep.subr.mxu0 0.0
        %v1397 = vand.u32 %v424, 4294901760
        %1398 = vmatpush1.xpose.msra.mxu0 %v1397
        %1399 = vmatprep.subr.mxu0 0.0
        %v1400 = vand.u32 %v427, 4294901760
        %1401 = vmatpush1.xpose.msra.mxu0 %v1400
        %1402 = vmatprep.subr.mxu0 0.0
        %v1403 = vand.u32 %v430, 4294901760
        %1404 = vmatpush1.xpose.msra.mxu0 %v1403
        %1405 = vmatprep.subr.mxu0 0.0
        %v1406 = vand.u32 %v433, 4294901760
        %1407 = vmatpush1.xpose.msra.mxu0 %v1406
        %1408 = vmatprep.subr.mxu0 0.0
        %v1409 = vand.u32 %v436, 4294901760
        %1410 = vmatpush1.xpose.msra.mxu0 %v1409
        %1411 = vmatprep.subr.mxu0 0.0
        %v1412 = vand.u32 %v439, 4294901760
        %1413 = vmatpush1.xpose.msra.mxu0 %v1412
        %1414 = vmatprep.subr.mxu0 0.0
        %v1415 = vand.u32 %v442, 4294901760
        %1416 = vmatpush1.xpose.msra.mxu0 %v1415
        %1417 = vmatprep.subr.mxu0 0.0
        %v1418 = vand.u32 %v445, 4294901760
        %1419 = vmatpush1.xpose.msra.mxu0 %v1418
        %1420 = vmatprep.subr.mxu0 0.0
        %v1421 = vand.u32 %v448, 4294901760
        %1422 = vmatpush1.xpose.msra.mxu0 %v1421
        %1423 = vmatprep.subr.mxu0 0.0
        %v1424 = vand.u32 %v451, 4294901760
        %1425 = vmatpush1.xpose.msra.mxu0 %v1424
        %1426 = vmatprep.subr.mxu0 0.0
        %v1427 = vand.u32 %v454, 4294901760
        %1428 = vmatpush1.xpose.msra.mxu0 %v1427
        %1429 = vmatprep.subr.mxu0 0.0
        %v1430 = vand.u32 %v457, 4294901760
        %1431 = vmatpush1.xpose.msra.mxu0 %v1430
        %1432 = vmatprep.subr.mxu0 0.0
        %v1433 = vand.u32 %v460, 4294901760
        %1434 = vmatpush1.xpose.msra.mxu0 %v1433
        %1435 = vmatprep.subr.mxu0 0.0
        %v1436 = vand.u32 %v463, 4294901760
        %1437 = vmatpush1.xpose.msra.mxu0 %v1436
        %1438 = vmatprep.subr.mxu0 0.0
        %v1439 = vand.u32 %v466, 4294901760
        %1440 = vmatpush1.xpose.msra.mxu0 %v1439
        %1441 = vmatprep.subr.mxu0 0.0
        %v1442 = vand.u32 %v469, 4294901760
        %1443 = vmatpush1.xpose.msra.mxu0 %v1442
        %1444 = vmatprep.subr.mxu0 0.0
        %v1445 = vand.u32 %v472, 4294901760
        %1446 = vmatpush1.xpose.msra.mxu0 %v1445
        %1447 = vmatprep.subr.mxu0 0.0
        %v1448 = vand.u32 %v475, 4294901760
        %1449 = vmatpush1.xpose.msra.mxu0 %v1448
        %1450 = vmatprep.subr.mxu0 0.0
        %v1451 = vand.u32 %v478, 4294901760
        %1452 = vmatpush1.xpose.msra.mxu0 %v1451
        %1453 = vmatprep.subr.mxu0 0.0
        %v1454 = vand.u32 %v481, 4294901760
        %1455 = vmatpush1.xpose.msra.mxu0 %v1454
        %1456 = vmatprep.mubr.f32.mxu0 0.0
        %v1457 = vand.u32 %v376, 4294901760
        %1458 = vmatmul.mubr.f32.gmra.mrb[0].mxu0 %v1457
        %v1459 = vpop.f32.mrb[0].mxu0
        %v1460 = vadd.f32 %v1335, %v1459
        %v1461 = vpop.f32.mrb[0].mxu0
        %v1462 = vadd.f32 %v1337, %v1461
        %1463 = vmatprep.mubr.f32.mxu0 0.0
        %v1464 = vand.u32 %v379, 4294901760
        %1465 = vmatmul.mubr.f32.gmra.mrb[0].mxu0 %v1464
        %v1466 = vpop.f32.mrb[0].mxu0
        %v1467 = vadd.f32 %v1342, %v1466
        %v1468 = vpop.f32.mrb[0].mxu0
        %v1469 = vadd.f32 %v1344, %v1468
        %1470 = vmatprep.mubr.f32.mxu0 0.0
        %v1471 = vand.u32 %v382, 4294901760
        %1472 = vmatmul.mubr.f32.gmra.mrb[0].mxu0 %v1471
        %v1473 = vpop.f32.mrb[0].mxu0
        %v1474 = vadd.f32 %v1349, %v1473
        %v1475 = vpop.f32.mrb[0].mxu0
        %v1476 = vadd.f32 %v1351, %v1475
        %1477 = vmatprep.mubr.f32.mxu0 0.0
        %v1478 = vand.u32 %v385, 4294901760
        %1479 = vmatmul.mubr.f32.gmra.mrb[0].mxu0 %v1478
        %v1480 = vpop.f32.mrb[0].mxu0
        %v1481 = vadd.f32 %v1356, %v1480
        %v1482 = vpop.f32.mrb[0].mxu0
        %v1483 = vadd.f32 %v1358, %v1482
        %1484 = vdwg.mxu0
        %v1486 = vsel %vm374, %v302, 0
        %v1489 = vsel %vm374, %v303, 0
        %v1492 = vsel %vm374, %v304, 0
        %v1495 = vsel %vm374, %v305, 0
        %v1498 = vsel %vm374, %v306, 0
        %v1501 = vsel %vm374, %v307, 0
        %v1504 = vsel %vm374, %v308, 0
        %v1507 = vsel %vm374, %v309, 0
        %v1510 = vsel %vm374, %v310, 0
        %v1513 = vsel %vm374, %v311, 0
        %v1516 = vsel %vm374, %v312, 0
        %v1519 = vsel %vm374, %v313, 0
        %v1522 = vsel %vm374, %v314, 0
        %v1525 = vsel %vm374, %v315, 0
        %v1528 = vsel %vm374, %v316, 0
        %v1531 = vsel %vm374, %v317, 0
        %v1534 = vsel %vm374, %v318, 0
        %v1537 = vsel %vm374, %v319, 0
        %v1540 = vsel %vm374, %v320, 0
        %v1543 = vsel %vm374, %v321, 0
        %v1546 = vsel %vm374, %v322, 0
        %v1549 = vsel %vm374, %v323, 0
        %v1552 = vsel %vm374, %v324, 0
        %v1555 = vsel %vm374, %v325, 0
        %v1558 = vsel %vm374, %v326, 0
        %v1561 = vsel %vm374, %v327, 0
        %v1564 = vsel %vm374, %v328, 0
        %v1567 = vsel %vm374, %v329, 0
        %v1570 = vsel %vm374, %v330, 0
        %v1573 = vsel %vm374, %v331, 0
        %v1576 = vsel %vm374, %v332, 0
        %v1579 = vsel %vm374, %v333, 0
        %v1582 = vsel %vm374, %v334, 0
        %v1585 = vsel %vm374, %v335, 0
        %v1588 = vsel %vm374, %v336, 0
        %v1591 = vsel %vm374, %v337, 0
        %1593 = vmatprep.subr.mxu0 0.0
        %v1594 = vand.u32 %v1498, 4294901760
        %1595 = vmatpush1.xpose.msra.mxu0 %v1594
        %1596 = vmatprep.subr.mxu0 0.0
        %v1597 = vand.u32 %v1501, 4294901760
        %1598 = vmatpush1.xpose.msra.mxu0 %v1597
        %1599 = vmatprep.subr.mxu0 0.0
        %v1600 = vand.u32 %v1504, 4294901760
        %1601 = vmatpush1.xpose.msra.mxu0 %v1600
        %1602 = vmatprep.subr.mxu0 0.0
        %v1603 = vand.u32 %v1507, 4294901760
        %1604 = vmatpush1.xpose.msra.mxu0 %v1603
        %1605 = vmatprep.subr.mxu0 0.0
        %v1606 = vand.u32 %v1510, 4294901760
        %1607 = vmatpush1.xpose.msra.mxu0 %v1606
        %1608 = vmatprep.subr.mxu0 0.0
        %v1609 = vand.u32 %v1513, 4294901760
        %1610 = vmatpush1.xpose.msra.mxu0 %v1609
        %1611 = vmatprep.subr.mxu0 0.0
        %v1612 = vand.u32 %v1516, 4294901760
        %1613 = vmatpush1.xpose.msra.mxu0 %v1612
        %1614 = vmatprep.subr.mxu0 0.0
        %v1615 = vand.u32 %v1519, 4294901760
        %1616 = vmatpush1.xpose.msra.mxu0 %v1615
        %1617 = vmatprep.subr.mxu0 0.0
        %v1618 = vand.u32 %v1522, 4294901760
        %1619 = vmatpush1.xpose.msra.mxu0 %v1618
        %1620 = vmatprep.subr.mxu0 0.0
        %v1621 = vand.u32 %v1525, 4294901760
        %1622 = vmatpush1.xpose.msra.mxu0 %v1621
        %1623 = vmatprep.subr.mxu0 0.0
        %v1624 = vand.u32 %v1528, 4294901760
        %1625 = vmatpush1.xpose.msra.mxu0 %v1624
        %1626 = vmatprep.subr.mxu0 0.0
        %v1627 = vand.u32 %v1531, 4294901760
        %1628 = vmatpush1.xpose.msra.mxu0 %v1627
        %1629 = vmatprep.subr.mxu0 0.0
        %v1630 = vand.u32 %v1534, 4294901760
        %1631 = vmatpush1.xpose.msra.mxu0 %v1630
        %1632 = vmatprep.subr.mxu0 0.0
        %v1633 = vand.u32 %v1537, 4294901760
        %1634 = vmatpush1.xpose.msra.mxu0 %v1633
        %1635 = vmatprep.subr.mxu0 0.0
        %v1636 = vand.u32 %v1540, 4294901760
        %1637 = vmatpush1.xpose.msra.mxu0 %v1636
        %1638 = vmatprep.subr.mxu0 0.0
        %v1639 = vand.u32 %v1543, 4294901760
        %1640 = vmatpush1.xpose.msra.mxu0 %v1639
        %1641 = vmatprep.subr.mxu0 0.0
        %v1642 = vand.u32 %v1546, 4294901760
        %1643 = vmatpush1.xpose.msra.mxu0 %v1642
        %1644 = vmatprep.subr.mxu0 0.0
        %v1645 = vand.u32 %v1549, 4294901760
        %1646 = vmatpush1.xpose.msra.mxu0 %v1645
        %1647 = vmatprep.subr.mxu0 0.0
        %v1648 = vand.u32 %v1552, 4294901760
        %1649 = vmatpush1.xpose.msra.mxu0 %v1648
        %1650 = vmatprep.subr.mxu0 0.0
        %v1651 = vand.u32 %v1555, 4294901760
        %1652 = vmatpush1.xpose.msra.mxu0 %v1651
        %1653 = vmatprep.subr.mxu0 0.0
        %v1654 = vand.u32 %v1558, 4294901760
        %1655 = vmatpush1.xpose.msra.mxu0 %v1654
        %1656 = vmatprep.subr.mxu0 0.0
        %v1657 = vand.u32 %v1561, 4294901760
        %1658 = vmatpush1.xpose.msra.mxu0 %v1657
        %1659 = vmatprep.subr.mxu0 0.0
        %v1660 = vand.u32 %v1564, 4294901760
        %1661 = vmatpush1.xpose.msra.mxu0 %v1660
        %1662 = vmatprep.subr.mxu0 0.0
        %v1663 = vand.u32 %v1567, 4294901760
        %1664 = vmatpush1.xpose.msra.mxu0 %v1663
        %1665 = vmatprep.subr.mxu0 0.0
        %v1666 = vand.u32 %v1570, 4294901760
        %1667 = vmatpush1.xpose.msra.mxu0 %v1666
        %1668 = vmatprep.subr.mxu0 0.0
        %v1669 = vand.u32 %v1573, 4294901760
        %1670 = vmatpush1.xpose.msra.mxu0 %v1669
        %1671 = vmatprep.subr.mxu0 0.0
        %v1672 = vand.u32 %v1576, 4294901760
        %1673 = vmatpush1.xpose.msra.mxu0 %v1672
        %1674 = vmatprep.subr.mxu0 0.0
        %v1675 = vand.u32 %v1579, 4294901760
        %1676 = vmatpush1.xpose.msra.mxu0 %v1675
        %1677 = vmatprep.subr.mxu0 0.0
        %v1678 = vand.u32 %v1582, 4294901760
        %1679 = vmatpush1.xpose.msra.mxu0 %v1678
        %1680 = vmatprep.subr.mxu0 0.0
        %v1681 = vand.u32 %v1585, 4294901760
        %1682 = vmatpush1.xpose.msra.mxu0 %v1681
        %1683 = vmatprep.subr.mxu0 0.0
        %v1684 = vand.u32 %v1588, 4294901760
        %1685 = vmatpush1.xpose.msra.mxu0 %v1684
        %1686 = vmatprep.subr.mxu0 0.0
        %v1687 = vand.u32 %v1591, 4294901760
        %1688 = vmatpush1.xpose.msra.mxu0 %v1687
        %1689 = vmatprep.mubr.f32.mxu0 0.0
        %v1690 = vand.u32 %v1486, 4294901760
        %v1691 = vsub.f32 %v1486, %v1690
        %v1692 = vand.u32 %v1691, 4294901760
        %v1693 = vsub.f32 %v1691, %v1692
        %v1694 = vand.u32 %v1693, 4294901760
        %1695 = vmatmul.mubr.f32.gmra.mrb[0].mxu0 %v1694
        %v1696 = vpop.f32.mrb[0].mxu0
        %v1697 = vadd.f32 %v1460, %v1696
        %v1698 = vpop.f32.mrb[0].mxu0
        %v1699 = vadd.f32 %v1462, %v1698
        %1700 = vmatprep.mubr.f32.mxu0 0.0
        %v1701 = vand.u32 %v1489, 4294901760
        %v1702 = vsub.f32 %v1489, %v1701
        %v1703 = vand.u32 %v1702, 4294901760
        %v1704 = vsub.f32 %v1702, %v1703
        %v1705 = vand.u32 %v1704, 4294901760
        %1706 = vmatmul.mubr.f32.gmra.mrb[0].mxu0 %v1705
        %v1707 = vpop.f32.mrb[0].mxu0
        %v1708 = vadd.f32 %v1467, %v1707
        %v1709 = vpop.f32.mrb[0].mxu0
        %v1710 = vadd.f32 %v1469, %v1709
        %1711 = vmatprep.mubr.f32.mxu0 0.0
        %v1712 = vand.u32 %v1492, 4294901760
        %v1713 = vsub.f32 %v1492, %v1712
        %v1714 = vand.u32 %v1713, 4294901760
        %v1715 = vsub.f32 %v1713, %v1714
        %v1716 = vand.u32 %v1715, 4294901760
        %1717 = vmatmul.mubr.f32.gmra.mrb[0].mxu0 %v1716
        %v1718 = vpop.f32.mrb[0].mxu0
        %v1719 = vadd.f32 %v1474, %v1718
        %v1720 = vpop.f32.mrb[0].mxu0
        %v1721 = vadd.f32 %v1476, %v1720
        %1722 = vmatprep.mubr.f32.mxu0 0.0
        %v1723 = vand.u32 %v1495, 4294901760
        %v1724 = vsub.f32 %v1495, %v1723
        %v1725 = vand.u32 %v1724, 4294901760
        %v1726 = vsub.f32 %v1724, %v1725
        %v1727 = vand.u32 %v1726, 4294901760
        %1728 = vmatmul.mubr.f32.gmra.mrb[0].mxu0 %v1727
        %v1729 = vpop.f32.mrb[0].mxu0
        %v1730 = vadd.f32 %v1481, %v1729
        %v1731 = vpop.f32.mrb[0].mxu0
        %v1732 = vadd.f32 %v1483, %v1731
        %1733 = vdwg.mxu0
        %1734 = vmatprep.subr.mxu0 0.0
        %v1735 = vand.u32 %v1498, 4294901760
        %v1736 = vsub.f32 %v1498, %v1735
        %v1737 = vand.u32 %v1736, 4294901760
        %v1738 = vsub.f32 %v1736, %v1737
        %v1739 = vand.u32 %v1738, 4294901760
        %1740 = vmatpush1.xpose.msra.mxu0 %v1739
        %1741 = vmatprep.subr.mxu0 0.0
        %v1742 = vand.u32 %v1501, 4294901760
        %v1743 = vsub.f32 %v1501, %v1742
        %v1744 = vand.u32 %v1743, 4294901760
        %v1745 = vsub.f32 %v1743, %v1744
        %v1746 = vand.u32 %v1745, 4294901760
        %1747 = vmatpush1.xpose.msra.mxu0 %v1746
        %1748 = vmatprep.subr.mxu0 0.0
        %v1749 = vand.u32 %v1504, 4294901760
        %v1750 = vsub.f32 %v1504, %v1749
        %v1751 = vand.u32 %v1750, 4294901760
        %v1752 = vsub.f32 %v1750, %v1751
        %v1753 = vand.u32 %v1752, 4294901760
        %1754 = vmatpush1.xpose.msra.mxu0 %v1753
        %1755 = vmatprep.subr.mxu0 0.0
        %v1756 = vand.u32 %v1507, 4294901760
        %v1757 = vsub.f32 %v1507, %v1756
        %v1758 = vand.u32 %v1757, 4294901760
        %v1759 = vsub.f32 %v1757, %v1758
        %v1760 = vand.u32 %v1759, 4294901760
        %1761 = vmatpush1.xpose.msra.mxu0 %v1760
        %1762 = vmatprep.subr.mxu0 0.0
        %v1763 = vand.u32 %v1510, 4294901760
        %v1764 = vsub.f32 %v1510, %v1763
        %v1765 = vand.u32 %v1764, 4294901760
        %v1766 = vsub.f32 %v1764, %v1765
        %v1767 = vand.u32 %v1766, 4294901760
        %1768 = vmatpush1.xpose.msra.mxu0 %v1767
        %1769 = vmatprep.subr.mxu0 0.0
        %v1770 = vand.u32 %v1513, 4294901760
        %v1771 = vsub.f32 %v1513, %v1770
        %v1772 = vand.u32 %v1771, 4294901760
        %v1773 = vsub.f32 %v1771, %v1772
        %v1774 = vand.u32 %v1773, 4294901760
        %1775 = vmatpush1.xpose.msra.mxu0 %v1774
        %1776 = vmatprep.subr.mxu0 0.0
        %v1777 = vand.u32 %v1516, 4294901760
        %v1778 = vsub.f32 %v1516, %v1777
        %v1779 = vand.u32 %v1778, 4294901760
        %v1780 = vsub.f32 %v1778, %v1779
        %v1781 = vand.u32 %v1780, 4294901760
        %1782 = vmatpush1.xpose.msra.mxu0 %v1781
        %1783 = vmatprep.subr.mxu0 0.0
        %v1784 = vand.u32 %v1519, 4294901760
        %v1785 = vsub.f32 %v1519, %v1784
        %v1786 = vand.u32 %v1785, 4294901760
        %v1787 = vsub.f32 %v1785, %v1786
        %v1788 = vand.u32 %v1787, 4294901760
        %1789 = vmatpush1.xpose.msra.mxu0 %v1788
        %1790 = vmatprep.subr.mxu0 0.0
        %v1791 = vand.u32 %v1522, 4294901760
        %v1792 = vsub.f32 %v1522, %v1791
        %v1793 = vand.u32 %v1792, 4294901760
        %v1794 = vsub.f32 %v1792, %v1793
        %v1795 = vand.u32 %v1794, 4294901760
        %1796 = vmatpush1.xpose.msra.mxu0 %v1795
        %1797 = vmatprep.subr.mxu0 0.0
        %v1798 = vand.u32 %v1525, 4294901760
        %v1799 = vsub.f32 %v1525, %v1798
        %v1800 = vand.u32 %v1799, 4294901760
        %v1801 = vsub.f32 %v1799, %v1800
        %v1802 = vand.u32 %v1801, 4294901760
        %1803 = vmatpush1.xpose.msra.mxu0 %v1802
        %1804 = vmatprep.subr.mxu0 0.0
        %v1805 = vand.u32 %v1528, 4294901760
        %v1806 = vsub.f32 %v1528, %v1805
        %v1807 = vand.u32 %v1806, 4294901760
        %v1808 = vsub.f32 %v1806, %v1807
        %v1809 = vand.u32 %v1808, 4294901760
        %1810 = vmatpush1.xpose.msra.mxu0 %v1809
        %1811 = vmatprep.subr.mxu0 0.0
        %v1812 = vand.u32 %v1531, 4294901760
        %v1813 = vsub.f32 %v1531, %v1812
        %v1814 = vand.u32 %v1813, 4294901760
        %v1815 = vsub.f32 %v1813, %v1814
        %v1816 = vand.u32 %v1815, 4294901760
        %1817 = vmatpush1.xpose.msra.mxu0 %v1816
        %1818 = vmatprep.subr.mxu0 0.0
        %v1819 = vand.u32 %v1534, 4294901760
        %v1820 = vsub.f32 %v1534, %v1819
        %v1821 = vand.u32 %v1820, 4294901760
        %v1822 = vsub.f32 %v1820, %v1821
        %v1823 = vand.u32 %v1822, 4294901760
        %1824 = vmatpush1.xpose.msra.mxu0 %v1823
        %1825 = vmatprep.subr.mxu0 0.0
        %v1826 = vand.u32 %v1537, 4294901760
        %v1827 = vsub.f32 %v1537, %v1826
        %v1828 = vand.u32 %v1827, 4294901760
        %v1829 = vsub.f32 %v1827, %v1828
        %v1830 = vand.u32 %v1829, 4294901760
        %1831 = vmatpush1.xpose.msra.mxu0 %v1830
        %1832 = vmatprep.subr.mxu0 0.0
        %v1833 = vand.u32 %v1540, 4294901760
        %v1834 = vsub.f32 %v1540, %v1833
        %v1835 = vand.u32 %v1834, 4294901760
        %v1836 = vsub.f32 %v1834, %v1835
        %v1837 = vand.u32 %v1836, 4294901760
        %1838 = vmatpush1.xpose.msra.mxu0 %v1837
        %1839 = vmatprep.subr.mxu0 0.0
        %v1840 = vand.u32 %v1543, 4294901760
        %v1841 = vsub.f32 %v1543, %v1840
        %v1842 = vand.u32 %v1841, 4294901760
        %v1843 = vsub.f32 %v1841, %v1842
        %v1844 = vand.u32 %v1843, 4294901760
        %1845 = vmatpush1.xpose.msra.mxu0 %v1844
        %1846 = vmatprep.subr.mxu0 0.0
        %v1847 = vand.u32 %v1546, 4294901760
        %v1848 = vsub.f32 %v1546, %v1847
        %v1849 = vand.u32 %v1848, 4294901760
        %v1850 = vsub.f32 %v1848, %v1849
        %v1851 = vand.u32 %v1850, 4294901760
        %1852 = vmatpush1.xpose.msra.mxu0 %v1851
        %1853 = vmatprep.subr.mxu0 0.0
        %v1854 = vand.u32 %v1549, 4294901760
        %v1855 = vsub.f32 %v1549, %v1854
        %v1856 = vand.u32 %v1855, 4294901760
        %v1857 = vsub.f32 %v1855, %v1856
        %v1858 = vand.u32 %v1857, 4294901760
        %1859 = vmatpush1.xpose.msra.mxu0 %v1858
        %1860 = vmatprep.subr.mxu0 0.0
        %v1861 = vand.u32 %v1552, 4294901760
        %v1862 = vsub.f32 %v1552, %v1861
        %v1863 = vand.u32 %v1862, 4294901760
        %v1864 = vsub.f32 %v1862, %v1863
        %v1865 = vand.u32 %v1864, 4294901760
        %1866 = vmatpush1.xpose.msra.mxu0 %v1865
        %1867 = vmatprep.subr.mxu0 0.0
        %v1868 = vand.u32 %v1555, 4294901760
        %v1869 = vsub.f32 %v1555, %v1868
        %v1870 = vand.u32 %v1869, 4294901760
        %v1871 = vsub.f32 %v1869, %v1870
        %v1872 = vand.u32 %v1871, 4294901760
        %1873 = vmatpush1.xpose.msra.mxu0 %v1872
        %1874 = vmatprep.subr.mxu0 0.0
        %v1875 = vand.u32 %v1558, 4294901760
        %v1876 = vsub.f32 %v1558, %v1875
        %v1877 = vand.u32 %v1876, 4294901760
        %v1878 = vsub.f32 %v1876, %v1877
        %v1879 = vand.u32 %v1878, 4294901760
        %1880 = vmatpush1.xpose.msra.mxu0 %v1879
        %1881 = vmatprep.subr.mxu0 0.0
        %v1882 = vand.u32 %v1561, 4294901760
        %v1883 = vsub.f32 %v1561, %v1882
        %v1884 = vand.u32 %v1883, 4294901760
        %v1885 = vsub.f32 %v1883, %v1884
        %v1886 = vand.u32 %v1885, 4294901760
        %1887 = vmatpush1.xpose.msra.mxu0 %v1886
        %1888 = vmatprep.subr.mxu0 0.0
        %v1889 = vand.u32 %v1564, 4294901760
        %v1890 = vsub.f32 %v1564, %v1889
        %v1891 = vand.u32 %v1890, 4294901760
        %v1892 = vsub.f32 %v1890, %v1891
        %v1893 = vand.u32 %v1892, 4294901760
        %1894 = vmatpush1.xpose.msra.mxu0 %v1893
        %1895 = vmatprep.subr.mxu0 0.0
        %v1896 = vand.u32 %v1567, 4294901760
        %v1897 = vsub.f32 %v1567, %v1896
        %v1898 = vand.u32 %v1897, 4294901760
        %v1899 = vsub.f32 %v1897, %v1898
        %v1900 = vand.u32 %v1899, 4294901760
        %1901 = vmatpush1.xpose.msra.mxu0 %v1900
        %1902 = vmatprep.subr.mxu0 0.0
        %v1903 = vand.u32 %v1570, 4294901760
        %v1904 = vsub.f32 %v1570, %v1903
        %v1905 = vand.u32 %v1904, 4294901760
        %v1906 = vsub.f32 %v1904, %v1905
        %v1907 = vand.u32 %v1906, 4294901760
        %1908 = vmatpush1.xpose.msra.mxu0 %v1907
        %1909 = vmatprep.subr.mxu0 0.0
        %v1910 = vand.u32 %v1573, 4294901760
        %v1911 = vsub.f32 %v1573, %v1910
        %v1912 = vand.u32 %v1911, 4294901760
        %v1913 = vsub.f32 %v1911, %v1912
        %v1914 = vand.u32 %v1913, 4294901760
        %1915 = vmatpush1.xpose.msra.mxu0 %v1914
        %1916 = vmatprep.subr.mxu0 0.0
        %v1917 = vand.u32 %v1576, 4294901760
        %v1918 = vsub.f32 %v1576, %v1917
        %v1919 = vand.u32 %v1918, 4294901760
        %v1920 = vsub.f32 %v1918, %v1919
        %v1921 = vand.u32 %v1920, 4294901760
        %1922 = vmatpush1.xpose.msra.mxu0 %v1921
        %1923 = vmatprep.subr.mxu0 0.0
        %v1924 = vand.u32 %v1579, 4294901760
        %v1925 = vsub.f32 %v1579, %v1924
        %v1926 = vand.u32 %v1925, 4294901760
        %v1927 = vsub.f32 %v1925, %v1926
        %v1928 = vand.u32 %v1927, 4294901760
        %1929 = vmatpush1.xpose.msra.mxu0 %v1928
        %1930 = vmatprep.subr.mxu0 0.0
        %v1931 = vand.u32 %v1582, 4294901760
        %v1932 = vsub.f32 %v1582, %v1931
        %v1933 = vand.u32 %v1932, 4294901760
        %v1934 = vsub.f32 %v1932, %v1933
        %v1935 = vand.u32 %v1934, 4294901760
        %1936 = vmatpush1.xpose.msra.mxu0 %v1935
        %1937 = vmatprep.subr.mxu0 0.0
        %v1938 = vand.u32 %v1585, 4294901760
        %v1939 = vsub.f32 %v1585, %v1938
        %v1940 = vand.u32 %v1939, 4294901760
        %v1941 = vsub.f32 %v1939, %v1940
        %v1942 = vand.u32 %v1941, 4294901760
        %1943 = vmatpush1.xpose.msra.mxu0 %v1942
        %1944 = vmatprep.subr.mxu0 0.0
        %v1945 = vand.u32 %v1588, 4294901760
        %v1946 = vsub.f32 %v1588, %v1945
        %v1947 = vand.u32 %v1946, 4294901760
        %v1948 = vsub.f32 %v1946, %v1947
        %v1949 = vand.u32 %v1948, 4294901760
        %1950 = vmatpush1.xpose.msra.mxu0 %v1949
        %1951 = vmatprep.subr.mxu0 0.0
        %v1952 = vand.u32 %v1591, 4294901760
        %v1953 = vsub.f32 %v1591, %v1952
        %v1954 = vand.u32 %v1953, 4294901760
        %v1955 = vsub.f32 %v1953, %v1954
        %v1956 = vand.u32 %v1955, 4294901760
        %1957 = vmatpush1.xpose.msra.mxu0 %v1956
        %1958 = vmatprep.mubr.f32.mxu0 0.0
        %v1959 = vand.u32 %v1486, 4294901760
        %1960 = vmatmul.mubr.f32.gmra.mrb[0].mxu0 %v1959
        %v1961 = vpop.f32.mrb[0].mxu0
        %v1962 = vadd.f32 %v1697, %v1961
        %v1963 = vpop.f32.mrb[0].mxu0
        %v1964 = vadd.f32 %v1699, %v1963
        %1965 = vmatprep.mubr.f32.mxu0 0.0
        %v1966 = vand.u32 %v1489, 4294901760
        %1967 = vmatmul.mubr.f32.gmra.mrb[0].mxu0 %v1966
        %v1968 = vpop.f32.mrb[0].mxu0
        %v1969 = vadd.f32 %v1708, %v1968
        %v1970 = vpop.f32.mrb[0].mxu0
        %v1971 = vadd.f32 %v1710, %v1970
        %1972 = vmatprep.mubr.f32.mxu0 0.0
        %v1973 = vand.u32 %v1492, 4294901760
        %1974 = vmatmul.mubr.f32.gmra.mrb[0].mxu0 %v1973
        %v1975 = vpop.f32.mrb[0].mxu0
        %v1976 = vadd.f32 %v1719, %v1975
        %v1977 = vpop.f32.mrb[0].mxu0
        %v1978 = vadd.f32 %v1721, %v1977
        %1979 = vmatprep.mubr.f32.mxu0 0.0
        %v1980 = vand.u32 %v1495, 4294901760
        %1981 = vmatmul.mubr.f32.gmra.mrb[0].mxu0 %v1980
        %v1982 = vpop.f32.mrb[0].mxu0
        %v1983 = vadd.f32 %v1730, %v1982
        %v1984 = vpop.f32.mrb[0].mxu0
        %v1985 = vadd.f32 %v1732, %v1984
        %1986 = vdwg.mxu0
        %1987 = vmatprep.subr.mxu0 0.0
        %v1988 = vand.u32 %v1498, 4294901760
        %v1989 = vsub.f32 %v1498, %v1988
        %1990 = vmatpush1.xpose.msra.mxu0 %v1989
        %1991 = vmatprep.subr.mxu0 0.0
        %v1992 = vand.u32 %v1501, 4294901760
        %v1993 = vsub.f32 %v1501, %v1992
        %1994 = vmatpush1.xpose.msra.mxu0 %v1993
        %1995 = vmatprep.subr.mxu0 0.0
        %v1996 = vand.u32 %v1504, 4294901760
        %v1997 = vsub.f32 %v1504, %v1996
        %1998 = vmatpush1.xpose.msra.mxu0 %v1997
        %1999 = vmatprep.subr.mxu0 0.0
        %v2000 = vand.u32 %v1507, 4294901760
        %v2001 = vsub.f32 %v1507, %v2000
        %2002 = vmatpush1.xpose.msra.mxu0 %v2001
        %2003 = vmatprep.subr.mxu0 0.0
        %v2004 = vand.u32 %v1510, 4294901760
        %v2005 = vsub.f32 %v1510, %v2004
        %2006 = vmatpush1.xpose.msra.mxu0 %v2005
        %2007 = vmatprep.subr.mxu0 0.0
        %v2008 = vand.u32 %v1513, 4294901760
        %v2009 = vsub.f32 %v1513, %v2008
        %2010 = vmatpush1.xpose.msra.mxu0 %v2009
        %2011 = vmatprep.subr.mxu0 0.0
        %v2012 = vand.u32 %v1516, 4294901760
        %v2013 = vsub.f32 %v1516, %v2012
        %2014 = vmatpush1.xpose.msra.mxu0 %v2013
        %2015 = vmatprep.subr.mxu0 0.0
        %v2016 = vand.u32 %v1519, 4294901760
        %v2017 = vsub.f32 %v1519, %v2016
        %2018 = vmatpush1.xpose.msra.mxu0 %v2017
        %2019 = vmatprep.subr.mxu0 0.0
        %v2020 = vand.u32 %v1522, 4294901760
        %v2021 = vsub.f32 %v1522, %v2020
        %2022 = vmatpush1.xpose.msra.mxu0 %v2021
        %2023 = vmatprep.subr.mxu0 0.0
        %v2024 = vand.u32 %v1525, 4294901760
        %v2025 = vsub.f32 %v1525, %v2024
        %2026 = vmatpush1.xpose.msra.mxu0 %v2025
        %2027 = vmatprep.subr.mxu0 0.0
        %v2028 = vand.u32 %v1528, 4294901760
        %v2029 = vsub.f32 %v1528, %v2028
        %2030 = vmatpush1.xpose.msra.mxu0 %v2029
        %2031 = vmatprep.subr.mxu0 0.0
        %v2032 = vand.u32 %v1531, 4294901760
        %v2033 = vsub.f32 %v1531, %v2032
        %2034 = vmatpush1.xpose.msra.mxu0 %v2033
        %2035 = vmatprep.subr.mxu0 0.0
        %v2036 = vand.u32 %v1534, 4294901760
        %v2037 = vsub.f32 %v1534, %v2036
        %2038 = vmatpush1.xpose.msra.mxu0 %v2037
        %2039 = vmatprep.subr.mxu0 0.0
        %v2040 = vand.u32 %v1537, 4294901760
        %v2041 = vsub.f32 %v1537, %v2040
        %2042 = vmatpush1.xpose.msra.mxu0 %v2041
        %2043 = vmatprep.subr.mxu0 0.0
        %v2044 = vand.u32 %v1540, 4294901760
        %v2045 = vsub.f32 %v1540, %v2044
        %2046 = vmatpush1.xpose.msra.mxu0 %v2045
        %2047 = vmatprep.subr.mxu0 0.0
        %v2048 = vand.u32 %v1543, 4294901760
        %v2049 = vsub.f32 %v1543, %v2048
        %2050 = vmatpush1.xpose.msra.mxu0 %v2049
        %2051 = vmatprep.subr.mxu0 0.0
        %v2052 = vand.u32 %v1546, 4294901760
        %v2053 = vsub.f32 %v1546, %v2052
        %2054 = vmatpush1.xpose.msra.mxu0 %v2053
        %2055 = vmatprep.subr.mxu0 0.0
        %v2056 = vand.u32 %v1549, 4294901760
        %v2057 = vsub.f32 %v1549, %v2056
        %2058 = vmatpush1.xpose.msra.mxu0 %v2057
        %2059 = vmatprep.subr.mxu0 0.0
        %v2060 = vand.u32 %v1552, 4294901760
        %v2061 = vsub.f32 %v1552, %v2060
        %2062 = vmatpush1.xpose.msra.mxu0 %v2061
        %2063 = vmatprep.subr.mxu0 0.0
        %v2064 = vand.u32 %v1555, 4294901760
        %v2065 = vsub.f32 %v1555, %v2064
        %2066 = vmatpush1.xpose.msra.mxu0 %v2065
        %2067 = vmatprep.subr.mxu0 0.0
        %v2068 = vand.u32 %v1558, 4294901760
        %v2069 = vsub.f32 %v1558, %v2068
        %2070 = vmatpush1.xpose.msra.mxu0 %v2069
        %2071 = vmatprep.subr.mxu0 0.0
        %v2072 = vand.u32 %v1561, 4294901760
        %v2073 = vsub.f32 %v1561, %v2072
        %2074 = vmatpush1.xpose.msra.mxu0 %v2073
        %2075 = vmatprep.subr.mxu0 0.0
        %v2076 = vand.u32 %v1564, 4294901760
        %v2077 = vsub.f32 %v1564, %v2076
        %2078 = vmatpush1.xpose.msra.mxu0 %v2077
        %2079 = vmatprep.subr.mxu0 0.0
        %v2080 = vand.u32 %v1567, 4294901760
        %v2081 = vsub.f32 %v1567, %v2080
        %2082 = vmatpush1.xpose.msra.mxu0 %v2081
        %2083 = vmatprep.subr.mxu0 0.0
        %v2084 = vand.u32 %v1570, 4294901760
        %v2085 = vsub.f32 %v1570, %v2084
        %2086 = vmatpush1.xpose.msra.mxu0 %v2085
        %2087 = vmatprep.subr.mxu0 0.0
        %v2088 = vand.u32 %v1573, 4294901760
        %v2089 = vsub.f32 %v1573, %v2088
        %2090 = vmatpush1.xpose.msra.mxu0 %v2089
        %2091 = vmatprep.subr.mxu0 0.0
        %v2092 = vand.u32 %v1576, 4294901760
        %v2093 = vsub.f32 %v1576, %v2092
        %2094 = vmatpush1.xpose.msra.mxu0 %v2093
        %2095 = vmatprep.subr.mxu0 0.0
        %v2096 = vand.u32 %v1579, 4294901760
        %v2097 = vsub.f32 %v1579, %v2096
        %2098 = vmatpush1.xpose.msra.mxu0 %v2097
        %2099 = vmatprep.subr.mxu0 0.0
        %v2100 = vand.u32 %v1582, 4294901760
        %v2101 = vsub.f32 %v1582, %v2100
        %2102 = vmatpush1.xpose.msra.mxu0 %v2101
        %2103 = vmatprep.subr.mxu0 0.0
        %v2104 = vand.u32 %v1585, 4294901760
        %v2105 = vsub.f32 %v1585, %v2104
        %2106 = vmatpush1.xpose.msra.mxu0 %v2105
        %2107 = vmatprep.subr.mxu0 0.0
        %v2108 = vand.u32 %v1588, 4294901760
        %v2109 = vsub.f32 %v1588, %v2108
        %2110 = vmatpush1.xpose.msra.mxu0 %v2109
        %2111 = vmatprep.subr.mxu0 0.0
        %v2112 = vand.u32 %v1591, 4294901760
        %v2113 = vsub.f32 %v1591, %v2112
        %2114 = vmatpush1.xpose.msra.mxu0 %v2113
        %2115 = vmatprep.mubr.f32.mxu0 0.0
        %v2116 = vand.u32 %v1486, 4294901760
        %v2117 = vsub.f32 %v1486, %v2116
        %2118 = vmatmul.mubr.f32.gmra.mrb[0].mxu0 %v2117
        %v2119 = vpop.f32.mrb[0].mxu0
        %v2120 = vadd.f32 %v1962, %v2119
        %v2121 = vpop.f32.mrb[0].mxu0
        %v2122 = vadd.f32 %v1964, %v2121
        %2123 = vmatprep.mubr.f32.mxu0 0.0
        %v2124 = vand.u32 %v1489, 4294901760
        %v2125 = vsub.f32 %v1489, %v2124
        %2126 = vmatmul.mubr.f32.gmra.mrb[0].mxu0 %v2125
        %v2127 = vpop.f32.mrb[0].mxu0
        %v2128 = vadd.f32 %v1969, %v2127
        %v2129 = vpop.f32.mrb[0].mxu0
        %v2130 = vadd.f32 %v1971, %v2129
        %2131 = vmatprep.mubr.f32.mxu0 0.0
        %v2132 = vand.u32 %v1492, 4294901760
        %v2133 = vsub.f32 %v1492, %v2132
        %2134 = vmatmul.mubr.f32.gmra.mrb[0].mxu0 %v2133
        %v2135 = vpop.f32.mrb[0].mxu0
        %v2136 = vadd.f32 %v1976, %v2135
        %v2137 = vpop.f32.mrb[0].mxu0
        %v2138 = vadd.f32 %v1978, %v2137
        %2139 = vmatprep.mubr.f32.mxu0 0.0
        %v2140 = vand.u32 %v1495, 4294901760
        %v2141 = vsub.f32 %v1495, %v2140
        %2142 = vmatmul.mubr.f32.gmra.mrb[0].mxu0 %v2141
        %v2143 = vpop.f32.mrb[0].mxu0
        %v2144 = vadd.f32 %v1983, %v2143
        %v2145 = vpop.f32.mrb[0].mxu0
        %v2146 = vadd.f32 %v1985, %v2145
        %2147 = vdwg.mxu0
        %2148 = vmatprep.subr.mxu0 0.0
        %v2149 = vand.u32 %v1498, 4294901760
        %2150 = vmatpush1.xpose.msra.mxu0 %v2149
        %2151 = vmatprep.subr.mxu0 0.0
        %v2152 = vand.u32 %v1501, 4294901760
        %2153 = vmatpush1.xpose.msra.mxu0 %v2152
        %2154 = vmatprep.subr.mxu0 0.0
        %v2155 = vand.u32 %v1504, 4294901760
        %2156 = vmatpush1.xpose.msra.mxu0 %v2155
        %2157 = vmatprep.subr.mxu0 0.0
        %v2158 = vand.u32 %v1507, 4294901760
        %2159 = vmatpush1.xpose.msra.mxu0 %v2158
        %2160 = vmatprep.subr.mxu0 0.0
        %v2161 = vand.u32 %v1510, 4294901760
        %2162 = vmatpush1.xpose.msra.mxu0 %v2161
        %2163 = vmatprep.subr.mxu0 0.0
        %v2164 = vand.u32 %v1513, 4294901760
        %2165 = vmatpush1.xpose.msra.mxu0 %v2164
        %2166 = vmatprep.subr.mxu0 0.0
        %v2167 = vand.u32 %v1516, 4294901760
        %2168 = vmatpush1.xpose.msra.mxu0 %v2167
        %2169 = vmatprep.subr.mxu0 0.0
        %v2170 = vand.u32 %v1519, 4294901760
        %2171 = vmatpush1.xpose.msra.mxu0 %v2170
        %2172 = vmatprep.subr.mxu0 0.0
        %v2173 = vand.u32 %v1522, 4294901760
        %2174 = vmatpush1.xpose.msra.mxu0 %v2173
        %2175 = vmatprep.subr.mxu0 0.0
        %v2176 = vand.u32 %v1525, 4294901760
        %2177 = vmatpush1.xpose.msra.mxu0 %v2176
        %2178 = vmatprep.subr.mxu0 0.0
        %v2179 = vand.u32 %v1528, 4294901760
        %2180 = vmatpush1.xpose.msra.mxu0 %v2179
        %2181 = vmatprep.subr.mxu0 0.0
        %v2182 = vand.u32 %v1531, 4294901760
        %2183 = vmatpush1.xpose.msra.mxu0 %v2182
        %2184 = vmatprep.subr.mxu0 0.0
        %v2185 = vand.u32 %v1534, 4294901760
        %2186 = vmatpush1.xpose.msra.mxu0 %v2185
        %2187 = vmatprep.subr.mxu0 0.0
        %v2188 = vand.u32 %v1537, 4294901760
        %2189 = vmatpush1.xpose.msra.mxu0 %v2188
        %2190 = vmatprep.subr.mxu0 0.0
        %v2191 = vand.u32 %v1540, 4294901760
        %2192 = vmatpush1.xpose.msra.mxu0 %v2191
        %2193 = vmatprep.subr.mxu0 0.0
        %v2194 = vand.u32 %v1543, 4294901760
        %2195 = vmatpush1.xpose.msra.mxu0 %v2194
        %2196 = vmatprep.subr.mxu0 0.0
        %v2197 = vand.u32 %v1546, 4294901760
        %2198 = vmatpush1.xpose.msra.mxu0 %v2197
        %2199 = vmatprep.subr.mxu0 0.0
        %v2200 = vand.u32 %v1549, 4294901760
        %2201 = vmatpush1.xpose.msra.mxu0 %v2200
        %2202 = vmatprep.subr.mxu0 0.0
        %v2203 = vand.u32 %v1552, 4294901760
        %2204 = vmatpush1.xpose.msra.mxu0 %v2203
        %2205 = vmatprep.subr.mxu0 0.0
        %v2206 = vand.u32 %v1555, 4294901760
        %2207 = vmatpush1.xpose.msra.mxu0 %v2206
        %2208 = vmatprep.subr.mxu0 0.0
        %v2209 = vand.u32 %v1558, 4294901760
        %2210 = vmatpush1.xpose.msra.mxu0 %v2209
        %2211 = vmatprep.subr.mxu0 0.0
        %v2212 = vand.u32 %v1561, 4294901760
        %2213 = vmatpush1.xpose.msra.mxu0 %v2212
        %2214 = vmatprep.subr.mxu0 0.0
        %v2215 = vand.u32 %v1564, 4294901760
        %2216 = vmatpush1.xpose.msra.mxu0 %v2215
        %2217 = vmatprep.subr.mxu0 0.0
        %v2218 = vand.u32 %v1567, 4294901760
        %2219 = vmatpush1.xpose.msra.mxu0 %v2218
        %2220 = vmatprep.subr.mxu0 0.0
        %v2221 = vand.u32 %v1570, 4294901760
        %2222 = vmatpush1.xpose.msra.mxu0 %v2221
        %2223 = vmatprep.subr.mxu0 0.0
        %v2224 = vand.u32 %v1573, 4294901760
        %2225 = vmatpush1.xpose.msra.mxu0 %v2224
        %2226 = vmatprep.subr.mxu0 0.0
        %v2227 = vand.u32 %v1576, 4294901760
        %2228 = vmatpush1.xpose.msra.mxu0 %v2227
        %2229 = vmatprep.subr.mxu0 0.0
        %v2230 = vand.u32 %v1579, 4294901760
        %2231 = vmatpush1.xpose.msra.mxu0 %v2230
        %2232 = vmatprep.subr.mxu0 0.0
        %v2233 = vand.u32 %v1582, 4294901760
        %2234 = vmatpush1.xpose.msra.mxu0 %v2233
        %2235 = vmatprep.subr.mxu0 0.0
        %v2236 = vand.u32 %v1585, 4294901760
        %2237 = vmatpush1.xpose.msra.mxu0 %v2236
        %2238 = vmatprep.subr.mxu0 0.0
        %v2239 = vand.u32 %v1588, 4294901760
        %2240 = vmatpush1.xpose.msra.mxu0 %v2239
        %2241 = vmatprep.subr.mxu0 0.0
        %v2242 = vand.u32 %v1591, 4294901760
        %2243 = vmatpush1.xpose.msra.mxu0 %v2242
        %2244 = vmatprep.mubr.f32.mxu0 0.0
        %v2245 = vand.u32 %v1486, 4294901760
        %v2246 = vsub.f32 %v1486, %v2245
        %v2247 = vand.u32 %v2246, 4294901760
        %2248 = vmatmul.mubr.f32.gmra.mrb[0].mxu0 %v2247
        %v2249 = vpop.f32.mrb[0].mxu0
        %v2250 = vadd.f32 %v2120, %v2249
        %v2251 = vpop.f32.mrb[0].mxu0
        %v2252 = vadd.f32 %v2122, %v2251
        %2253 = vmatprep.mubr.f32.mxu0 0.0
        %v2254 = vand.u32 %v1489, 4294901760
        %v2255 = vsub.f32 %v1489, %v2254
        %v2256 = vand.u32 %v2255, 4294901760
        %2257 = vmatmul.mubr.f32.gmra.mrb[0].mxu0 %v2256
        %v2258 = vpop.f32.mrb[0].mxu0
        %v2259 = vadd.f32 %v2128, %v2258
        %v2260 = vpop.f32.mrb[0].mxu0
        %v2261 = vadd.f32 %v2130, %v2260
        %2262 = vmatprep.mubr.f32.mxu0 0.0
        %v2263 = vand.u32 %v1492, 4294901760
        %v2264 = vsub.f32 %v1492, %v2263
        %v2265 = vand.u32 %v2264, 4294901760
        %2266 = vmatmul.mubr.f32.gmra.mrb[0].mxu0 %v2265
        %v2267 = vpop.f32.mrb[0].mxu0
        %v2268 = vadd.f32 %v2136, %v2267
        %v2269 = vpop.f32.mrb[0].mxu0
        %v2270 = vadd.f32 %v2138, %v2269
        %2271 = vmatprep.mubr.f32.mxu0 0.0
        %v2272 = vand.u32 %v1495, 4294901760
        %v2273 = vsub.f32 %v1495, %v2272
        %v2274 = vand.u32 %v2273, 4294901760
        %2275 = vmatmul.mubr.f32.gmra.mrb[0].mxu0 %v2274
        %v2276 = vpop.f32.mrb[0].mxu0
        %v2277 = vadd.f32 %v2144, %v2276
        %v2278 = vpop.f32.mrb[0].mxu0
        %v2279 = vadd.f32 %v2146, %v2278
        %2280 = vdwg.mxu0
        %2281 = vmatprep.subr.mxu0 0.0
        %v2282 = vand.u32 %v1498, 4294901760
        %v2283 = vsub.f32 %v1498, %v2282
        %v2284 = vand.u32 %v2283, 4294901760
        %2285 = vmatpush1.xpose.msra.mxu0 %v2284
        %2286 = vmatprep.subr.mxu0 0.0
        %v2287 = vand.u32 %v1501, 4294901760
        %v2288 = vsub.f32 %v1501, %v2287
        %v2289 = vand.u32 %v2288, 4294901760
        %2290 = vmatpush1.xpose.msra.mxu0 %v2289
        %2291 = vmatprep.subr.mxu0 0.0
        %v2292 = vand.u32 %v1504, 4294901760
        %v2293 = vsub.f32 %v1504, %v2292
        %v2294 = vand.u32 %v2293, 4294901760
        %2295 = vmatpush1.xpose.msra.mxu0 %v2294
        %2296 = vmatprep.subr.mxu0 0.0
        %v2297 = vand.u32 %v1507, 4294901760
        %v2298 = vsub.f32 %v1507, %v2297
        %v2299 = vand.u32 %v2298, 4294901760
        %2300 = vmatpush1.xpose.msra.mxu0 %v2299
        %2301 = vmatprep.subr.mxu0 0.0
        %v2302 = vand.u32 %v1510, 4294901760
        %v2303 = vsub.f32 %v1510, %v2302
        %v2304 = vand.u32 %v2303, 4294901760
        %2305 = vmatpush1.xpose.msra.mxu0 %v2304
        %2306 = vmatprep.subr.mxu0 0.0
        %v2307 = vand.u32 %v1513, 4294901760
        %v2308 = vsub.f32 %v1513, %v2307
        %v2309 = vand.u32 %v2308, 4294901760
        %2310 = vmatpush1.xpose.msra.mxu0 %v2309
        %2311 = vmatprep.subr.mxu0 0.0
        %v2312 = vand.u32 %v1516, 4294901760
        %v2313 = vsub.f32 %v1516, %v2312
        %v2314 = vand.u32 %v2313, 4294901760
        %2315 = vmatpush1.xpose.msra.mxu0 %v2314
        %2316 = vmatprep.subr.mxu0 0.0
        %v2317 = vand.u32 %v1519, 4294901760
        %v2318 = vsub.f32 %v1519, %v2317
        %v2319 = vand.u32 %v2318, 4294901760
        %2320 = vmatpush1.xpose.msra.mxu0 %v2319
        %2321 = vmatprep.subr.mxu0 0.0
        %v2322 = vand.u32 %v1522, 4294901760
        %v2323 = vsub.f32 %v1522, %v2322
        %v2324 = vand.u32 %v2323, 4294901760
        %2325 = vmatpush1.xpose.msra.mxu0 %v2324
        %2326 = vmatprep.subr.mxu0 0.0
        %v2327 = vand.u32 %v1525, 4294901760
        %v2328 = vsub.f32 %v1525, %v2327
        %v2329 = vand.u32 %v2328, 4294901760
        %2330 = vmatpush1.xpose.msra.mxu0 %v2329
        %2331 = vmatprep.subr.mxu0 0.0
        %v2332 = vand.u32 %v1528, 4294901760
        %v2333 = vsub.f32 %v1528, %v2332
        %v2334 = vand.u32 %v2333, 4294901760
        %2335 = vmatpush1.xpose.msra.mxu0 %v2334
        %2336 = vmatprep.subr.mxu0 0.0
        %v2337 = vand.u32 %v1531, 4294901760
        %v2338 = vsub.f32 %v1531, %v2337
        %v2339 = vand.u32 %v2338, 4294901760
        %2340 = vmatpush1.xpose.msra.mxu0 %v2339
        %2341 = vmatprep.subr.mxu0 0.0
        %v2342 = vand.u32 %v1534, 4294901760
        %v2343 = vsub.f32 %v1534, %v2342
        %v2344 = vand.u32 %v2343, 4294901760
        %2345 = vmatpush1.xpose.msra.mxu0 %v2344
        %2346 = vmatprep.subr.mxu0 0.0
        %v2347 = vand.u32 %v1537, 4294901760
        %v2348 = vsub.f32 %v1537, %v2347
        %v2349 = vand.u32 %v2348, 4294901760
        %2350 = vmatpush1.xpose.msra.mxu0 %v2349
        %2351 = vmatprep.subr.mxu0 0.0
        %v2352 = vand.u32 %v1540, 4294901760
        %v2353 = vsub.f32 %v1540, %v2352
        %v2354 = vand.u32 %v2353, 4294901760
        %2355 = vmatpush1.xpose.msra.mxu0 %v2354
        %2356 = vmatprep.subr.mxu0 0.0
        %v2357 = vand.u32 %v1543, 4294901760
        %v2358 = vsub.f32 %v1543, %v2357
        %v2359 = vand.u32 %v2358, 4294901760
        %2360 = vmatpush1.xpose.msra.mxu0 %v2359
        %2361 = vmatprep.subr.mxu0 0.0
        %v2362 = vand.u32 %v1546, 4294901760
        %v2363 = vsub.f32 %v1546, %v2362
        %v2364 = vand.u32 %v2363, 4294901760
        %2365 = vmatpush1.xpose.msra.mxu0 %v2364
        %2366 = vmatprep.subr.mxu0 0.0
        %v2367 = vand.u32 %v1549, 4294901760
        %v2368 = vsub.f32 %v1549, %v2367
        %v2369 = vand.u32 %v2368, 4294901760
        %2370 = vmatpush1.xpose.msra.mxu0 %v2369
        %2371 = vmatprep.subr.mxu0 0.0
        %v2372 = vand.u32 %v1552, 4294901760
        %v2373 = vsub.f32 %v1552, %v2372
        %v2374 = vand.u32 %v2373, 4294901760
        %2375 = vmatpush1.xpose.msra.mxu0 %v2374
        %2376 = vmatprep.subr.mxu0 0.0
        %v2377 = vand.u32 %v1555, 4294901760
        %v2378 = vsub.f32 %v1555, %v2377
        %v2379 = vand.u32 %v2378, 4294901760
        %2380 = vmatpush1.xpose.msra.mxu0 %v2379
        %2381 = vmatprep.subr.mxu0 0.0
        %v2382 = vand.u32 %v1558, 4294901760
        %v2383 = vsub.f32 %v1558, %v2382
        %v2384 = vand.u32 %v2383, 4294901760
        %2385 = vmatpush1.xpose.msra.mxu0 %v2384
        %2386 = vmatprep.subr.mxu0 0.0
        %v2387 = vand.u32 %v1561, 4294901760
        %v2388 = vsub.f32 %v1561, %v2387
        %v2389 = vand.u32 %v2388, 4294901760
        %2390 = vmatpush1.xpose.msra.mxu0 %v2389
        %2391 = vmatprep.subr.mxu0 0.0
        %v2392 = vand.u32 %v1564, 4294901760
        %v2393 = vsub.f32 %v1564, %v2392
        %v2394 = vand.u32 %v2393, 4294901760
        %2395 = vmatpush1.xpose.msra.mxu0 %v2394
        %2396 = vmatprep.subr.mxu0 0.0
        %v2397 = vand.u32 %v1567, 4294901760
        %v2398 = vsub.f32 %v1567, %v2397
        %v2399 = vand.u32 %v2398, 4294901760
        %2400 = vmatpush1.xpose.msra.mxu0 %v2399
        %2401 = vmatprep.subr.mxu0 0.0
        %v2402 = vand.u32 %v1570, 4294901760
        %v2403 = vsub.f32 %v1570, %v2402
        %v2404 = vand.u32 %v2403, 4294901760
        %2405 = vmatpush1.xpose.msra.mxu0 %v2404
        %2406 = vmatprep.subr.mxu0 0.0
        %v2407 = vand.u32 %v1573, 4294901760
        %v2408 = vsub.f32 %v1573, %v2407
        %v2409 = vand.u32 %v2408, 4294901760
        %2410 = vmatpush1.xpose.msra.mxu0 %v2409
        %2411 = vmatprep.subr.mxu0 0.0
        %v2412 = vand.u32 %v1576, 4294901760
        %v2413 = vsub.f32 %v1576, %v2412
        %v2414 = vand.u32 %v2413, 4294901760
        %2415 = vmatpush1.xpose.msra.mxu0 %v2414
        %2416 = vmatprep.subr.mxu0 0.0
        %v2417 = vand.u32 %v1579, 4294901760
        %v2418 = vsub.f32 %v1579, %v2417
        %v2419 = vand.u32 %v2418, 4294901760
        %2420 = vmatpush1.xpose.msra.mxu0 %v2419
        %2421 = vmatprep.subr.mxu0 0.0
        %v2422 = vand.u32 %v1582, 4294901760
        %v2423 = vsub.f32 %v1582, %v2422
        %v2424 = vand.u32 %v2423, 4294901760
        %2425 = vmatpush1.xpose.msra.mxu0 %v2424
        %2426 = vmatprep.subr.mxu0 0.0
        %v2427 = vand.u32 %v1585, 4294901760
        %v2428 = vsub.f32 %v1585, %v2427
        %v2429 = vand.u32 %v2428, 4294901760
        %2430 = vmatpush1.xpose.msra.mxu0 %v2429
        %2431 = vmatprep.subr.mxu0 0.0
        %v2432 = vand.u32 %v1588, 4294901760
        %v2433 = vsub.f32 %v1588, %v2432
        %v2434 = vand.u32 %v2433, 4294901760
        %2435 = vmatpush1.xpose.msra.mxu0 %v2434
        %2436 = vmatprep.subr.mxu0 0.0
        %v2437 = vand.u32 %v1591, 4294901760
        %v2438 = vsub.f32 %v1591, %v2437
        %v2439 = vand.u32 %v2438, 4294901760
        %2440 = vmatpush1.xpose.msra.mxu0 %v2439
        %2441 = vmatprep.mubr.f32.mxu0 0.0
        %v2442 = vand.u32 %v1486, 4294901760
        %2443 = vmatmul.mubr.f32.gmra.mrb[0].mxu0 %v2442
        %v2444 = vpop.f32.mrb[0].mxu0
        %v2445 = vadd.f32 %v2250, %v2444
        %v2446 = vpop.f32.mrb[0].mxu0
        %v2447 = vadd.f32 %v2252, %v2446
        %2448 = vmatprep.mubr.f32.mxu0 0.0
        %v2449 = vand.u32 %v1489, 4294901760
        %2450 = vmatmul.mubr.f32.gmra.mrb[0].mxu0 %v2449
        %v2451 = vpop.f32.mrb[0].mxu0
        %v2452 = vadd.f32 %v2259, %v2451
        %v2453 = vpop.f32.mrb[0].mxu0
        %v2454 = vadd.f32 %v2261, %v2453
        %2455 = vmatprep.mubr.f32.mxu0 0.0
        %v2456 = vand.u32 %v1492, 4294901760
        %2457 = vmatmul.mubr.f32.gmra.mrb[0].mxu0 %v2456
        %v2458 = vpop.f32.mrb[0].mxu0
        %v2459 = vadd.f32 %v2268, %v2458
        %v2460 = vpop.f32.mrb[0].mxu0
        %v2461 = vadd.f32 %v2270, %v2460
        %2462 = vmatprep.mubr.f32.mxu0 0.0
        %v2463 = vand.u32 %v1495, 4294901760
        %2464 = vmatmul.mubr.f32.gmra.mrb[0].mxu0 %v2463
        %v2465 = vpop.f32.mrb[0].mxu0
        %v2466 = vadd.f32 %v2277, %v2465
        %v2467 = vpop.f32.mrb[0].mxu0
        %v2468 = vadd.f32 %v2279, %v2467
        %2469 = vdwg.mxu0
        %2470 = vmatprep.subr.mxu0 0.0
        %v2471 = vand.u32 %v1498, 4294901760
        %2472 = vmatpush1.xpose.msra.mxu0 %v2471
        %2473 = vmatprep.subr.mxu0 0.0
        %v2474 = vand.u32 %v1501, 4294901760
        %2475 = vmatpush1.xpose.msra.mxu0 %v2474
        %2476 = vmatprep.subr.mxu0 0.0
        %v2477 = vand.u32 %v1504, 4294901760
        %2478 = vmatpush1.xpose.msra.mxu0 %v2477
        %2479 = vmatprep.subr.mxu0 0.0
        %v2480 = vand.u32 %v1507, 4294901760
        %2481 = vmatpush1.xpose.msra.mxu0 %v2480
        %2482 = vmatprep.subr.mxu0 0.0
        %v2483 = vand.u32 %v1510, 4294901760
        %2484 = vmatpush1.xpose.msra.mxu0 %v2483
        %2485 = vmatprep.subr.mxu0 0.0
        %v2486 = vand.u32 %v1513, 4294901760
        %2487 = vmatpush1.xpose.msra.mxu0 %v2486
        %2488 = vmatprep.subr.mxu0 0.0
        %v2489 = vand.u32 %v1516, 4294901760
        %2490 = vmatpush1.xpose.msra.mxu0 %v2489
        %2491 = vmatprep.subr.mxu0 0.0
        %v2492 = vand.u32 %v1519, 4294901760
        %2493 = vmatpush1.xpose.msra.mxu0 %v2492
        %2494 = vmatprep.subr.mxu0 0.0
        %v2495 = vand.u32 %v1522, 4294901760
        %2496 = vmatpush1.xpose.msra.mxu0 %v2495
        %2497 = vmatprep.subr.mxu0 0.0
        %v2498 = vand.u32 %v1525, 4294901760
        %2499 = vmatpush1.xpose.msra.mxu0 %v2498
        %2500 = vmatprep.subr.mxu0 0.0
        %v2501 = vand.u32 %v1528, 4294901760
        %2502 = vmatpush1.xpose.msra.mxu0 %v2501
        %2503 = vmatprep.subr.mxu0 0.0
        %v2504 = vand.u32 %v1531, 4294901760
        %2505 = vmatpush1.xpose.msra.mxu0 %v2504
        %2506 = vmatprep.subr.mxu0 0.0
        %v2507 = vand.u32 %v1534, 4294901760
        %2508 = vmatpush1.xpose.msra.mxu0 %v2507
        %2509 = vmatprep.subr.mxu0 0.0
        %v2510 = vand.u32 %v1537, 4294901760
        %2511 = vmatpush1.xpose.msra.mxu0 %v2510
        %2512 = vmatprep.subr.mxu0 0.0
        %v2513 = vand.u32 %v1540, 4294901760
        %2514 = vmatpush1.xpose.msra.mxu0 %v2513
        %2515 = vmatprep.subr.mxu0 0.0
        %v2516 = vand.u32 %v1543, 4294901760
        %2517 = vmatpush1.xpose.msra.mxu0 %v2516
        %2518 = vmatprep.subr.mxu0 0.0
        %v2519 = vand.u32 %v1546, 4294901760
        %2520 = vmatpush1.xpose.msra.mxu0 %v2519
        %2521 = vmatprep.subr.mxu0 0.0
        %v2522 = vand.u32 %v1549, 4294901760
        %2523 = vmatpush1.xpose.msra.mxu0 %v2522
        %2524 = vmatprep.subr.mxu0 0.0
        %v2525 = vand.u32 %v1552, 4294901760
        %2526 = vmatpush1.xpose.msra.mxu0 %v2525
        %2527 = vmatprep.subr.mxu0 0.0
        %v2528 = vand.u32 %v1555, 4294901760
        %2529 = vmatpush1.xpose.msra.mxu0 %v2528
        %2530 = vmatprep.subr.mxu0 0.0
        %v2531 = vand.u32 %v1558, 4294901760
        %2532 = vmatpush1.xpose.msra.mxu0 %v2531
        %2533 = vmatprep.subr.mxu0 0.0
        %v2534 = vand.u32 %v1561, 4294901760
        %2535 = vmatpush1.xpose.msra.mxu0 %v2534
        %2536 = vmatprep.subr.mxu0 0.0
        %v2537 = vand.u32 %v1564, 4294901760
        %2538 = vmatpush1.xpose.msra.mxu0 %v2537
        %2539 = vmatprep.subr.mxu0 0.0
        %v2540 = vand.u32 %v1567, 4294901760
        %2541 = vmatpush1.xpose.msra.mxu0 %v2540
        %2542 = vmatprep.subr.mxu0 0.0
        %v2543 = vand.u32 %v1570, 4294901760
        %2544 = vmatpush1.xpose.msra.mxu0 %v2543
        %2545 = vmatprep.subr.mxu0 0.0
        %v2546 = vand.u32 %v1573, 4294901760
        %2547 = vmatpush1.xpose.msra.mxu0 %v2546
        %2548 = vmatprep.subr.mxu0 0.0
        %v2549 = vand.u32 %v1576, 4294901760
        %2550 = vmatpush1.xpose.msra.mxu0 %v2549
        %2551 = vmatprep.subr.mxu0 0.0
        %v2552 = vand.u32 %v1579, 4294901760
        %2553 = vmatpush1.xpose.msra.mxu0 %v2552
        %2554 = vmatprep.subr.mxu0 0.0
        %v2555 = vand.u32 %v1582, 4294901760
        %2556 = vmatpush1.xpose.msra.mxu0 %v2555
        %2557 = vmatprep.subr.mxu0 0.0
        %v2558 = vand.u32 %v1585, 4294901760
        %2559 = vmatpush1.xpose.msra.mxu0 %v2558
        %2560 = vmatprep.subr.mxu0 0.0
        %v2561 = vand.u32 %v1588, 4294901760
        %2562 = vmatpush1.xpose.msra.mxu0 %v2561
        %2563 = vmatprep.subr.mxu0 0.0
        %v2564 = vand.u32 %v1591, 4294901760
        %2565 = vmatpush1.xpose.msra.mxu0 %v2564
        %2566 = vmatprep.mubr.f32.mxu0 0.0
        %v2567 = vand.u32 %v1486, 4294901760
        %2568 = vmatmul.mubr.f32.gmra.mrb[0].mxu0 %v2567
        %v2569 = vpop.f32.mrb[0].mxu0
        %v2570 = vadd.f32 %v2445, %v2569
        %v2571 = vpop.f32.mrb[0].mxu0
        %v2572 = vadd.f32 %v2447, %v2571
        %2573 = vmatprep.mubr.f32.mxu0 0.0
        %v2574 = vand.u32 %v1489, 4294901760
        %2575 = vmatmul.mubr.f32.gmra.mrb[0].mxu0 %v2574
        %v2576 = vpop.f32.mrb[0].mxu0
        %v2577 = vadd.f32 %v2452, %v2576
        %v2578 = vpop.f32.mrb[0].mxu0
        %v2579 = vadd.f32 %v2454, %v2578
        %2580 = vmatprep.mubr.f32.mxu0 0.0
        %v2581 = vand.u32 %v1492, 4294901760
        %2582 = vmatmul.mubr.f32.gmra.mrb[0].mxu0 %v2581
        %v2583 = vpop.f32.mrb[0].mxu0
        %v2584 = vadd.f32 %v2459, %v2583
        %v2585 = vpop.f32.mrb[0].mxu0
        %v2586 = vadd.f32 %v2461, %v2585
        %2587 = vmatprep.mubr.f32.mxu0 0.0
        %v2588 = vand.u32 %v1495, 4294901760
        %2589 = vmatmul.mubr.f32.gmra.mrb[0].mxu0 %v2588
        %v2590 = vpop.f32.mrb[0].mxu0
        %v2591 = vadd.f32 %v2466, %v2590
        %v2592 = vpop.f32.mrb[0].mxu0
        %v2593 = vadd.f32 %v2468, %v2592
        %2594 = vdwg.mxu0
        %v2595 = vld [vmem:[%s4] sm:$0xff]
        %v2596 = vld [vmem:[%s4 + $0x8] sm:$0xff]
        %v2597 = vld [vmem:[%s4 + $0x10] sm:$0xff]
        %v2598 = vld [vmem:[%s4 + $0x18] sm:$0xff]
        %2600 = vset.pattern.permute.xlu0 0
        %2601 = vperm.xlu0 %2600, %v2595
        %v2602 = vpop.permute.xlu0 %2601
        %2605 = vset.pattern.permute.xlu0 0
        %2606 = vperm.xlu0 %2605, %v2596
        %v2607 = vpop.permute.xlu0 %2606
        %2610 = vset.pattern.permute.xlu0 0
        %2611 = vperm.xlu0 %2610, %v2597
        %v2612 = vpop.permute.xlu0 %2611
        %2615 = vset.pattern.permute.xlu0 0
        %2616 = vperm.xlu0 %2615, %v2598
        %v2617 = vpop.permute.xlu0 %2616
        %v2619 = vadd.f32 %v2570, %v2602
        %v2620 = vadd.f32 %v2572, %v2602
        %v2621 = vadd.f32 %v2577, %v2607
        %v2622 = vadd.f32 %v2579, %v2607
        %v2623 = vadd.f32 %v2584, %v2612
        %v2624 = vadd.f32 %v2586, %v2612
        %v2625 = vadd.f32 %v2591, %v2617
        %v2626 = vadd.f32 %v2593, %v2617
        %v2627 = vmax.f32 %v2619, 0.0
        %v2628 = vmax.f32 %v2620, 0.0
        %v2629 = vmax.f32 %v2621, 0.0
        %v2630 = vmax.f32 %v2622, 0.0
        %v2631 = vmax.f32 %v2623, 0.0
        %v2632 = vmax.f32 %v2624, 0.0
        %v2633 = vmax.f32 %v2625, 0.0
        %v2634 = vmax.f32 %v2626, 0.0
        %v2635 = vld [vmem:[%s5] sm:$0x1]
        %s2636 = sld [smem:[#allocation2]]
        %v2637 = vstv %s2636
        %v2639 = vsel %vm374, %v2635, 0
        %v2641 = vand.u32 %v2628, 4294901760
        %2642 = vmatprep.subr.mxu0 %v2641
        %v2643 = vand.u32 %v2627, 4294901760
        %2644 = vmatpush1.msra.mxu0 %v2643
        %v2645 = vand.u32 %v2630, 4294901760
        %2646 = vmatprep.subr.mxu0 %v2645
        %v2647 = vand.u32 %v2629, 4294901760
        %2648 = vmatpush1.msra.mxu0 %v2647
        %v2649 = vand.u32 %v2632, 4294901760
        %2650 = vmatprep.subr.mxu0 %v2649
        %v2651 = vand.u32 %v2631, 4294901760
        %2652 = vmatpush1.msra.mxu0 %v2651
        %v2653 = vand.u32 %v2634, 4294901760
        %2654 = vmatprep.subr.mxu0 %v2653
        %v2655 = vand.u32 %v2633, 4294901760
        %2656 = vmatpush1.msra.mxu0 %v2655
        %2657 = vmatprep.subr.mxu0 0.0
        %2658 = vmatpush1.msra.mxu0 0.0
        %2659 = vmatprep.subr.mxu0 0.0
        %2660 = vmatpush1.msra.mxu0 0.0
        %2661 = vmatprep.subr.mxu0 0.0
        %2662 = vmatpush1.msra.mxu0 0.0
        %2663 = vmatprep.subr.mxu0 0.0
        %2664 = vmatpush1.msra.mxu0 0.0
        %2665 = vmatprep.subr.mxu0 0.0
        %2666 = vmatpush1.msra.mxu0 0.0
        %2667 = vmatprep.subr.mxu0 0.0
        %2668 = vmatpush1.msra.mxu0 0.0
        %2669 = vmatprep.subr.mxu0 0.0
        %2670 = vmatpush1.msra.mxu0 0.0
        %2671 = vmatprep.subr.mxu0 0.0
        %2672 = vmatpush1.msra.mxu0 0.0
        %2673 = vmatprep.subr.mxu0 0.0
        %2674 = vmatpush1.msra.mxu0 0.0
        %2675 = vmatprep.subr.mxu0 0.0
        %2676 = vmatpush1.msra.mxu0 0.0
        %2677 = vmatprep.subr.mxu0 0.0
        %2678 = vmatpush1.msra.mxu0 0.0
        %2679 = vmatprep.subr.mxu0 0.0
        %2680 = vmatpush1.msra.mxu0 0.0
        %2681 = vmatprep.subr.mxu0 0.0
        %2682 = vmatpush1.msra.mxu0 0.0
        %2683 = vmatprep.subr.mxu0 0.0
        %2684 = vmatpush1.msra.mxu0 0.0
        %2685 = vmatprep.subr.mxu0 0.0
        %2686 = vmatpush1.msra.mxu0 0.0
        %2687 = vmatprep.subr.mxu0 0.0
        %2688 = vmatpush1.msra.mxu0 0.0
        %2689 = vmatprep.subr.mxu0 0.0
        %2690 = vmatpush1.msra.mxu0 0.0
        %2691 = vmatprep.subr.mxu0 0.0
        %2692 = vmatpush1.msra.mxu0 0.0
        %2693 = vmatprep.subr.mxu0 0.0
        %2694 = vmatpush1.msra.mxu0 0.0
        %2695 = vmatprep.subr.mxu0 0.0
        %2696 = vmatpush1.msra.mxu0 0.0
        %2697 = vmatprep.subr.mxu0 0.0
        %2698 = vmatpush1.msra.mxu0 0.0
        %2699 = vmatprep.subr.mxu0 0.0
        %2700 = vmatpush1.msra.mxu0 0.0
        %2701 = vmatprep.subr.mxu0 0.0
        %2702 = vmatpush1.msra.mxu0 0.0
        %2703 = vmatprep.subr.mxu0 0.0
        %2704 = vmatpush1.msra.mxu0 0.0
        %2705 = vmatprep.subr.mxu0 0.0
        %2706 = vmatpush1.msra.mxu0 0.0
        %2707 = vmatprep.subr.mxu0 0.0
        %2708 = vmatpush1.msra.mxu0 0.0
        %2709 = vmatprep.subr.mxu0 0.0
        %2710 = vmatpush1.msra.mxu0 0.0
        %2711 = vmatprep.subr.mxu0 0.0
        %2712 = vmatpush1.msra.mxu0 0.0
        %2713 = vmatprep.mubr.f32.mxu0 0.0
        %v2714 = vand.u32 %v2639, 4294901760
        %v2715 = vsub.f32 %v2639, %v2714
        %v2716 = vand.u32 %v2715, 4294901760
        %v2717 = vsub.f32 %v2715, %v2716
        %v2718 = vand.u32 %v2717, 4294901760
        %2719 = vmatmul.mubr.f32.gmra.mrb[0].mxu0 %v2718
        %v2720 = vpop.f32.mrb[0].mxu0
        %v2721 = vadd.f32 %v2637, %v2720
        %v2722 = vpop.f32.mrb[0].mxu0
        %v2723 = vadd.f32 %v2637, %v2722
        %2724 = vdwg.mxu0
        %v2725 = vand.u32 %v2628, 4294901760
        %v2726 = vsub.f32 %v2628, %v2725
        %v2727 = vand.u32 %v2726, 4294901760
        %v2728 = vsub.f32 %v2726, %v2727
        %v2729 = vand.u32 %v2728, 4294901760
        %2730 = vmatprep.subr.mxu0 %v2729
        %v2731 = vand.u32 %v2627, 4294901760
        %v2732 = vsub.f32 %v2627, %v2731
        %v2733 = vand.u32 %v2732, 4294901760
        %v2734 = vsub.f32 %v2732, %v2733
        %v2735 = vand.u32 %v2734, 4294901760
        %2736 = vmatpush1.msra.mxu0 %v2735
        %v2737 = vand.u32 %v2630, 4294901760
        %v2738 = vsub.f32 %v2630, %v2737
        %v2739 = vand.u32 %v2738, 4294901760
        %v2740 = vsub.f32 %v2738, %v2739
        %v2741 = vand.u32 %v2740, 4294901760
        %2742 = vmatprep.subr.mxu0 %v2741
        %v2743 = vand.u32 %v2629, 4294901760
        %v2744 = vsub.f32 %v2629, %v2743
        %v2745 = vand.u32 %v2744, 4294901760
        %v2746 = vsub.f32 %v2744, %v2745
        %v2747 = vand.u32 %v2746, 4294901760
        %2748 = vmatpush1.msra.mxu0 %v2747
        %v2749 = vand.u32 %v2632, 4294901760
        %v2750 = vsub.f32 %v2632, %v2749
        %v2751 = vand.u32 %v2750, 4294901760
        %v2752 = vsub.f32 %v2750, %v2751
        %v2753 = vand.u32 %v2752, 4294901760
        %2754 = vmatprep.subr.mxu0 %v2753
        %v2755 = vand.u32 %v2631, 4294901760
        %v2756 = vsub.f32 %v2631, %v2755
        %v2757 = vand.u32 %v2756, 4294901760
        %v2758 = vsub.f32 %v2756, %v2757
        %v2759 = vand.u32 %v2758, 4294901760
        %2760 = vmatpush1.msra.mxu0 %v2759
        %v2761 = vand.u32 %v2634, 4294901760
        %v2762 = vsub.f32 %v2634, %v2761
        %v2763 = vand.u32 %v2762, 4294901760
        %v2764 = vsub.f32 %v2762, %v2763
        %v2765 = vand.u32 %v2764, 4294901760
        %2766 = vmatprep.subr.mxu0 %v2765
        %v2767 = vand.u32 %v2633, 4294901760
        %v2768 = vsub.f32 %v2633, %v2767
        %v2769 = vand.u32 %v2768, 4294901760
        %v2770 = vsub.f32 %v2768, %v2769
        %v2771 = vand.u32 %v2770, 4294901760
        %2772 = vmatpush1.msra.mxu0 %v2771
        %2773 = vmatprep.subr.mxu0 0.0
        %2774 = vmatpush1.msra.mxu0 0.0
        %2775 = vmatprep.subr.mxu0 0.0
        %2776 = vmatpush1.msra.mxu0 0.0
        %2777 = vmatprep.subr.mxu0 0.0
        %2778 = vmatpush1.msra.mxu0 0.0
        %2779 = vmatprep.subr.mxu0 0.0
        %2780 = vmatpush1.msra.mxu0 0.0
        %2781 = vmatprep.subr.mxu0 0.0
        %2782 = vmatpush1.msra.mxu0 0.0
        %2783 = vmatprep.subr.mxu0 0.0
        %2784 = vmatpush1.msra.mxu0 0.0
        %2785 = vmatprep.subr.mxu0 0.0
        %2786 = vmatpush1.msra.mxu0 0.0
        %2787 = vmatprep.subr.mxu0 0.0
        %2788 = vmatpush1.msra.mxu0 0.0
        %2789 = vmatprep.subr.mxu0 0.0
        %2790 = vmatpush1.msra.mxu0 0.0
        %2791 = vmatprep.subr.mxu0 0.0
        %2792 = vmatpush1.msra.mxu0 0.0
        %2793 = vmatprep.subr.mxu0 0.0
        %2794 = vmatpush1.msra.mxu0 0.0
        %2795 = vmatprep.subr.mxu0 0.0
        %2796 = vmatpush1.msra.mxu0 0.0
        %2797 = vmatprep.subr.mxu0 0.0
        %2798 = vmatpush1.msra.mxu0 0.0
        %2799 = vmatprep.subr.mxu0 0.0
        %2800 = vmatpush1.msra.mxu0 0.0
        %2801 = vmatprep.subr.mxu0 0.0
        %2802 = vmatpush1.msra.mxu0 0.0
        %2803 = vmatprep.subr.mxu0 0.0
        %2804 = vmatpush1.msra.mxu0 0.0
        %2805 = vmatprep.subr.mxu0 0.0
        %2806 = vmatpush1.msra.mxu0 0.0
        %2807 = vmatprep.subr.mxu0 0.0
        %2808 = vmatpush1.msra.mxu0 0.0
        %2809 = vmatprep.subr.mxu0 0.0
        %2810 = vmatpush1.msra.mxu0 0.0
        %2811 = vmatprep.subr.mxu0 0.0
        %2812 = vmatpush1.msra.mxu0 0.0
        %2813 = vmatprep.subr.mxu0 0.0
        %2814 = vmatpush1.msra.mxu0 0.0
        %2815 = vmatprep.subr.mxu0 0.0
        %2816 = vmatpush1.msra.mxu0 0.0
        %2817 = vmatprep.subr.mxu0 0.0
        %2818 = vmatpush1.msra.mxu0 0.0
        %2819 = vmatprep.subr.mxu0 0.0
        %2820 = vmatpush1.msra.mxu0 0.0
        %2821 = vmatprep.subr.mxu0 0.0
        %2822 = vmatpush1.msra.mxu0 0.0
        %2823 = vmatprep.subr.mxu0 0.0
        %2824 = vmatpush1.msra.mxu0 0.0
        %2825 = vmatprep.subr.mxu0 0.0
        %2826 = vmatpush1.msra.mxu0 0.0
        %2827 = vmatprep.subr.mxu0 0.0
        %2828 = vmatpush1.msra.mxu0 0.0
        %2829 = vmatprep.mubr.f32.mxu0 0.0
        %v2830 = vand.u32 %v2639, 4294901760
        %2831 = vmatmul.mubr.f32.gmra.mrb[0].mxu0 %v2830
        %v2832 = vpop.f32.mrb[0].mxu0
        %v2833 = vadd.f32 %v2721, %v2832
        %v2834 = vpop.f32.mrb[0].mxu0
        %v2835 = vadd.f32 %v2723, %v2834
        %2836 = vdwg.mxu0
        %v2837 = vand.u32 %v2628, 4294901760
        %v2838 = vsub.f32 %v2628, %v2837
        %2839 = vmatprep.subr.mxu0 %v2838
        %v2840 = vand.u32 %v2627, 4294901760
        %v2841 = vsub.f32 %v2627, %v2840
        %2842 = vmatpush1.msra.mxu0 %v2841
        %v2843 = vand.u32 %v2630, 4294901760
        %v2844 = vsub.f32 %v2630, %v2843
        %2845 = vmatprep.subr.mxu0 %v2844
        %v2846 = vand.u32 %v2629, 4294901760
        %v2847 = vsub.f32 %v2629, %v2846
        %2848 = vmatpush1.msra.mxu0 %v2847
        %v2849 = vand.u32 %v2632, 4294901760
        %v2850 = vsub.f32 %v2632, %v2849
        %2851 = vmatprep.subr.mxu0 %v2850
        %v2852 = vand.u32 %v2631, 4294901760
        %v2853 = vsub.f32 %v2631, %v2852
        %2854 = vmatpush1.msra.mxu0 %v2853
        %v2855 = vand.u32 %v2634, 4294901760
        %v2856 = vsub.f32 %v2634, %v2855
        %2857 = vmatprep.subr.mxu0 %v2856
        %v2858 = vand.u32 %v2633, 4294901760
        %v2859 = vsub.f32 %v2633, %v2858
        %2860 = vmatpush1.msra.mxu0 %v2859
        %2861 = vmatprep.subr.mxu0 0.0
        %2862 = vmatpush1.msra.mxu0 0.0
        %2863 = vmatprep.subr.mxu0 0.0
        %2864 = vmatpush1.msra.mxu0 0.0
        %2865 = vmatprep.subr.mxu0 0.0
        %2866 = vmatpush1.msra.mxu0 0.0
        %2867 = vmatprep.subr.mxu0 0.0
        %2868 = vmatpush1.msra.mxu0 0.0
        %2869 = vmatprep.subr.mxu0 0.0
        %2870 = vmatpush1.msra.mxu0 0.0
        %2871 = vmatprep.subr.mxu0 0.0
        %2872 = vmatpush1.msra.mxu0 0.0
        %2873 = vmatprep.subr.mxu0 0.0
        %2874 = vmatpush1.msra.mxu0 0.0
        %2875 = vmatprep.subr.mxu0 0.0
        %2876 = vmatpush1.msra.mxu0 0.0
        %2877 = vmatprep.subr.mxu0 0.0
        %2878 = vmatpush1.msra.mxu0 0.0
        %2879 = vmatprep.subr.mxu0 0.0
        %2880 = vmatpush1.msra.mxu0 0.0
        %2881 = vmatprep.subr.mxu0 0.0
        %2882 = vmatpush1.msra.mxu0 0.0
        %2883 = vmatprep.subr.mxu0 0.0
        %2884 = vmatpush1.msra.mxu0 0.0
        %2885 = vmatprep.subr.mxu0 0.0
        %2886 = vmatpush1.msra.mxu0 0.0
        %2887 = vmatprep.subr.mxu0 0.0
        %2888 = vmatpush1.msra.mxu0 0.0
        %2889 = vmatprep.subr.mxu0 0.0
        %2890 = vmatpush1.msra.mxu0 0.0
        %2891 = vmatprep.subr.mxu0 0.0
        %2892 = vmatpush1.msra.mxu0 0.0
        %2893 = vmatprep.subr.mxu0 0.0
        %2894 = vmatpush1.msra.mxu0 0.0
        %2895 = vmatprep.subr.mxu0 0.0
        %2896 = vmatpush1.msra.mxu0 0.0
        %2897 = vmatprep.subr.mxu0 0.0
        %2898 = vmatpush1.msra.mxu0 0.0
        %2899 = vmatprep.subr.mxu0 0.0
        %2900 = vmatpush1.msra.mxu0 0.0
        %2901 = vmatprep.subr.mxu0 0.0
        %2902 = vmatpush1.msra.mxu0 0.0
        %2903 = vmatprep.subr.mxu0 0.0
        %2904 = vmatpush1.msra.mxu0 0.0
        %2905 = vmatprep.subr.mxu0 0.0
        %2906 = vmatpush1.msra.mxu0 0.0
        %2907 = vmatprep.subr.mxu0 0.0
        %2908 = vmatpush1.msra.mxu0 0.0
        %2909 = vmatprep.subr.mxu0 0.0
        %2910 = vmatpush1.msra.mxu0 0.0
        %2911 = vmatprep.subr.mxu0 0.0
        %2912 = vmatpush1.msra.mxu0 0.0
        %2913 = vmatprep.subr.mxu0 0.0
        %2914 = vmatpush1.msra.mxu0 0.0
        %2915 = vmatprep.subr.mxu0 0.0
        %2916 = vmatpush1.msra.mxu0 0.0
        %2917 = vmatprep.mubr.f32.mxu0 0.0
        %v2918 = vand.u32 %v2639, 4294901760
        %v2919 = vsub.f32 %v2639, %v2918
        %2920 = vmatmul.mubr.f32.gmra.mrb[0].mxu0 %v2919
        %v2921 = vpop.f32.mrb[0].mxu0
        %v2922 = vadd.f32 %v2833, %v2921
        %v2923 = vpop.f32.mrb[0].mxu0
        %v2924 = vadd.f32 %v2835, %v2923
        %2925 = vdwg.mxu0
        %v2926 = vand.u32 %v2628, 4294901760
        %2927 = vmatprep.subr.mxu0 %v2926
        %v2928 = vand.u32 %v2627, 4294901760
        %2929 = vmatpush1.msra.mxu0 %v2928
        %v2930 = vand.u32 %v2630, 4294901760
        %2931 = vmatprep.subr.mxu0 %v2930
        %v2932 = vand.u32 %v2629, 4294901760
        %2933 = vmatpush1.msra.mxu0 %v2932
        %v2934 = vand.u32 %v2632, 4294901760
        %2935 = vmatprep.subr.mxu0 %v2934
        %v2936 = vand.u32 %v2631, 4294901760
        %2937 = vmatpush1.msra.mxu0 %v2936
        %v2938 = vand.u32 %v2634, 4294901760
        %2939 = vmatprep.subr.mxu0 %v2938
        %v2940 = vand.u32 %v2633, 4294901760
        %2941 = vmatpush1.msra.mxu0 %v2940
        %2942 = vmatprep.subr.mxu0 0.0
        %2943 = vmatpush1.msra.mxu0 0.0
        %2944 = vmatprep.subr.mxu0 0.0
        %2945 = vmatpush1.msra.mxu0 0.0
        %2946 = vmatprep.subr.mxu0 0.0
        %2947 = vmatpush1.msra.mxu0 0.0
        %2948 = vmatprep.subr.mxu0 0.0
        %2949 = vmatpush1.msra.mxu0 0.0
        %2950 = vmatprep.subr.mxu0 0.0
        %2951 = vmatpush1.msra.mxu0 0.0
        %2952 = vmatprep.subr.mxu0 0.0
        %2953 = vmatpush1.msra.mxu0 0.0
        %2954 = vmatprep.subr.mxu0 0.0
        %2955 = vmatpush1.msra.mxu0 0.0
        %2956 = vmatprep.subr.mxu0 0.0
        %2957 = vmatpush1.msra.mxu0 0.0
        %2958 = vmatprep.subr.mxu0 0.0
        %2959 = vmatpush1.msra.mxu0 0.0
        %2960 = vmatprep.subr.mxu0 0.0
        %2961 = vmatpush1.msra.mxu0 0.0
        %2962 = vmatprep.subr.mxu0 0.0
        %2963 = vmatpush1.msra.mxu0 0.0
        %2964 = vmatprep.subr.mxu0 0.0
        %2965 = vmatpush1.msra.mxu0 0.0
        %2966 = vmatprep.subr.mxu0 0.0
        %2967 = vmatpush1.msra.mxu0 0.0
        %2968 = vmatprep.subr.mxu0 0.0
        %2969 = vmatpush1.msra.mxu0 0.0
        %2970 = vmatprep.subr.mxu0 0.0
        %2971 = vmatpush1.msra.mxu0 0.0
        %2972 = vmatprep.subr.mxu0 0.0
        %2973 = vmatpush1.msra.mxu0 0.0
        %2974 = vmatprep.subr.mxu0 0.0
        %2975 = vmatpush1.msra.mxu0 0.0
        %2976 = vmatprep.subr.mxu0 0.0
        %2977 = vmatpush1.msra.mxu0 0.0
        %2978 = vmatprep.subr.mxu0 0.0
        %2979 = vmatpush1.msra.mxu0 0.0
        %2980 = vmatprep.subr.mxu0 0.0
        %2981 = vmatpush1.msra.mxu0 0.0
        %2982 = vmatprep.subr.mxu0 0.0
        %2983 = vmatpush1.msra.mxu0 0.0
        %2984 = vmatprep.subr.mxu0 0.0
        %2985 = vmatpush1.msra.mxu0 0.0
        %2986 = vmatprep.subr.mxu0 0.0
        %2987 = vmatpush1.msra.mxu0 0.0
        %2988 = vmatprep.subr.mxu0 0.0
        %2989 = vmatpush1.msra.mxu0 0.0
        %2990 = vmatprep.subr.mxu0 0.0
        %2991 = vmatpush1.msra.mxu0 0.0
        %2992 = vmatprep.subr.mxu0 0.0
        %2993 = vmatpush1.msra.mxu0 0.0
        %2994 = vmatprep.subr.mxu0 0.0
        %2995 = vmatpush1.msra.mxu0 0.0
        %2996 = vmatprep.subr.mxu0 0.0
        %2997 = vmatpush1.msra.mxu0 0.0
        %2998 = vmatprep.mubr.f32.mxu0 0.0
        %v2999 = vand.u32 %v2639, 4294901760
        %v3000 = vsub.f32 %v2639, %v2999
        %v3001 = vand.u32 %v3000, 4294901760
        %3002 = vmatmul.mubr.f32.gmra.mrb[0].mxu0 %v3001
        %v3003 = vpop.f32.mrb[0].mxu0
        %v3004 = vadd.f32 %v2922, %v3003
        %v3005 = vpop.f32.mrb[0].mxu0
        %v3006 = vadd.f32 %v2924, %v3005
        %3007 = vdwg.mxu0
        %v3008 = vand.u32 %v2628, 4294901760
        %v3009 = vsub.f32 %v2628, %v3008
        %v3010 = vand.u32 %v3009, 4294901760
        %3011 = vmatprep.subr.mxu0 %v3010
        %v3012 = vand.u32 %v2627, 4294901760
        %v3013 = vsub.f32 %v2627, %v3012
        %v3014 = vand.u32 %v3013, 4294901760
        %3015 = vmatpush1.msra.mxu0 %v3014
        %v3016 = vand.u32 %v2630, 4294901760
        %v3017 = vsub.f32 %v2630, %v3016
        %v3018 = vand.u32 %v3017, 4294901760
        %3019 = vmatprep.subr.mxu0 %v3018
        %v3020 = vand.u32 %v2629, 4294901760
        %v3021 = vsub.f32 %v2629, %v3020
        %v3022 = vand.u32 %v3021, 4294901760
        %3023 = vmatpush1.msra.mxu0 %v3022
        %v3024 = vand.u32 %v2632, 4294901760
        %v3025 = vsub.f32 %v2632, %v3024
        %v3026 = vand.u32 %v3025, 4294901760
        %3027 = vmatprep.subr.mxu0 %v3026
        %v3028 = vand.u32 %v2631, 4294901760
        %v3029 = vsub.f32 %v2631, %v3028
        %v3030 = vand.u32 %v3029, 4294901760
        %3031 = vmatpush1.msra.mxu0 %v3030
        %v3032 = vand.u32 %v2634, 4294901760
        %v3033 = vsub.f32 %v2634, %v3032
        %v3034 = vand.u32 %v3033, 4294901760
        %3035 = vmatprep.subr.mxu0 %v3034
        %v3036 = vand.u32 %v2633, 4294901760
        %v3037 = vsub.f32 %v2633, %v3036
        %v3038 = vand.u32 %v3037, 4294901760
        %3039 = vmatpush1.msra.mxu0 %v3038
        %3040 = vmatprep.subr.mxu0 0.0
        %3041 = vmatpush1.msra.mxu0 0.0
        %3042 = vmatprep.subr.mxu0 0.0
        %3043 = vmatpush1.msra.mxu0 0.0
        %3044 = vmatprep.subr.mxu0 0.0
        %3045 = vmatpush1.msra.mxu0 0.0
        %3046 = vmatprep.subr.mxu0 0.0
        %3047 = vmatpush1.msra.mxu0 0.0
        %3048 = vmatprep.subr.mxu0 0.0
        %3049 = vmatpush1.msra.mxu0 0.0
        %3050 = vmatprep.subr.mxu0 0.0
        %3051 = vmatpush1.msra.mxu0 0.0
        %3052 = vmatprep.subr.mxu0 0.0
        %3053 = vmatpush1.msra.mxu0 0.0
        %3054 = vmatprep.subr.mxu0 0.0
        %3055 = vmatpush1.msra.mxu0 0.0
        %3056 = vmatprep.subr.mxu0 0.0
        %3057 = vmatpush1.msra.mxu0 0.0
        %3058 = vmatprep.subr.mxu0 0.0
        %3059 = vmatpush1.msra.mxu0 0.0
        %3060 = vmatprep.subr.mxu0 0.0
        %3061 = vmatpush1.msra.mxu0 0.0
        %3062 = vmatprep.subr.mxu0 0.0
        %3063 = vmatpush1.msra.mxu0 0.0
        %3064 = vmatprep.subr.mxu0 0.0
        %3065 = vmatpush1.msra.mxu0 0.0
        %3066 = vmatprep.subr.mxu0 0.0
        %3067 = vmatpush1.msra.mxu0 0.0
        %3068 = vmatprep.subr.mxu0 0.0
        %3069 = vmatpush1.msra.mxu0 0.0
        %3070 = vmatprep.subr.mxu0 0.0
        %3071 = vmatpush1.msra.mxu0 0.0
        %3072 = vmatprep.subr.mxu0 0.0
        %3073 = vmatpush1.msra.mxu0 0.0
        %3074 = vmatprep.subr.mxu0 0.0
        %3075 = vmatpush1.msra.mxu0 0.0
        %3076 = vmatprep.subr.mxu0 0.0
        %3077 = vmatpush1.msra.mxu0 0.0
        %3078 = vmatprep.subr.mxu0 0.0
        %3079 = vmatpush1.msra.mxu0 0.0
        %3080 = vmatprep.subr.mxu0 0.0
        %3081 = vmatpush1.msra.mxu0 0.0
        %3082 = vmatprep.subr.mxu0 0.0
        %3083 = vmatpush1.msra.mxu0 0.0
        %3084 = vmatprep.subr.mxu0 0.0
        %3085 = vmatpush1.msra.mxu0 0.0
        %3086 = vmatprep.subr.mxu0 0.0
        %3087 = vmatpush1.msra.mxu0 0.0
        %3088 = vmatprep.subr.mxu0 0.0
        %3089 = vmatpush1.msra.mxu0 0.0
        %3090 = vmatprep.subr.mxu0 0.0
        %3091 = vmatpush1.msra.mxu0 0.0
        %3092 = vmatprep.subr.mxu0 0.0
        %3093 = vmatpush1.msra.mxu0 0.0
        %3094 = vmatprep.subr.mxu0 0.0
        %3095 = vmatpush1.msra.mxu0 0.0
        %3096 = vmatprep.mubr.f32.mxu0 0.0
        %v3097 = vand.u32 %v2639, 4294901760
        %3098 = vmatmul.mubr.f32.gmra.mrb[0].mxu0 %v3097
        %v3099 = vpop.f32.mrb[0].mxu0
        %v3100 = vadd.f32 %v3004, %v3099
        %v3101 = vpop.f32.mrb[0].mxu0
        %v3102 = vadd.f32 %v3006, %v3101
        %3103 = vdwg.mxu0
        %v3104 = vand.u32 %v2628, 4294901760
        %3105 = vmatprep.subr.mxu0 %v3104
        %v3106 = vand.u32 %v2627, 4294901760
        %3107 = vmatpush1.msra.mxu0 %v3106
        %v3108 = vand.u32 %v2630, 4294901760
        %3109 = vmatprep.subr.mxu0 %v3108
        %v3110 = vand.u32 %v2629, 4294901760
        %3111 = vmatpush1.msra.mxu0 %v3110
        %v3112 = vand.u32 %v2632, 4294901760
        %3113 = vmatprep.subr.mxu0 %v3112
        %v3114 = vand.u32 %v2631, 4294901760
        %3115 = vmatpush1.msra.mxu0 %v3114
        %v3116 = vand.u32 %v2634, 4294901760
        %3117 = vmatprep.subr.mxu0 %v3116
        %v3118 = vand.u32 %v2633, 4294901760
        %3119 = vmatpush1.msra.mxu0 %v3118
        %3120 = vmatprep.subr.mxu0 0.0
        %3121 = vmatpush1.msra.mxu0 0.0
        %3122 = vmatprep.subr.mxu0 0.0
        %3123 = vmatpush1.msra.mxu0 0.0
        %3124 = vmatprep.subr.mxu0 0.0
        %3125 = vmatpush1.msra.mxu0 0.0
        %3126 = vmatprep.subr.mxu0 0.0
        %3127 = vmatpush1.msra.mxu0 0.0
        %3128 = vmatprep.subr.mxu0 0.0
        %3129 = vmatpush1.msra.mxu0 0.0
        %3130 = vmatprep.subr.mxu0 0.0
        %3131 = vmatpush1.msra.mxu0 0.0
        %3132 = vmatprep.subr.mxu0 0.0
        %3133 = vmatpush1.msra.mxu0 0.0
        %3134 = vmatprep.subr.mxu0 0.0
        %3135 = vmatpush1.msra.mxu0 0.0
        %3136 = vmatprep.subr.mxu0 0.0
        %3137 = vmatpush1.msra.mxu0 0.0
        %3138 = vmatprep.subr.mxu0 0.0
        %3139 = vmatpush1.msra.mxu0 0.0
        %3140 = vmatprep.subr.mxu0 0.0
        %3141 = vmatpush1.msra.mxu0 0.0
        %3142 = vmatprep.subr.mxu0 0.0
        %3143 = vmatpush1.msra.mxu0 0.0
        %3144 = vmatprep.subr.mxu0 0.0
        %3145 = vmatpush1.msra.mxu0 0.0
        %3146 = vmatprep.subr.mxu0 0.0
        %3147 = vmatpush1.msra.mxu0 0.0
        %3148 = vmatprep.subr.mxu0 0.0
        %3149 = vmatpush1.msra.mxu0 0.0
        %3150 = vmatprep.subr.mxu0 0.0
        %3151 = vmatpush1.msra.mxu0 0.0
        %3152 = vmatprep.subr.mxu0 0.0
        %3153 = vmatpush1.msra.mxu0 0.0
        %3154 = vmatprep.subr.mxu0 0.0
        %3155 = vmatpush1.msra.mxu0 0.0
        %3156 = vmatprep.subr.mxu0 0.0
        %3157 = vmatpush1.msra.mxu0 0.0
        %3158 = vmatprep.subr.mxu0 0.0
        %3159 = vmatpush1.msra.mxu0 0.0
        %3160 = vmatprep.subr.mxu0 0.0
        %3161 = vmatpush1.msra.mxu0 0.0
        %3162 = vmatprep.subr.mxu0 0.0
        %3163 = vmatpush1.msra.mxu0 0.0
        %3164 = vmatprep.subr.mxu0 0.0
        %3165 = vmatpush1.msra.mxu0 0.0
        %3166 = vmatprep.subr.mxu0 0.0
        %3167 = vmatpush1.msra.mxu0 0.0
        %3168 = vmatprep.subr.mxu0 0.0
        %3169 = vmatpush1.msra.mxu0 0.0
        %3170 = vmatprep.subr.mxu0 0.0
        %3171 = vmatpush1.msra.mxu0 0.0
        %3172 = vmatprep.subr.mxu0 0.0
        %3173 = vmatpush1.msra.mxu0 0.0
        %3174 = vmatprep.subr.mxu0 0.0
        %3175 = vmatpush1.msra.mxu0 0.0
        %3176 = vmatprep.mubr.f32.mxu0 0.0
        %v3177 = vand.u32 %v2639, 4294901760
        %3178 = vmatmul.mubr.f32.gmra.mrb[0].mxu0 %v3177
        %v3179 = vpop.f32.mrb[0].mxu0
        %v3180 = vadd.f32 %v3100, %v3179
        %v3181 = vpop.f32.mrb[0].mxu0
        %v3182 = vadd.f32 %v3102, %v3181
        %3183 = vdwg.mxu0
        %v3184 = vxor.u32 %v3180, 2147483648
        %v3185 = vxor.u32 %v3182, 2147483648
        %v3186 = vmul.f32 %v3184, 1.442695
        %v3187 = vpow.pop %v3186
        %v3188 = vmul.f32 %v3185, 1.442695
        %v3189 = vpow.pop %v3188
        %v3190 = vadd.f32 %v3187, 1.0
        %v3191 = vadd.f32 %v3189, 1.0
        %v3192 = vrcp.pop %v3190
        %v3193 = vmul.f32 1.0, %v3192
        %v3194 = vrcp.pop %v3191
        %v3195 = vmul.f32 1.0, %v3194
        %v3198 = vcombine.low %v3193, %v3195
        %v3200 = vunpack.c.l.s4 1966171168
        %v3201 = vunpack.c.0.s8 %v3200
        %v3202 = vlaneseq
        %v3203 = vshrl.u32 %v3202, 7
        %v3204 = vsub.s32 %v3201, %v3203
        %v3205 = vrot.slane %v3198, %v3204
        %v3207 = vunpack.c.l.s4 1966171168
        %v3208 = vunpack.c.0.s8 %v3207
        %v3209 = vlaneseq
        %v3210 = vshrl.u32 %v3209, 7
        %v3211 = vsub.s32 %v3208, %v3210
        %v3212 = vrot.slane %v3205, %v3211
        %v3214 = vlaneseq
        %vm3215 = vcmp.ge.s32.totalorder %v3214, 0
        %vm3216 = vcmp.lt.s32.totalorder %v3214, 256
        %vm3217 = vmand %vm3215, %vm3216
        %3218 = vst.msk [vmem:[%s289] sm:$0x3] %vm3217, %v3212
        %s3219 = sand.u32 %s187, 1
        %s3220 = scalar_lea.sflag [#allocation4], %s3219
        %s3221 = sand.u32 %s187, 1
        %s3222 = smul.addr %s3221, 2
        %s3223 = scalar_lea.vmem [#allocation3], %s3222
        // Predicated region
        $region49: #{tpu_custom_call.1} parent=47 // pred_check
          %p3224 = pneg %p197
        $region50: #{tpu_custom_call.1} parent=47 // pred_check_branch
          %3226 = sbr.rel (%p3224) target = $region52
        $region51: #{tpu_custom_call.1} parent=47 // pred_region
          %s3228 = ssub.s32 32, 32
          %3229 = vsyncadd %s3220, %s3228
          %s3230 = smul.addr %s22, 2
          %s3231 = smul.addr %s3230, 16
          %s3232 = scalar_lea.hbm %s7, %s3231
          %s3234 = sshll.u32 %s3223, 4
          %s3235 = int_to_ptr.vmem [resolvable:$true] %s3234
          %3237 = dma.vmem_to_hbm [thread:$0]  %s3235, 32, %s3232, %s3220
        $region52: #{tpu_custom_call.1} parent=47 // pred_fallthru
          _
      $region48: #{tpu_custom_call.1} parent=5 // pred_fallthru
        _
      %p3238 = scmp.le.s32.totalorder 2, %s17
      // Predicated region
      $region53: #{tpu_custom_call.1} parent=5 // pred_check
        %p3239 = pneg %p3238
      $region54: #{tpu_custom_call.1} parent=5 // pred_check_branch
        %3241 = sbr.rel (%p3239) target = $region56
      $region55: #{tpu_custom_call.1} parent=5 // pred_region
        %s3242 = ssub.s32 %s17, 2
        // Predicated region
        $region57: #{tpu_custom_call.1} parent=55 // pred_check
          %p3243 = pneg %p203
        $region58: #{tpu_custom_call.1} parent=55 // pred_check_branch
          %3245 = sbr.rel (%p3243) target = $region60
        $region59: #{tpu_custom_call.1} parent=55 // pred_region
          %s3246 = sand.u32 %s188, 1
          %s3247 = scalar_lea.sflag [#allocation4], %s3246
          %s3248 = sand.u32 %s188, 1
          %s3249 = smul.addr %s3248, 2
          %s3250 = scalar_lea.vmem [#allocation3], %s3249
          %3251 = dma.done %s3247, 32
        $region60: #{tpu_custom_call.1} parent=55 // pred_fallthru
          _
      $region56: #{tpu_custom_call.1} parent=5 // pred_fallthru
        _
    $region6: #{tpu_custom_call.1} parent=1 // loop_footer
      %s21 = sadd.s32 1, %s17
    $region7: #{tpu_custom_call.1} parent=1 // loop_footer_branch
      %16 = sbr.rel target = $region3
    $region8: #{tpu_custom_call.1} parent=1 // loop_exit
      _
    %3252 = vsyncpa [#allocation4], 1
    %s3253 = scalar_lea.sflag [#allocation4], 1
    %3254 = vsyncpa %s3253, 1

</llo_original>
